<compile_context>
chip_gen: v7x
topology: tpu7x:2x2x1
jax: 0.10.0
libtpu: 0.0.40
codegen_flags: <defaults>
</compile_context>

<pallas_src>
import functools

import jax
import jax.numpy as jnp
from jax import lax
from jax.experimental import pallas as pl
from jax.experimental.pallas import tpu as pltpu


# ----------------------------------------------------------------------------------
# Pallas kernels
# ----------------------------------------------------------------------------------
def _estimation_mlp_kernel(att_ref, w1_ref, b1_ref, g_ref, be_ref, w2_ref, b2_ref, o_ref):
    # att: (N, 4000) f32, w1: (4000, 128) bf16  ->  o: (N, 1)
    # bf16 kept ONLY on this path: it halves the one HBM read that dominates this kernel.
    # TODO(synk): per-column 8-bit w1 (int8 on v5e/v6e, fp8-e4m3 on v7x) would halve it again;
    # skipped to keep a single generation-agnostic script.
    h = jnp.dot(att_ref[...].astype(jnp.bfloat16), w1_ref[...],
                preferred_element_type=jnp.float32) + b1_ref[...]
    # BatchNorm1d with training-mode batch statistics (biased variance), eps=1e-5.
    # TODO(synk): eval-mode running statistics are not modelled (module default is training).
    mu = jnp.mean(h, axis=0, keepdims=True)
    var = jnp.mean((h - mu) ** 2, axis=0, keepdims=True)
    h = g_ref[...] * (h - mu) * lax.rsqrt(var + 1e-5) + be_ref[...]
    h = jnp.where(h > 0, h, 0.2 * h)                                 # LeakyReLU(0.2)
    o = jnp.dot(h, w2_ref[...], preferred_element_type=jnp.float32) + b2_ref[...]
    o_ref[...] = jnp.tanh(o)


def estimation_mlp(att, w1_bf16, b1, g, be, w2, b2):
    N = att.shape[0]
    return pl.pallas_call(
        _estimation_mlp_kernel,
        out_shape=jax.ShapeDtypeStruct((N, 1), jnp.float32),
    )(att, w1_bf16, b1, g, be, w2, b2)


def _fused_attn_mam_kernel(ecoef_ref,              # SMEM (N,) f32
                           ctx_ref, ctx2_ref,      # (P, 9) f32 (batch-normalized contexts)
                           x_ref, x2_ref,          # (C, HW), (C, H1W1) f32
                           wx_ref, wy_ref,         # (P, C) f32
                           waddw_ref, waddb_ref,   # (C, P) f32, (C, 1) f32
                           wc1_ref, wc2_ref,       # (Cr, C), (C, Cr) f32
                           aout_ref, vout_ref):
    b = pl.program_id(0)
    ec = ecoef_ref[b]                              # scalar read from 1-D SMEM

    x = x_ref[...]                                 # (C, HW)   f32
    x2 = x2_ref[...]                               # (C, H1W1) f32

    # Cross_attention = softmax(context @ context2^T) over the last dim.  K=9: pure f32
    # (these dots are MXU-latency, not throughput, bound; bf16 would only add VPU packs).
    s = lax.dot_general(ctx_ref[...], ctx2_ref[...], (((1,), (1,)), ((), ())),
                        preferred_element_type=jnp.float32)          # (P, P)
    s = s - jnp.max(s, axis=-1, keepdims=True)
    e = jnp.exp(s)
    p = e * pl.reciprocal(jnp.sum(e, axis=-1, keepdims=True), approx=True)

    # Reassociated channel_add chain (everything is linear & bias-free up to the sigmoid):
    #   channel_add(cat([EC, P @ (Wx @ x)])) == sigmoid((Wadd[:,1:] @ P @ Wx) @ x + Wadd[:,0:1]*EC)
    # Two tiny (C,P)x(P,P)x(P,C) products build M_A / M_V, then ONE wide matmul per branch.
    m_a = jnp.dot(waddw_ref[...],
                  jnp.dot(p, wx_ref[...], preferred_element_type=jnp.float32),
                  preferred_element_type=jnp.float32)                # (C, C)
    m_v = jnp.dot(waddw_ref[...],
                  jnp.dot(p, wy_ref[...], preferred_element_type=jnp.float32),
                  preferred_element_type=jnp.float32)                # (C, C)
    bias = waddb_ref[...] * ec                                       # (C, 1)
    addA = jax.nn.sigmoid(jnp.dot(m_a, x, preferred_element_type=jnp.float32) + bias)
    addV = jax.nn.sigmoid(jnp.dot(m_v, x2, preferred_element_type=jnp.float32) + bias)

    # --- MAM, both branches with a single fused channel-attention MLP pass -------------
    mu_a = jnp.mean(addA, axis=1, keepdims=True)                     # (C, 1)
    mx_a = jnp.max(addA, axis=1, keepdims=True)
    mu_v = jnp.mean(addV, axis=1, keepdims=True)
    mx_v = jnp.max(addV, axis=1, keepdims=True)
    pooled = jnp.concatenate([mu_a, mx_a, mu_v, mx_v], axis=1)       # (C, 4)
    h = jnp.maximum(jnp.dot(wc1_ref[...], pooled, preferred_element_type=jnp.float32), 0.0)
    att = jax.nn.sigmoid(jnp.dot(wc2_ref[...], h, preferred_element_type=jnp.float32))  # (C, 4)
    mask_a = att[:, 0:1] + att[:, 1:2]                               # Avg_mask + Max_mask
    mask_v = att[:, 2:3] + att[:, 3:4]

    # InstanceNorm2d (affine=False, biased variance, eps=1e-5); var = E[t^2] - mu^2 so the
    # variance reduction does not serialize behind the mean reduction.
    var_a = jnp.maximum(jnp.mean(addA * addA, axis=1, keepdims=True) - mu_a * mu_a, 0.0)
    var_v = jnp.maximum(jnp.mean(addV * addV, axis=1, keepdims=True) - mu_v * mu_v, 0.0)
    tn_a = (addA - mu_a) * lax.rsqrt(var_a + 1e-5)
    tn_v = (addV - mu_v) * lax.rsqrt(var_v + 1e-5)

    aout_ref[...] = x * mask_a + tn_a * (1.0 - mask_a)
    vout_ref[...] = x2 * mask_v + tn_v * (1.0 - mask_v)


def fused_attention_mam(ecoef_1d, ctx, ctx2, x_flat, x2_flat,
                        wx, wy, waddw, waddb, wc1, wc2):
    N, P, K = ctx.shape
    C, HW = x_flat.shape[1], x_flat.shape[2]
    H1W1 = x2_flat.shape[2]
    Cr = wc1.shape[0]
    return pl.pallas_call(
        _fused_attn_mam_kernel,
        out_shape=(jax.ShapeDtypeStruct((N, C, HW), jnp.float32),
                   jax.ShapeDtypeStruct((N, C, H1W1), jnp.float32)),
        grid=(N,),
        in_specs=[
            pl.BlockSpec(memory_space=pltpu.MemorySpace.SMEM),       # ecoef (N,) scalar
            pl.BlockSpec((None, P, K), lambda b: (b, 0, 0)),         # context
            pl.BlockSpec((None, P, K), lambda b: (b, 0, 0)),         # context2
            pl.BlockSpec((None, C, HW), lambda b: (b, 0, 0)),        # x
            pl.BlockSpec((None, C, H1W1), lambda b: (b, 0, 0)),      # x2
            pl.BlockSpec((P, C), lambda b: (0, 0)),                  # wx
            pl.BlockSpec((P, C), lambda b: (0, 0)),                  # wy
            pl.BlockSpec((C, P), lambda b: (0, 0)),                  # wadd[:, 1:]
            pl.BlockSpec((C, 1), lambda b: (0, 0)),                  # wadd[:, 0:1]
            pl.BlockSpec((Cr, C), lambda b: (0, 0)),                 # wc1
            pl.BlockSpec((C, Cr), lambda b: (0, 0)),                 # wc2
        ],
        out_specs=(pl.BlockSpec((None, C, HW), lambda b: (b, 0, 0)),
                   pl.BlockSpec((None, C, H1W1), lambda b: (b, 0, 0))),
        compiler_params=pltpu.CompilerParams(dimension_semantics=("parallel",)),
    )(ecoef_1d, ctx, ctx2, x_flat, x2_flat, wx, wy, waddw, waddb, wc1, wc2)


# ----------------------------------------------------------------------------------
# Glue (plain JAX)
# ----------------------------------------------------------------------------------
def adaptive_avg_pool2d_3x3(x):
    """Matches nn.AdaptiveAvgPool2d((3, 3)) for NCHW."""
    N, C, H, W = x.shape
    if H % 3 == 0 and W % 3 == 0:
        # Single fused reshape-mean (exact when H, W divide by 3).
        return x.reshape(N, C, 3, H // 3, 3, W // 3).mean(axis=(3, 5))
    # Fallback: exact adaptive-pool region semantics for non-divisible sizes.
    rows = []
    for i in range(3):
        hs = (i * H) // 3
        he = -((-(i + 1) * H) // 3)
        cols = []
        for j in range(3):
            ws = (j * W) // 3
            we = -((-(j + 1) * W) // 3)
            cols.append(jnp.mean(x[:, :, hs:he, ws:we], axis=(2, 3)))
        rows.append(jnp.stack(cols, axis=-1))
    return jnp.stack(rows, axis=-2)  # (N, C, 3, 3)


def count_sketch(x, h, s, D):
    # x: (N, P, K) -> sketch the channel dim P into D bins -> (N, D, K)
    sk = jnp.zeros((x.shape[0], D, x.shape[2]), x.dtype)
    return sk.at[:, h, :].add(s[None, :, None] * x)


def compact_bilinear_pooling(x, y, h1, s1, h2, s2, D):
    # TODO(synk): original CompactBilinearPooling class not provided; this is the standard
    # Tensor-Sketch CBP (count sketch + FFT product) over the channel dim with sum-pooling
    # over the 3x3 spatial positions.  FFT stays in plain JAX (no Pallas FFT primitive).
    sk1 = count_sketch(x, h1, s1, D)
    sk2 = count_sketch(y, h2, s2, D)
    f1 = jnp.fft.rfft(sk1, axis=1)
    f2 = jnp.fft.rfft(sk2, axis=1)
    prod = jnp.fft.irfft(f1 * f2, n=D, axis=1)   # (N, D, K)
    return jnp.sum(prod, axis=2)                 # (N, D)


def spectral_normalize(w, key, n_iter=50, eps=1e-12):
    """Approximates torch.nn.utils.spectral_norm (converged power iteration, random u)."""
    u = jax.random.normal(key, (w.shape[0],), w.dtype)
    u = u / (jnp.linalg.norm(u) + eps)
    v = jnp.zeros((w.shape[1],), w.dtype)
    for _ in range(n_iter):
        v = w.T @ u
        v = v / (jnp.linalg.norm(v) + eps)
        u = w @ v
        u = u / (jnp.linalg.norm(u) + eps)
    sigma = u @ (w @ v)
    return w / sigma


def init_params(key, C, P, D=4000, hidden=128):
    ks = jax.random.split(key, 16)
    f32 = jnp.float32
    params = {
        # spectral-normed 1x1 conv weights (out=P, in=C)
        "wx": spectral_normalize(jax.random.normal(ks[0], (P, C), f32) / jnp.sqrt(C), ks[10]),
        "wy": spectral_normalize(jax.random.normal(ks[1], (P, C), f32) / jnp.sqrt(C), ks[11]),
        # channel_add_conv: Conv2d(P+1 -> C, 1x1, no bias)
        "wadd": jax.random.normal(ks[2], (C, P + 1), f32) / jnp.sqrt(P + 1),
        # MAM channel attention: Conv2d(C -> C//4) and Conv2d(C//4 -> C), no bias
        "wc1": jax.random.normal(ks[3], (C // 4, C), f32) / jnp.sqrt(C),
        "wc2": jax.random.normal(ks[4], (C, C // 4), f32) / jnp.sqrt(C // 4),
        # estimation_Coeff: Linear(D,128) + BN(128) + LeakyReLU + Linear(128,1) + Tanh
        "w1": jax.random.normal(ks[5], (D, hidden), f32) / jnp.sqrt(D),
        "b1": jnp.zeros((1, hidden), f32),
        "bn_g": jnp.ones((1, hidden), f32),
        "bn_b": jnp.zeros((1, hidden), f32),
        "w2": jax.random.normal(ks[6], (hidden, 1), f32) / jnp.sqrt(hidden),
        "b2": jnp.zeros((1, 1), f32),
        # CBP count-sketch hashes / signs (deterministic)
        "h1": jax.random.randint(ks[7], (P,), 0, D),
        "h2": jax.random.randint(ks[8], (P,), 0, D),
        "s1": jnp.where(jax.random.bernoulli(ks[9], 0.5, (P,)), 1.0, -1.0).astype(f32),
        "s2": jnp.where(jax.random.bernoulli(ks[12], 0.5, (P,)), 1.0, -1.0).astype(f32),
        "cbp_dim": D,
    }
    return params


def context_block_forward(x, x2, params):
    """ContextBlock.forward(x, x2) -> (Aout, Vout2, ECoefficient)."""
    N, C, H, W = x.shape
    _, _, H1, W1 = x2.shape
    D = params["cbp_dim"]

    x_flat = x.reshape(N, C, H * W)
    x2_flat = x2.reshape(N, C, H1 * W1)

    # One-time wrapper-side weight prep: channel_add weight pre-split (no in-kernel lane
    # slicing), bf16 only for the estimation-MLP w1 HBM read.
    waddw = params["wadd"][:, 1:]                           # (C, P)  f32
    waddb = params["wadd"][:, 0:1]                          # (C, 1)  f32
    w1_b = params["w1"].astype(jnp.bfloat16)

    # GAP path: gap(conv1x1(x)) == conv1x1(gap(x)) for a linear, bias-free 1x1 conv, so
    # the pooled-path projection runs on the tiny (N, C, 3, 3) tensors in plain JAX; the
    # full-resolution projection is folded algebraically into the fused kernel's (C,C) matmul.
    px = adaptive_avg_pool2d_3x3(x).reshape(N, C, 9)
    px2 = adaptive_avg_pool2d_3x3(x2).reshape(N, C, 9)
    ctxA_gap = jnp.einsum("pc,nck->npk", params["wx"], px)      # (N, P, 9)
    ctx2V_gap = jnp.einsum("pc,nck->npk", params["wy"], px2)    # (N, P, 9)

    # L2 normalisation over the *batch* dim, as in the module (torch.norm(..., dim=0)).
    normA = jnp.maximum(jnp.sqrt(jnp.sum(ctxA_gap ** 2, axis=0, keepdims=True)), 1e-12)
    norm2 = jnp.maximum(jnp.sqrt(jnp.sum(ctx2V_gap ** 2, axis=0, keepdims=True)), 1e-12)
    context = ctxA_gap / normA
    context2 = ctx2V_gap / norm2

    # Compact bilinear pooling (glue, FFT) + estimation_Coeff MLP (Pallas kernel)
    att_cross = compact_bilinear_pooling(context, context2,
                                         params["h1"], params["s1"],
                                         params["h2"], params["s2"], D)      # (N, D)
    ecoefficient = estimation_mlp(att_cross, w1_b, params["b1"],
                                  params["bn_g"], params["bn_b"],
                                  params["w2"], params["b2"])                # (N, 1)

    # Fused Pallas kernel: cross-attention + reassociated channel_add + MAM, one batch
    # element per grid step (one per TensorCore on v7x).
    aout_flat, vout_flat = fused_attention_mam(
        ecoefficient[:, 0], context, context2, x_flat, x2_flat,
        params["wx"], params["wy"], waddw, waddb, params["wc1"], params["wc2"])

    # NOTE: channel_mul branch is disabled (fusion_types=('channel_add',)), as in the module.
    return (aout_flat.reshape(N, C, H, W),
            vout_flat.reshape(N, C, H1, W1),
            ecoefficient)


# ----------------------------------------------------------------------------------
if __name__ == "__main__":
    N, C = 2, 8            # inplanes = 8
    ratio = 0.5
    P = int(C * ratio)     # planes = 4
    H = W = 12
    H1 = W1 = 6

    key = jax.random.PRNGKey(0)
    kx, kx2, kparam = jax.random.split(key, 3)
    x = jax.random.normal(kx, (N, C, H, W), jnp.float32)
    x2 = jax.random.normal(kx2, (N, C, H1, W1), jnp.float32)

    params = init_params(kparam, C, P)

    fwd = jax.jit(functools.partial(context_block_forward, params=params))
    aout, vout2, ecoef = fwd(x, x2)
    jax.block_until_ready((aout, vout2, ecoef))

    assert aout.shape == (N, C, H, W)
    assert vout2.shape == (N, C, H1, W1)
    assert ecoef.shape == (N, 1)
    assert bool(jnp.all(jnp.isfinite(aout)))
    assert bool(jnp.all(jnp.isfinite(vout2)))
    assert bool(jnp.all(jnp.isfinite(ecoef)))
    print("KERNEL_OK")
</pallas_src>

<mosaic_0001>
module attributes {stable_mosaic.version = 11 : i64} {
  func.func @_estimation_mlp_kernel(%arg0: memref<2x4000xf32, #tpu.memory_space<vmem>>, %arg1: memref<4000x128xbf16, #tpu.memory_space<vmem>>, %arg2: memref<1x128xf32, #tpu.memory_space<vmem>>, %arg3: memref<1x128xf32, #tpu.memory_space<vmem>>, %arg4: memref<1x128xf32, #tpu.memory_space<vmem>>, %arg5: memref<128x1xf32, #tpu.memory_space<vmem>>, %arg6: memref<1x1xf32, #tpu.memory_space<vmem>>, %arg7: memref<2x1xf32, #tpu.memory_space<vmem>>) attributes {dimension_semantics = [], scalar_prefetch = 0 : i64, scratch_operands = 0 : i64, tpu.core_type = #tpu.core_type<tc>} {
    %c0 = arith.constant 0 : index
    %c0_0 = arith.constant 0 : index
    %0 = vector.load %arg0[%c0, %c0_0] : memref<2x4000xf32, #tpu.memory_space<vmem>>, vector<2x4000xf32>
    %1 = arith.truncf %0 : vector<2x4000xf32> to vector<2x4000xbf16>
    %c0_1 = arith.constant 0 : index
    %c0_2 = arith.constant 0 : index
    %2 = vector.load %arg1[%c0_1, %c0_2] : memref<4000x128xbf16, #tpu.memory_space<vmem>>, vector<4000x128xbf16>
    %cst = arith.constant dense<0.000000e+00> : vector<2x128xf32>
    %3 = tpu.matmul %1, %2, %cst {dimension_numbers = #tpu.dot_dimension_numbers<[1], [0], [0], [1], [0, 0, 1, 1], [], []>} : vector<2x4000xbf16>, vector<4000x128xbf16>, vector<2x128xf32> -> vector<2x128xf32>
    %c0_3 = arith.constant 0 : index
    %c0_4 = arith.constant 0 : index
    %4 = vector.load %arg2[%c0_3, %c0_4] : memref<1x128xf32, #tpu.memory_space<vmem>>, vector<1x128xf32>
    %5 = vector.broadcast %4 : vector<1x128xf32> to vector<2x128xf32>
    %6 = arith.addf %3, %5 : vector<2x128xf32>
    %cst_5 = arith.constant dense<0.000000e+00> : vector<128xf32>
    %7 = vector.multi_reduction <add>, %6, %cst_5 [0] : vector<2x128xf32> to vector<128xf32>
    %8 = vector.shape_cast %7 : vector<128xf32> to vector<1x128xf32>
    %cst_6 = arith.constant 2.000000e+00 : f32
    %9 = vector.broadcast %cst_6 : f32 to vector<1x128xf32>
    %10 = arith.divf %8, %9 : vector<1x128xf32>
    %11 = vector.broadcast %10 : vector<1x128xf32> to vector<2x128xf32>
    %12 = arith.subf %6, %11 : vector<2x128xf32>
    %13 = arith.mulf %12, %12 : vector<2x128xf32>
    %cst_7 = arith.constant dense<0.000000e+00> : vector<128xf32>
    %14 = vector.multi_reduction <add>, %13, %cst_7 [0] : vector<2x128xf32> to vector<128xf32>
    %15 = vector.shape_cast %14 : vector<128xf32> to vector<1x128xf32>
    %cst_8 = arith.constant 2.000000e+00 : f32
    %16 = vector.broadcast %cst_8 : f32 to vector<1x128xf32>
    %17 = arith.divf %15, %16 : vector<1x128xf32>
    %c0_9 = arith.constant 0 : index
    %c0_10 = arith.constant 0 : index
    %18 = vector.load %arg3[%c0_9, %c0_10] : memref<1x128xf32, #tpu.memory_space<vmem>>, vector<1x128xf32>
    %19 = vector.broadcast %10 : vector<1x128xf32> to vector<2x128xf32>
    %20 = arith.subf %6, %19 : vector<2x128xf32>
    %21 = vector.broadcast %18 : vector<1x128xf32> to vector<2x128xf32>
    %22 = arith.mulf %21, %20 : vector<2x128xf32>
    %cst_11 = arith.constant 9.99999974E-6 : f32
    %23 = vector.broadcast %cst_11 : f32 to vector<1x128xf32>
    %24 = arith.addf %17, %23 : vector<1x128xf32>
    %25 = math.rsqrt %24 : vector<1x128xf32>
    %26 = vector.broadcast %25 : vector<1x128xf32> to vector<2x128xf32>
    %27 = arith.mulf %22, %26 : vector<2x128xf32>
    %c0_12 = arith.constant 0 : index
    %c0_13 = arith.constant 0 : index
    %28 = vector.load %arg4[%c0_12, %c0_13] : memref<1x128xf32, #tpu.memory_space<vmem>>, vector<1x128xf32>
    %29 = vector.broadcast %28 : vector<1x128xf32> to vector<2x128xf32>
    %30 = arith.addf %27, %29 : vector<2x128xf32>
    %cst_14 = arith.constant 0.000000e+00 : f32
    %31 = vector.broadcast %cst_14 : f32 to vector<2x128xf32>
    %32 = arith.cmpf ogt, %30, %31 : vector<2x128xf32>
    %cst_15 = arith.constant 2.000000e-01 : f32
    %33 = vector.broadcast %cst_15 : f32 to vector<2x128xf32>
    %34 = arith.mulf %33, %30 : vector<2x128xf32>
    %35 = arith.select %32, %30, %34 : vector<2x128xi1>, vector<2x128xf32>
    %c0_16 = arith.constant 0 : index
    %c0_17 = arith.constant 0 : index
    %36 = vector.load %arg5[%c0_16, %c0_17] : memref<128x1xf32, #tpu.memory_space<vmem>>, vector<128x1xf32>
    %cst_18 = arith.constant dense<0.000000e+00> : vector<2x1xf32>
    %37 = tpu.matmul %35, %36, %cst_18 {dimension_numbers = #tpu.dot_dimension_numbers<[1], [0], [0], [1], [0, 0, 1, 1], [], []>} : vector<2x128xf32>, vector<128x1xf32>, vector<2x1xf32> -> vector<2x1xf32>
    %c0_19 = arith.constant 0 : index
    %c0_20 = arith.constant 0 : index
    %38 = vector.load %arg6[%c0_19, %c0_20] : memref<1x1xf32, #tpu.memory_space<vmem>>, vector<1x1xf32>
    %39 = vector.broadcast %38 : vector<1x1xf32> to vector<2x1xf32>
    %40 = arith.addf %37, %39 : vector<2x1xf32>
    %41 = math.tanh %40 : vector<2x1xf32>
    %c0_21 = arith.constant 0 : index
    %c0_22 = arith.constant 0 : index
    %42 = vector.load %arg7[%c0_21, %c0_22] : memref<2x1xf32, #tpu.memory_space<vmem>>, vector<2x1xf32>
    tpu.vector_store %arg7[%c0_21, %c0_22], %41 {strides = array<i32>} : memref<2x1xf32, #tpu.memory_space<vmem>>, vector<2x1xf32>,
    return
  }
}

module attributes {stable_mosaic.version = 11 : i64} {
  func.func @_fused_attn_mam_kernel(%arg0: i32, %arg1: memref<2xf32, #tpu.memory_space<smem>>, %arg2: memref<1x4x9xf32, #tpu.memory_space<vmem>>, %arg3: memref<1x4x9xf32, #tpu.memory_space<vmem>>, %arg4: memref<1x8x144xf32, #tpu.memory_space<vmem>>, %arg5: memref<1x8x36xf32, #tpu.memory_space<vmem>>, %arg6: memref<4x8xf32, #tpu.memory_space<vmem>>, %arg7: memref<4x8xf32, #tpu.memory_space<vmem>>, %arg8: memref<8x4xf32, #tpu.memory_space<vmem>>, %arg9: memref<8x1xf32, #tpu.memory_space<vmem>>, %arg10: memref<2x8xf32, #tpu.memory_space<vmem>>, %arg11: memref<8x2xf32, #tpu.memory_space<vmem>>, %arg12: memref<1x8x144xf32, #tpu.memory_space<vmem>>, %arg13: memref<1x8x36xf32, #tpu.memory_space<vmem>>) attributes {dimension_semantics = [#tpu.dimension_semantics<parallel>], iteration_bounds = array<i64: 2>, scalar_prefetch = 0 : i64, scratch_operands = 0 : i64, tpu.core_type = #tpu.core_type<tc>, window_params = [{transform_indices = @transform_0, window_bounds = array<i64: 2>}, {transform_indices = @transform_1, window_bounds = array<i64: 1, 4, 9>}, {transform_indices = @transform_2, window_bounds = array<i64: 1, 4, 9>}, {transform_indices = @transform_3, window_bounds = array<i64: 1, 8, 144>}, {transform_indices = @transform_4, window_bounds = array<i64: 1, 8, 36>}, {pipeline_mode = #tpu.pipeline_mode<synchronous>, transform_indices = @transform_5, window_bounds = array<i64: 4, 8>}, {pipeline_mode = #tpu.pipeline_mode<synchronous>, transform_indices = @transform_6, window_bounds = array<i64: 4, 8>}, {pipeline_mode = #tpu.pipeline_mode<synchronous>, transform_indices = @transform_7, window_bounds = array<i64: 8, 4>}, {pipeline_mode = #tpu.pipeline_mode<synchronous>, transform_indices = @transform_8, window_bounds = array<i64: 8, 1>}, {pipeline_mode = #tpu.pipeline_mode<synchronous>, transform_indices = @transform_9, window_bounds = array<i64: 2, 8>}, {pipeline_mode = #tpu.pipeline_mode<synchronous>, transform_indices = @transform_10, window_bounds = array<i64: 8, 2>}, {transform_indices = @transform_11, window_bounds = array<i64: 1, 8, 144>}, {transform_indices = @transform_12, window_bounds = array<i64: 1, 8, 36>}]} {
    %0 = arith.index_cast %arg0 : i32 to index
    %1 = memref.load %arg1[%0] : memref<2xf32, #tpu.memory_space<smem>>
    %c0 = arith.constant 0 : index
    %c0_0 = arith.constant 0 : index
    %c0_1 = arith.constant 0 : index
    %2 = vector.load %arg4[%c0, %c0_0, %c0_1] : memref<1x8x144xf32, #tpu.memory_space<vmem>>, vector<1x8x144xf32>
    %3 = vector.shape_cast %2 : vector<1x8x144xf32> to vector<8x144xf32>
    %c0_2 = arith.constant 0 : index
    %c0_3 = arith.constant 0 : index
    %c0_4 = arith.constant 0 : index
    %4 = vector.load %arg5[%c0_2, %c0_3, %c0_4] : memref<1x8x36xf32, #tpu.memory_space<vmem>>, vector<1x8x36xf32>
    %5 = vector.shape_cast %4 : vector<1x8x36xf32> to vector<8x36xf32>
    %c0_5 = arith.constant 0 : index
    %c0_6 = arith.constant 0 : index
    %c0_7 = arith.constant 0 : index
    %6 = vector.load %arg2[%c0_5, %c0_6, %c0_7] : memref<1x4x9xf32, #tpu.memory_space<vmem>>, vector<1x4x9xf32>
    %7 = vector.shape_cast %6 : vector<1x4x9xf32> to vector<4x9xf32>
    %c0_8 = arith.constant 0 : index
    %c0_9 = arith.constant 0 : index
    %c0_10 = arith.constant 0 : index
    %8 = vector.load %arg3[%c0_8, %c0_9, %c0_10] : memref<1x4x9xf32, #tpu.memory_space<vmem>>, vector<1x4x9xf32>
    %9 = vector.shape_cast %8 : vector<1x4x9xf32> to vector<4x9xf32>
    %cst = arith.constant dense<0.000000e+00> : vector<4x4xf32>
    %10 = tpu.matmul %7, %9, %cst {dimension_numbers = #tpu.dot_dimension_numbers<[1], [1], [0], [0], [0, 0, 1, 0], [], []>} : vector<4x9xf32>, vector<4x9xf32>, vector<4x4xf32> -> vector<4x4xf32>
    %cst_11 = arith.constant dense<0xFF800000> : vector<4xf32>
    %11 = vector.multi_reduction <maximumf>, %10, %cst_11 [1] : vector<4x4xf32> to vector<4xf32>
    %12 = vector.shape_cast %11 : vector<4xf32> to vector<4x1xf32>
    %13 = vector.broadcast %12 : vector<4x1xf32> to vector<4x4xf32>
    %14 = arith.subf %10, %13 : vector<4x4xf32>
    %15 = math.exp %14 : vector<4x4xf32>
    %cst_12 = arith.constant dense<0.000000e+00> : vector<4xf32>
    %16 = vector.multi_reduction <add>, %15, %cst_12 [1] : vector<4x4xf32> to vector<4xf32>
    %17 = vector.shape_cast %16 : vector<4xf32> to vector<4x1xf32>
    %18 = tpu.reciprocal %17 {approx = true} : vector<4x1xf32> -> vector<4x1xf32>
    %19 = vector.broadcast %18 : vector<4x1xf32> to vector<4x4xf32>
    %20 = arith.mulf %15, %19 : vector<4x4xf32>
    %c0_13 = arith.constant 0 : index
    %c0_14 = arith.constant 0 : index
    %21 = vector.load %arg8[%c0_13, %c0_14] : memref<8x4xf32, #tpu.memory_space<vmem>>, vector<8x4xf32>
    %c0_15 = arith.constant 0 : index
    %c0_16 = arith.constant 0 : index
    %22 = vector.load %arg6[%c0_15, %c0_16] : memref<4x8xf32, #tpu.memory_space<vmem>>, vector<4x8xf32>
    %cst_17 = arith.constant dense<0.000000e+00> : vector<4x8xf32>
    %23 = tpu.matmul %20, %22, %cst_17 {dimension_numbers = #tpu.dot_dimension_numbers<[1], [0], [0], [1], [0, 0, 1, 1], [], []>} : vector<4x4xf32>, vector<4x8xf32>, vector<4x8xf32> -> vector<4x8xf32>
    %cst_18 = arith.constant dense<0.000000e+00> : vector<8x8xf32>
    %24 = tpu.matmul %21, %23, %cst_18 {dimension_numbers = #tpu.dot_dimension_numbers<[1], [0], [0], [1], [0, 0, 1, 1], [], []>} : vector<8x4xf32>, vector<4x8xf32>, vector<8x8xf32> -> vector<8x8xf32>
    %c0_19 = arith.constant 0 : index
    %c0_20 = arith.constant 0 : index
    %25 = vector.load %arg8[%c0_19, %c0_20] : memref<8x4xf32, #tpu.memory_space<vmem>>, vector<8x4xf32>
    %c0_21 = arith.constant 0 : index
    %c0_22 = arith.constant 0 : index
    %26 = vector.load %arg7[%c0_21, %c0_22] : memref<4x8xf32, #tpu.memory_space<vmem>>, vector<4x8xf32>
    %cst_23 = arith.constant dense<0.000000e+00> : vector<4x8xf32>
    %27 = tpu.matmul %20, %26, %cst_23 {dimension_numbers = #tpu.dot_dimension_numbers<[1], [0], [0], [1], [0, 0, 1, 1], [], []>} : vector<4x4xf32>, vector<4x8xf32>, vector<4x8xf32> -> vector<4x8xf32>
    %cst_24 = arith.constant dense<0.000000e+00> : vector<8x8xf32>
    %28 = tpu.matmul %25, %27, %cst_24 {dimension_numbers = #tpu.dot_dimension_numbers<[1], [0], [0], [1], [0, 0, 1, 1], [], []>} : vector<8x4xf32>, vector<4x8xf32>, vector<8x8xf32> -> vector<8x8xf32>
    %c0_25 = arith.constant 0 : index
    %c0_26 = arith.constant 0 : index
    %29 = vector.load %arg9[%c0_25, %c0_26] : memref<8x1xf32, #tpu.memory_space<vmem>>, vector<8x1xf32>
    %30 = vector.broadcast %1 : f32 to vector<8x1xf32>
    %31 = arith.mulf %29, %30 : vector<8x1xf32>
    %cst_27 = arith.constant dense<0.000000e+00> : vector<8x144xf32>
    %32 = tpu.matmul %24, %3, %cst_27 {dimension_numbers = #tpu.dot_dimension_numbers<[1], [0], [0], [1], [0, 0, 1, 1], [], []>} : vector<8x8xf32>, vector<8x144xf32>, vector<8x144xf32> -> vector<8x144xf32>
    %33 = vector.broadcast %31 : vector<8x1xf32> to vector<8x144xf32>
    %34 = arith.addf %32, %33 : vector<8x144xf32>
    %35 = arith.negf %34 : vector<8x144xf32>
    %36 = math.exp %35 : vector<8x144xf32>
    %cst_28 = arith.constant 1.000000e+00 : f32
    %37 = vector.broadcast %cst_28 : f32 to vector<8x144xf32>
    %38 = arith.addf %37, %36 : vector<8x144xf32>
    %39 = arith.divf %37, %38 : vector<8x144xf32>
    %cst_29 = arith.constant dense<0.000000e+00> : vector<8x36xf32>
    %40 = tpu.matmul %28, %5, %cst_29 {dimension_numbers = #tpu.dot_dimension_numbers<[1], [0], [0], [1], [0, 0, 1, 1], [], []>} : vector<8x8xf32>, vector<8x36xf32>, vector<8x36xf32> -> vector<8x36xf32>
    %41 = vector.broadcast %31 : vector<8x1xf32> to vector<8x36xf32>
    %42 = arith.addf %40, %41 : vector<8x36xf32>
    %43 = arith.negf %42 : vector<8x36xf32>
    %44 = math.exp %43 : vector<8x36xf32>
    %cst_30 = arith.constant 1.000000e+00 : f32
    %45 = vector.broadcast %cst_30 : f32 to vector<8x36xf32>
    %46 = arith.addf %45, %44 : vector<8x36xf32>
    %47 = arith.divf %45, %46 : vector<8x36xf32>
    %cst_31 = arith.constant dense<0.000000e+00> : vector<8xf32>
    %48 = vector.multi_reduction <add>, %39, %cst_31 [1] : vector<8x144xf32> to vector<8xf32>
    %49 = vector.shape_cast %48 : vector<8xf32> to vector<8x1xf32>
    %cst_32 = arith.constant 1.440000e+02 : f32
    %50 = vector.broadcast %cst_32 : f32 to vector<8x1xf32>
    %51 = arith.divf %49, %50 : vector<8x1xf32>
    %cst_33 = arith.constant dense<0xFF800000> : vector<8xf32>
    %52 = vector.multi_reduction <maximumf>, %39, %cst_33 [1] : vector<8x144xf32> to vector<8xf32>
    %53 = vector.shape_cast %52 : vector<8xf32> to vector<8x1xf32>
    %cst_34 = arith.constant dense<0.000000e+00> : vector<8xf32>
    %54 = vector.multi_reduction <add>, %47, %cst_34 [1] : vector<8x36xf32> to vector<8xf32>
    %55 = vector.shape_cast %54 : vector<8xf32> to vector<8x1xf32>
    %cst_35 = arith.constant 3.600000e+01 : f32
    %56 = vector.broadcast %cst_35 : f32 to vector<8x1xf32>
    %57 = arith.divf %55, %56 : vector<8x1xf32>
    %cst_36 = arith.constant dense<0xFF800000> : vector<8xf32>
    %58 = vector.multi_reduction <maximumf>, %47, %cst_36 [1] : vector<8x36xf32> to vector<8xf32>
    %59 = vector.shape_cast %58 : vector<8xf32> to vector<8x1xf32>
    %60 = tpu.concatenate %51, %53, %57, %59 in 1 : vector<8x1xf32>, vector<8x1xf32>, vector<8x1xf32>, vector<8x1xf32> -> vector<8x4xf32>
    %c0_37 = arith.constant 0 : index
    %c0_38 = arith.constant 0 : index
    %61 = vector.load %arg10[%c0_37, %c0_38] : memref<2x8xf32, #tpu.memory_space<vmem>>, vector<2x8xf32>
    %cst_39 = arith.constant dense<0.000000e+00> : vector<2x4xf32>
    %62 = tpu.matmul %61, %60, %cst_39 {dimension_numbers = #tpu.dot_dimension_numbers<[1], [0], [0], [1], [0, 0, 1, 1], [], []>} : vector<2x8xf32>, vector<8x4xf32>, vector<2x4xf32> -> vector<2x4xf32>
    %cst_40 = arith.constant 0.000000e+00 : f32
    %63 = vector.broadcast %cst_40 : f32 to vector<2x4xf32>
    %64 = arith.maximumf %62, %63 : vector<2x4xf32>
    %c0_41 = arith.constant 0 : index
    %c0_42 = arith.constant 0 : index
    %65 = vector.load %arg11[%c0_41, %c0_42] : memref<8x2xf32, #tpu.memory_space<vmem>>, vector<8x2xf32>
    %cst_43 = arith.constant dense<0.000000e+00> : vector<8x4xf32>
    %66 = tpu.matmul %65, %64, %cst_43 {dimension_numbers = #tpu.dot_dimension_numbers<[1], [0], [0], [1], [0, 0, 1, 1], [], []>} : vector<8x2xf32>, vector<2x4xf32>, vector<8x4xf32> -> vector<8x4xf32>
    %67 = arith.negf %66 : vector<8x4xf32>
    %68 = math.exp %67 : vector<8x4xf32>
    %cst_44 = arith.constant 1.000000e+00 : f32
    %69 = vector.broadcast %cst_44 : f32 to vector<8x4xf32>
    %70 = arith.addf %69, %68 : vector<8x4xf32>
    %71 = arith.divf %69, %70 : vector<8x4xf32>
    %72 = vector.extract_strided_slice %71 {offsets = [0, 0], sizes = [8, 1], strides = [1, 1]} : vector<8x4xf32> to vector<8x1xf32>
    %73 = vector.extract_strided_slice %71 {offsets = [0, 1], sizes = [8, 1], strides = [1, 1]} : vector<8x4xf32> to vector<8x1xf32>
    %74 = arith.addf %72, %73 : vector<8x1xf32>
    %75 = vector.extract_strided_slice %71 {offsets = [0, 2], sizes = [8, 1], strides = [1, 1]} : vector<8x4xf32> to vector<8x1xf32>
    %76 = vector.extract_strided_slice %71 {offsets = [0, 3], sizes = [8, 1], strides = [1, 1]} : vector<8x4xf32> to vector<8x1xf32>
    %77 = arith.addf %75, %76 : vector<8x1xf32>
    %78 = arith.mulf %39, %39 : vector<8x144xf32>
    %cst_45 = arith.constant dense<0.000000e+00> : vector<8xf32>
    %79 = vector.multi_reduction <add>, %78, %cst_45 [1] : vector<8x144xf32> to vector<8xf32>
    %80 = vector.shape_cast %79 : vector<8xf32> to vector<8x1xf32>
    %cst_46 = arith.constant 1.440000e+02 : f32
    %81 = vector.broadcast %cst_46 : f32 to vector<8x1xf32>
    %82 = arith.divf %80, %81 : vector<8x1xf32>
    %83 = arith.mulf %51, %51 : vector<8x1xf32>
    %84 = arith.subf %82, %83 : vector<8x1xf32>
    %cst_47 = arith.constant 0.000000e+00 : f32
    %85 = vector.broadcast %cst_47 : f32 to vector<8x1xf32>
    %86 = arith.maximumf %84, %85 : vector<8x1xf32>
    %87 = arith.mulf %47, %47 : vector<8x36xf32>
    %cst_48 = arith.constant dense<0.000000e+00> : vector<8xf32>
    %88 = vector.multi_reduction <add>, %87, %cst_48 [1] : vector<8x36xf32> to vector<8xf32>
    %89 = vector.shape_cast %88 : vector<8xf32> to vector<8x1xf32>
    %cst_49 = arith.constant 3.600000e+01 : f32
    %90 = vector.broadcast %cst_49 : f32 to vector<8x1xf32>
    %91 = arith.divf %89, %90 : vector<8x1xf32>
    %92 = arith.mulf %57, %57 : vector<8x1xf32>
    %93 = arith.subf %91, %92 : vector<8x1xf32>
    %cst_50 = arith.constant 0.000000e+00 : f32
    %94 = vector.broadcast %cst_50 : f32 to vector<8x1xf32>
    %95 = arith.maximumf %93, %94 : vector<8x1xf32>
    %96 = vector.broadcast %51 : vector<8x1xf32> to vector<8x144xf32>
    %97 = arith.subf %39, %96 : vector<8x144xf32>
    %cst_51 = arith.constant 9.99999974E-6 : f32
    %98 = vector.broadcast %cst_51 : f32 to vector<8x1xf32>
    %99 = arith.addf %86, %98 : vector<8x1xf32>
    %100 = math.rsqrt %99 : vector<8x1xf32>
    %101 = vector.broadcast %100 : vector<8x1xf32> to vector<8x144xf32>
    %102 = arith.mulf %97, %101 : vector<8x144xf32>
    %103 = vector.broadcast %57 : vector<8x1xf32> to vector<8x36xf32>
    %104 = arith.subf %47, %103 : vector<8x36xf32>
    %cst_52 = arith.constant 9.99999974E-6 : f32
    %105 = vector.broadcast %cst_52 : f32 to vector<8x1xf32>
    %106 = arith.addf %95, %105 : vector<8x1xf32>
    %107 = math.rsqrt %106 : vector<8x1xf32>
    %108 = vector.broadcast %107 : vector<8x1xf32> to vector<8x36xf32>
    %109 = arith.mulf %104, %108 : vector<8x36xf32>
    %110 = vector.broadcast %74 : vector<8x1xf32> to vector<8x144xf32>
    %111 = arith.mulf %3, %110 : vector<8x144xf32>
    %cst_53 = arith.constant 1.000000e+00 : f32
    %112 = vector.broadcast %cst_53 : f32 to vector<8x1xf32>
    %113 = arith.subf %112, %74 : vector<8x1xf32>
    %114 = vector.broadcast %113 : vector<8x1xf32> to vector<8x144xf32>
    %115 = arith.mulf %102, %114 : vector<8x144xf32>
    %116 = arith.addf %111, %115 : vector<8x144xf32>
    %c0_54 = arith.constant 0 : index
    %c0_55 = arith.constant 0 : index
    %c0_56 = arith.constant 0 : index
    %117 = vector.load %arg12[%c0_54, %c0_55, %c0_56] : memref<1x8x144xf32, #tpu.memory_space<vmem>>, vector<1x8x144xf32>
    %118 = vector.shape_cast %117 : vector<1x8x144xf32> to vector<8x144xf32>
    %119 = vector.shape_cast %116 : vector<8x144xf32> to vector<1x8x144xf32>
    tpu.vector_store %arg12[%c0_54, %c0_55, %c0_56], %119 {strides = array<i32>} : memref<1x8x144xf32, #tpu.memory_space<vmem>>, vector<1x8x144xf32>,
    %120 = vector.broadcast %77 : vector<8x1xf32> to vector<8x36xf32>
    %121 = arith.mulf %5, %120 : vector<8x36xf32>
    %cst_57 = arith.constant 1.000000e+00 : f32
    %122 = vector.broadcast %cst_57 : f32 to vector<8x1xf32>
    %123 = arith.subf %122, %77 : vector<8x1xf32>
    %124 = vector.broadcast %123 : vector<8x1xf32> to vector<8x36xf32>
    %125 = arith.mulf %109, %124 : vector<8x36xf32>
    %126 = arith.addf %121, %125 : vector<8x36xf32>
    %c0_58 = arith.constant 0 : index
    %c0_59 = arith.constant 0 : index
    %c0_60 = arith.constant 0 : index
    %127 = vector.load %arg13[%c0_58, %c0_59, %c0_60] : memref<1x8x36xf32, #tpu.memory_space<vmem>>, vector<1x8x36xf32>
    %128 = vector.shape_cast %127 : vector<1x8x36xf32> to vector<8x36xf32>
    %129 = vector.shape_cast %126 : vector<8x36xf32> to vector<1x8x36xf32>
    tpu.vector_store %arg13[%c0_58, %c0_59, %c0_60], %129 {strides = array<i32>} : memref<1x8x36xf32, #tpu.memory_space<vmem>>, vector<1x8x36xf32>,
    return
  }
  func.func @transform_0(%arg0: i32) -> i32 {
    %c0_i32 = arith.constant 0 : i32
    %c0_i32_0 = arith.constant 0 : i32
    return %c0_i32 : i32
  }
  func.func @transform_1(%arg0: i32) -> (i32, i32, i32) {
    %c0_i32 = arith.constant 0 : i32
    %c0_i32_0 = arith.constant 0 : i32
    %c0_i32_1 = arith.constant 0 : i32
    return %arg0, %c0_i32, %c0_i32_0 : i32, i32, i32
  }
  func.func @transform_2(%arg0: i32) -> (i32, i32, i32) {
    %c0_i32 = arith.constant 0 : i32
    %c0_i32_0 = arith.constant 0 : i32
    %c0_i32_1 = arith.constant 0 : i32
    return %arg0, %c0_i32, %c0_i32_0 : i32, i32, i32
  }
  func.func @transform_3(%arg0: i32) -> (i32, i32, i32) {
    %c0_i32 = arith.constant 0 : i32
    %c0_i32_0 = arith.constant 0 : i32
    %c0_i32_1 = arith.constant 0 : i32
    return %arg0, %c0_i32, %c0_i32_0 : i32, i32, i32
  }
  func.func @transform_4(%arg0: i32) -> (i32, i32, i32) {
    %c0_i32 = arith.constant 0 : i32
    %c0_i32_0 = arith.constant 0 : i32
    %c0_i32_1 = arith.constant 0 : i32
    return %arg0, %c0_i32, %c0_i32_0 : i32, i32, i32
  }
  func.func @transform_5(%arg0: i32) -> (i32, i32) {
    %c0_i32 = arith.constant 0 : i32
    %c0_i32_0 = arith.constant 0 : i32
    %c0_i32_1 = arith.constant 0 : i32
    return %c0_i32, %c0_i32_0 : i32, i32
  }
  func.func @transform_6(%arg0: i32) -> (i32, i32) {
    %c0_i32 = arith.constant 0 : i32
    %c0_i32_0 = arith.constant 0 : i32
    %c0_i32_1 = arith.constant 0 : i32
    return %c0_i32, %c0_i32_0 : i32, i32
  }
  func.func @transform_7(%arg0: i32) -> (i32, i32) {
    %c0_i32 = arith.constant 0 : i32
    %c0_i32_0 = arith.constant 0 : i32
    %c0_i32_1 = arith.constant 0 : i32
    return %c0_i32, %c0_i32_0 : i32, i32
  }
  func.func @transform_8(%arg0: i32) -> (i32, i32) {
    %c0_i32 = arith.constant 0 : i32
    %c0_i32_0 = arith.constant 0 : i32
    %c0_i32_1 = arith.constant 0 : i32
    return %c0_i32, %c0_i32_0 : i32, i32
  }
  func.func @transform_9(%arg0: i32) -> (i32, i32) {
    %c0_i32 = arith.constant 0 : i32
    %c0_i32_0 = arith.constant 0 : i32
    %c0_i32_1 = arith.constant 0 : i32
    return %c0_i32, %c0_i32_0 : i32, i32
  }
  func.func @transform_10(%arg0: i32) -> (i32, i32) {
    %c0_i32 = arith.constant 0 : i32
    %c0_i32_0 = arith.constant 0 : i32
    %c0_i32_1 = arith.constant 0 : i32
    return %c0_i32, %c0_i32_0 : i32, i32
  }
  func.func @transform_11(%arg0: i32) -> (i32, i32, i32) {
    %c0_i32 = arith.constant 0 : i32
    %c0_i32_0 = arith.constant 0 : i32
    %c0_i32_1 = arith.constant 0 : i32
    return %arg0, %c0_i32, %c0_i32_0 : i32, i32, i32
  }
  func.func @transform_12(%arg0: i32) -> (i32, i32, i32) {
    %c0_i32 = arith.constant 0 : i32
    %c0_i32_0 = arith.constant 0 : i32
    %c0_i32_1 = arith.constant 0 : i32
    return %arg0, %c0_i32, %c0_i32_0 : i32, i32, i32
  }
}

</mosaic_0001>

<llo_original>
// kernel: reverse.3
$region0: #{reverse.3}
  %s0 = inlined_call_operand.vmem [shape: f32[2,9,2048], index: 0, kind: input, shape index: {}]
  %s1 = inlined_call_operand.vmem [shape: f32[2,9,2048], index: 1, kind: output, shape index: {}]
  %v2 = vlaneseq
  %v3 = vsub.s32 127, %v2
  %4 = vset.pattern.permute.xlu0 %v3
  $region1: #{reverse.3} parent=0
    #allocation0 [shape = 'u8[36864]{0}', space=vmem, size = 0x9000, scoped, tag = 'operand span for operand 0']
    #allocation1 [shape = 'u8[18432]{0}', space=vmem, size = 0x4800, scoped, tag = 'packed  for operand 0']
    #allocation2 [shape = 'u8[36864]{0}', space=vmem, size = 0x9000, scoped, tag = 'operand span for operand 1']
    #allocation3 [shape = 'u8[18432]{0}', space=vmem, size = 0x4800, scoped, tag = 'packed  for operand 1']
    loop: start=0, step=1, limit=18
    $region2: #{reverse.3} parent=1 // loop_pre_header
      _
    $region3: #{reverse.3} parent=1 // loop_header
      %s6 = sphi 0, %s10
      %p7 = scmp.ge.s32.totalorder %s6, 18
      %s13 = sphi 0, %s32
      %s14 = sphi 0, %s28
      %s15 = sphi 0, %s24
      %s16 = sphi 0, %s13
      %s17 = sphi 0, %s14
      %s18 = sphi 0, %s15
      %s19 = sphi 0, %s16
      %s20 = sphi 0, %s17
      %s21 = sphi 0, %s18
    $region4: #{reverse.3} parent=1 // loop_header_branch
      %9 = sbr.rel (%p7) target = $region8
    $region5: #{reverse.3} parent=1 // loop_body
      %s11 = ssub.s32 %s6, 1
      %s12 = ssub.s32 %s6, 2
      %s22 = sadd.s32 1, %s15
      %p23 = scmp.ge.s32.totalorder %s22, 16
      %s24 = scalar_select %p23, 0, %s22
      %s25 = sadd.s32 1, %s14
      %s26 = scalar_select %p23, %s25, %s14
      %p27 = scmp.ge.s32.totalorder %s26, 1
      %s28 = scalar_select %p27, 0, %s26
      %s29 = sadd.s32 1, %s13
      %s30 = scalar_select %p27, %s29, %s13
      %p31 = scmp.ge.s32.totalorder %s30, 1
      %s32 = scalar_select %p31, 0, %s30
      %p33 = scmp.le.s32.totalorder 1, %s6
      %p34 = scmp.lt.s32.totalorder %s6, 17
      %p35 = pnand %p33, %p34
      %p36 = pneg %p35
      // Predicated region
      $region9: #{reverse.3} parent=5 // pred_check
        _
      $region10: #{reverse.3} parent=5 // pred_check_branch
        %38 = sbr.rel (%p35) target = $region12
      $region11: #{reverse.3} parent=5 // pred_region
        %s39 = ssub.s32 %s6, 1
      $region12: #{reverse.3} parent=5 // pred_fallthru
        _
      %p40 = scmp.lt.s32.totalorder %s6, 16
      // Predicated region
      $region13: #{reverse.3} parent=5 // pred_check
        %p41 = pneg %p40
      $region14: #{reverse.3} parent=5 // pred_check_branch
        %43 = sbr.rel (%p41) target = $region16
      $region15: #{reverse.3} parent=5 // pred_region
        %s44 = sand.u32 %s6, 1
        %s45 = sand.u32 %s6, 1
        %s46 = smul.addr %s45, 18
        %s47 = scalar_lea.vmem [#allocation1], %s46
        %s48 = ssub.s32 15, %s15
        %s49 = smul.u32 9, %s13
        %s50 = smul.addr %s14, 16
        %s51 = sadd.s32 %s48, %s50
        %s52 = smul.addr %s49, 16
        %s53 = sadd.s32 %s51, %s52
        %s54 = smul.addr %s53, 2
        %s55 = scalar_lea.vmem %s0, %s54
        // Predicated region
        $region17: #{reverse.3} parent=15 // pred_check
          _
        $region18: #{reverse.3} parent=15 // pred_check_branch
          %57 = sbr.rel (0) target = $region20
        $region19: #{reverse.3} parent=15 // pred_region
          // Predicated region
          $region21: #{reverse.3} parent=19 // pred_check
            _
          $region22: #{reverse.3} parent=19 // pred_check_branch
            %59 = sbr.rel target = $region24
          $region23: #{reverse.3} parent=19 // pred_region
            // Predicated region
            $region36: #{reverse.3} parent=23 // pred_check
              _
            $region37: #{reverse.3} parent=23 // pred_check_branch
              %90 = sbr.rel (0) target = $region39
            $region38: #{reverse.3} parent=23 // pred_region
              loop: start=0, step=1, limit=1
              $region40: #{reverse.3} parent=38 // loop_pre_header
                _
              $region41: #{reverse.3} parent=38 // loop_header
                %s92 = sphi 0, %s96
                %p93 = scmp.ge.s32.totalorder %s92, 1
                %s97 = sphi %s55, %s55
                %s98 = sphi %s47, %s47
              $region42: #{reverse.3} parent=38 // loop_header_branch
                %95 = sbr.rel (%p93) target = $region46
              $region43: #{reverse.3} parent=38 // loop_body
                _
              $region44: #{reverse.3} parent=38 // loop_footer
                %s96 = sadd.s32 1, %s92
              $region45: #{reverse.3} parent=38 // loop_footer_branch
                %91 = sbr.rel target = $region41
              $region46: #{reverse.3} parent=38 // loop_exit
                _
              loop: start=0, step=1, limit=1
              $region47: #{reverse.3} parent=38 // loop_pre_header
                _
              $region48: #{reverse.3} parent=38 // loop_header
                %s101 = sphi 0, %s105
                %p102 = scmp.ge.s32.totalorder %s101, 1
                %s106 = sphi %s55, %s55
                %s107 = sphi %s47, %s47
              $region49: #{reverse.3} parent=38 // loop_header_branch
                %104 = sbr.rel (%p102) target = $region53
              $region50: #{reverse.3} parent=38 // loop_body
                %v108 = vld [vmem:[%s106] sm:$0x3]
                %109 = vst [vmem:[%s107] sm:$0x3] %v108
                %v110 = vld [vmem:[%s106 + $0x20] sm:$0x3]
                %111 = vst [vmem:[%s107 + $0x2] sm:$0x3] %v110
                %v112 = vld [vmem:[%s106 + $0x40] sm:$0x3]
                %113 = vst [vmem:[%s107 + $0x4] sm:$0x3] %v112
                %v114 = vld [vmem:[%s106 + $0x60] sm:$0x3]
                %115 = vst [vmem:[%s107 + $0x6] sm:$0x3] %v114
                %v116 = vld [vmem:[%s106 + $0x80] sm:$0x3]
                %117 = vst [vmem:[%s107 + $0x8] sm:$0x3] %v116
                %v118 = vld [vmem:[%s106 + $0xa0] sm:$0x3]
                %119 = vst [vmem:[%s107 + $0xa] sm:$0x3] %v118
                %v120 = vld [vmem:[%s106 + $0xc0] sm:$0x3]
                %121 = vst [vmem:[%s107 + $0xc] sm:$0x3] %v120
                %v122 = vld [vmem:[%s106 + $0xe0] sm:$0x3]
                %123 = vst [vmem:[%s107 + $0xe] sm:$0x3] %v122
                %v124 = vld [vmem:[%s106 + $0x100] sm:$0x3]
                %125 = vst [vmem:[%s107 + $0x10] sm:$0x3] %v124
              $region51: #{reverse.3} parent=38 // loop_footer
                %s105 = sadd.s32 1, %s101
              $region52: #{reverse.3} parent=38 // loop_footer_branch
                %100 = sbr.rel target = $region48
              $region53: #{reverse.3} parent=38 // loop_exit
                _
            $region39: #{reverse.3} parent=23 // pred_fallthru
              _
          $region24: #{reverse.3} parent=19 // pred_fallthru
            _
          // Predicated region
          $region25: #{reverse.3} parent=19 // pred_check
            _
          $region26: #{reverse.3} parent=19 // pred_check_branch
            %61 = sbr.rel (0) target = $region28
          $region27: #{reverse.3} parent=19 // pred_region
            loop: start=0, step=1, limit=1
            $region29: #{reverse.3} parent=27 // loop_pre_header
              _
            $region30: #{reverse.3} parent=27 // loop_header
              %s64 = sphi 0, %s68
              %p65 = scmp.ge.s32.totalorder %s64, 1
              %s69 = sphi %s55, %s55
              %s70 = sphi %s47, %s47
            $region31: #{reverse.3} parent=27 // loop_header_branch
              %67 = sbr.rel (%p65) target = $region35
            $region32: #{reverse.3} parent=27 // loop_body
              %v71 = vld [vmem:[%s69] sm:$0x3]
              %72 = vst [vmem:[%s70] sm:$0x3] %v71
              %v73 = vld [vmem:[%s69 + $0x20] sm:$0x3]
              %74 = vst [vmem:[%s70 + $0x2] sm:$0x3] %v73
              %v75 = vld [vmem:[%s69 + $0x40] sm:$0x3]
              %76 = vst [vmem:[%s70 + $0x4] sm:$0x3] %v75
              %v77 = vld [vmem:[%s69 + $0x60] sm:$0x3]
              %78 = vst [vmem:[%s70 + $0x6] sm:$0x3] %v77
              %v79 = vld [vmem:[%s69 + $0x80] sm:$0x3]
              %80 = vst [vmem:[%s70 + $0x8] sm:$0x3] %v79
              %v81 = vld [vmem:[%s69 + $0xa0] sm:$0x3]
              %82 = vst [vmem:[%s70 + $0xa] sm:$0x3] %v81
              %v83 = vld [vmem:[%s69 + $0xc0] sm:$0x3]
              %84 = vst [vmem:[%s70 + $0xc] sm:$0x3] %v83
              %v85 = vld [vmem:[%s69 + $0xe0] sm:$0x3]
              %86 = vst [vmem:[%s70 + $0xe] sm:$0x3] %v85
              %v87 = vld [vmem:[%s69 + $0x100] sm:$0x3]
              %88 = vst [vmem:[%s70 + $0x10] sm:$0x3] %v87
            $region33: #{reverse.3} parent=27 // loop_footer
              %s68 = sadd.s32 1, %s64
            $region34: #{reverse.3} parent=27 // loop_footer_branch
              %63 = sbr.rel target = $region30
            $region35: #{reverse.3} parent=27 // loop_exit
              _
          $region28: #{reverse.3} parent=19 // pred_fallthru
            _
        $region20: #{reverse.3} parent=15 // pred_fallthru
          _
        %126 = vnop
      $region16: #{reverse.3} parent=5 // pred_fallthru
        _
      %p127 = scmp.le.s32.totalorder 1, %s6
      %p128 = scmp.lt.s32.totalorder %s6, 17
      %p129 = pnand %p127, %p128
      %p130 = pneg %p129
      // Predicated region
      $region54: #{reverse.3} parent=5 // pred_check
        _
      $region55: #{reverse.3} parent=5 // pred_check_branch
        %132 = sbr.rel (%p129) target = $region57
      $region56: #{reverse.3} parent=5 // pred_region
        %s133 = ssub.s32 %s6, 1
        %s134 = sand.u32 %s11, 1
        %s135 = sand.u32 %s11, 1
        %s136 = smul.addr %s135, 18
        %s137 = scalar_lea.vmem [#allocation1], %s136
        %s138 = sand.u32 %s11, 1
        %s139 = sand.u32 %s11, 1
        %s140 = smul.addr %s139, 18
        %s141 = scalar_lea.vmem [#allocation1], %s140
        %s142 = sand.u32 %s11, 1
        %s143 = sand.u32 %s11, 1
        %s144 = smul.addr %s143, 18
        %s145 = scalar_lea.vmem [#allocation3], %s144
        %s147 = sshllo.u32 0, 2
        %s148 = smul.addr 2, 8
        %s149 = scalar_lea.vmem %s141, %s148 [#allocation1]
        %v150 = vld [vmem:[%s149] sm:%s147]
        %s151 = scalar_lea.vmem [#allocation0], 64
        %152 = vst [vmem:[%s151] sm:%s147] %v150
        %s153 = smul.addr 2, 7
        %s154 = scalar_lea.vmem %s141, %s153 [#allocation1]
        %v155 = vld [vmem:[%s154] sm:%s147]
        %s156 = scalar_lea.vmem [#allocation0], 56
        %157 = vst [vmem:[%s156] sm:%s147] %v155
        %s158 = smul.addr 2, 6
        %s159 = scalar_lea.vmem %s141, %s158 [#allocation1]
        %v160 = vld [vmem:[%s159] sm:%s147]
        %s161 = scalar_lea.vmem [#allocation0], 48
        %162 = vst [vmem:[%s161] sm:%s147] %v160
        %s163 = smul.addr 2, 5
        %s164 = scalar_lea.vmem %s141, %s163 [#allocation1]
        %v165 = vld [vmem:[%s164] sm:%s147]
        %s166 = scalar_lea.vmem [#allocation0], 40
        %167 = vst [vmem:[%s166] sm:%s147] %v165
        %s168 = smul.addr 2, 4
        %s169 = scalar_lea.vmem %s141, %s168 [#allocation1]
        %v170 = vld [vmem:[%s169] sm:%s147]
        %s171 = scalar_lea.vmem [#allocation0], 32
        %172 = vst [vmem:[%s171] sm:%s147] %v170
        %s173 = smul.addr 2, 3
        %s174 = scalar_lea.vmem %s141, %s173 [#allocation1]
        %v175 = vld [vmem:[%s174] sm:%s147]
        %s176 = scalar_lea.vmem [#allocation0], 24
        %177 = vst [vmem:[%s176] sm:%s147] %v175
        %s178 = smul.addr 2, 2
        %s179 = scalar_lea.vmem %s141, %s178 [#allocation1]
        %v180 = vld [vmem:[%s179] sm:%s147]
        %s181 = scalar_lea.vmem [#allocation0], 16
        %182 = vst [vmem:[%s181] sm:%s147] %v180
        %s183 = scalar_lea.vmem %s141, 2 [#allocation1]
        %v184 = vld [vmem:[%s183] sm:%s147]
        %s185 = scalar_lea.vmem [#allocation0], 8
        %186 = vst [vmem:[%s185] sm:%s147] %v184
        %v187 = vld [vmem:[%s141] sm:%s147]
        %188 = vst [vmem:[#allocation0] sm:%s147] %v187
        %s189 = ssub.s32 15, %s18
        %s190 = smul.u32 9, %s16
        %s191 = smul.u32 9, %s16
        %v192 = vld [vmem:[#allocation0] sm:$0xff]
        %193 = vperm.xlu0 %4, %v192
        %v194 = vpop.permute.xlu0 %193
        %195 = vst [vmem:[#allocation2] sm:$0xff] %v194
        %s196 = scalar_lea.vmem [#allocation2], 8
        %s197 = scalar_lea.vmem [#allocation0], 8
        %v198 = vld [vmem:[%s197] sm:$0xff]
        %199 = vperm.xlu0 %4, %v198
        %v200 = vpop.permute.xlu0 %199
        %201 = vst [vmem:[%s196] sm:$0xff] %v200
        %s202 = scalar_lea.vmem [#allocation2], 16
        %s203 = scalar_lea.vmem [#allocation0], 16
        %v204 = vld [vmem:[%s203] sm:$0xff]
        %205 = vperm.xlu0 %4, %v204
        %v206 = vpop.permute.xlu0 %205
        %207 = vst [vmem:[%s202] sm:$0xff] %v206
        %s208 = scalar_lea.vmem [#allocation2], 24
        %s209 = scalar_lea.vmem [#allocation0], 24
        %v210 = vld [vmem:[%s209] sm:$0xff]
        %211 = vperm.xlu0 %4, %v210
        %v212 = vpop.permute.xlu0 %211
        %213 = vst [vmem:[%s208] sm:$0xff] %v212
        %s214 = scalar_lea.vmem [#allocation2], 32
        %s215 = scalar_lea.vmem [#allocation0], 32
        %v216 = vld [vmem:[%s215] sm:$0xff]
        %217 = vperm.xlu0 %4, %v216
        %v218 = vpop.permute.xlu0 %217
        %219 = vst [vmem:[%s214] sm:$0xff] %v218
        %s220 = scalar_lea.vmem [#allocation2], 40
        %s221 = scalar_lea.vmem [#allocation0], 40
        %v222 = vld [vmem:[%s221] sm:$0xff]
        %223 = vperm.xlu0 %4, %v222
        %v224 = vpop.permute.xlu0 %223
        %225 = vst [vmem:[%s220] sm:$0xff] %v224
        %s226 = scalar_lea.vmem [#allocation2], 48
        %s227 = scalar_lea.vmem [#allocation0], 48
        %v228 = vld [vmem:[%s227] sm:$0xff]
        %229 = vperm.xlu0 %4, %v228
        %v230 = vpop.permute.xlu0 %229
        %231 = vst [vmem:[%s226] sm:$0xff] %v230
        %s232 = scalar_lea.vmem [#allocation2], 56
        %s233 = scalar_lea.vmem [#allocation0], 56
        %v234 = vld [vmem:[%s233] sm:$0xff]
        %235 = vperm.xlu0 %4, %v234
        %v236 = vpop.permute.xlu0 %235
        %237 = vst [vmem:[%s232] sm:$0xff] %v236
        %s238 = scalar_lea.vmem [#allocation2], 64
        %s239 = scalar_lea.vmem [#allocation0], 64
        %v240 = vld [vmem:[%s239] sm:$0xff]
        %241 = vperm.xlu0 %4, %v240
        %v242 = vpop.permute.xlu0 %241
        %243 = vst [vmem:[%s238] sm:$0xff] %v242
        %s245 = sshllo.u32 0, 2
        %v247 = vld [vmem:[#allocation2] sm:%s245]
        %s248 = sshllo.u32 0, 2
        %249 = vst [vmem:[%s145] sm:%s248] %v247
        %s250 = scalar_lea.vmem [#allocation2], 8
        %v251 = vld [vmem:[%s250] sm:%s245]
        %s252 = sshllo.u32 0, 2
        %s253 = scalar_lea.vmem %s145, 2 [#allocation3]
        %254 = vst [vmem:[%s253] sm:%s252] %v251
        %s255 = scalar_lea.vmem [#allocation2], 16
        %v256 = vld [vmem:[%s255] sm:%s245]
        %s257 = sshllo.u32 0, 2
        %s258 = smul.addr 2, 2
        %s259 = scalar_lea.vmem %s145, %s258 [#allocation3]
        %260 = vst [vmem:[%s259] sm:%s257] %v256
        %s261 = scalar_lea.vmem [#allocation2], 24
        %v262 = vld [vmem:[%s261] sm:%s245]
        %s263 = sshllo.u32 0, 2
        %s264 = smul.addr 2, 3
        %s265 = scalar_lea.vmem %s145, %s264 [#allocation3]
        %266 = vst [vmem:[%s265] sm:%s263] %v262
        %s267 = scalar_lea.vmem [#allocation2], 32
        %v268 = vld [vmem:[%s267] sm:%s245]
        %s269 = sshllo.u32 0, 2
        %s270 = smul.addr 2, 4
        %s271 = scalar_lea.vmem %s145, %s270 [#allocation3]
        %272 = vst [vmem:[%s271] sm:%s269] %v268
        %s273 = scalar_lea.vmem [#allocation2], 40
        %v274 = vld [vmem:[%s273] sm:%s245]
        %s275 = sshllo.u32 0, 2
        %s276 = smul.addr 2, 5
        %s277 = scalar_lea.vmem %s145, %s276 [#allocation3]
        %278 = vst [vmem:[%s277] sm:%s275] %v274
        %s279 = scalar_lea.vmem [#allocation2], 48
        %v280 = vld [vmem:[%s279] sm:%s245]
        %s281 = sshllo.u32 0, 2
        %s282 = smul.addr 2, 6
        %s283 = scalar_lea.vmem %s145, %s282 [#allocation3]
        %284 = vst [vmem:[%s283] sm:%s281] %v280
        %s285 = scalar_lea.vmem [#allocation2], 56
        %v286 = vld [vmem:[%s285] sm:%s245]
        %s287 = sshllo.u32 0, 2
        %s288 = smul.addr 2, 7
        %s289 = scalar_lea.vmem %s145, %s288 [#allocation3]
        %290 = vst [vmem:[%s289] sm:%s287] %v286
        %s291 = scalar_lea.vmem [#allocation2], 64
        %v292 = vld [vmem:[%s291] sm:%s245]
        %s293 = sshllo.u32 0, 2
        %s294 = smul.addr 2, 8
        %s295 = scalar_lea.vmem %s145, %s294 [#allocation3]
        %296 = vst [vmem:[%s295] sm:%s293] %v292
        %s297 = sand.u32 %s11, 1
        %s298 = sand.u32 %s11, 1
        %s299 = smul.addr %s298, 18
        %s300 = scalar_lea.vmem [#allocation3], %s299
        %s301 = smul.u32 9, %s16
        %s302 = smul.addr %s17, 16
        %s303 = sadd.s32 %s18, %s302
        %s304 = smul.addr %s301, 16
        %s305 = sadd.s32 %s303, %s304
        %s306 = smul.addr %s305, 2
        %s307 = scalar_lea.vmem %s1, %s306
        // Predicated region
        $region58: #{reverse.3} parent=56 // pred_check
          _
        $region59: #{reverse.3} parent=56 // pred_check_branch
          %309 = sbr.rel (0) target = $region61
        $region60: #{reverse.3} parent=56 // pred_region
          // Predicated region
          $region62: #{reverse.3} parent=60 // pred_check
            _
          $region63: #{reverse.3} parent=60 // pred_check_branch
            %311 = sbr.rel target = $region65
          $region64: #{reverse.3} parent=60 // pred_region
            // Predicated region
            $region77: #{reverse.3} parent=64 // pred_check
              _
            $region78: #{reverse.3} parent=64 // pred_check_branch
              %342 = sbr.rel (0) target = $region80
            $region79: #{reverse.3} parent=64 // pred_region
              loop: start=0, step=1, limit=1
              $region81: #{reverse.3} parent=79 // loop_pre_header
                _
              $region82: #{reverse.3} parent=79 // loop_header
                %s344 = sphi 0, %s348
                %p345 = scmp.ge.s32.totalorder %s344, 1
                %s349 = sphi %s300, %s300
                %s350 = sphi %s307, %s307
              $region83: #{reverse.3} parent=79 // loop_header_branch
                %347 = sbr.rel (%p345) target = $region87
              $region84: #{reverse.3} parent=79 // loop_body
                _
              $region85: #{reverse.3} parent=79 // loop_footer
                %s348 = sadd.s32 1, %s344
              $region86: #{reverse.3} parent=79 // loop_footer_branch
                %343 = sbr.rel target = $region82
              $region87: #{reverse.3} parent=79 // loop_exit
                _
              loop: start=0, step=1, limit=1
              $region88: #{reverse.3} parent=79 // loop_pre_header
                _
              $region89: #{reverse.3} parent=79 // loop_header
                %s353 = sphi 0, %s357
                %p354 = scmp.ge.s32.totalorder %s353, 1
                %s358 = sphi %s300, %s300
                %s359 = sphi %s307, %s307
              $region90: #{reverse.3} parent=79 // loop_header_branch
                %356 = sbr.rel (%p354) target = $region94
              $region91: #{reverse.3} parent=79 // loop_body
                %v360 = vld [vmem:[%s358] sm:$0x3]
                %361 = vst [vmem:[%s359] sm:$0x3] %v360
                %v362 = vld [vmem:[%s358 + $0x2] sm:$0x3]
                %363 = vst [vmem:[%s359 + $0x20] sm:$0x3] %v362
                %v364 = vld [vmem:[%s358 + $0x4] sm:$0x3]
                %365 = vst [vmem:[%s359 + $0x40] sm:$0x3] %v364
                %v366 = vld [vmem:[%s358 + $0x6] sm:$0x3]
                %367 = vst [vmem:[%s359 + $0x60] sm:$0x3] %v366
                %v368 = vld [vmem:[%s358 + $0x8] sm:$0x3]
                %369 = vst [vmem:[%s359 + $0x80] sm:$0x3] %v368
                %v370 = vld [vmem:[%s358 + $0xa] sm:$0x3]
                %371 = vst [vmem:[%s359 + $0xa0] sm:$0x3] %v370
                %v372 = vld [vmem:[%s358 + $0xc] sm:$0x3]
                %373 = vst [vmem:[%s359 + $0xc0] sm:$0x3] %v372
                %v374 = vld [vmem:[%s358 + $0xe] sm:$0x3]
                %375 = vst [vmem:[%s359 + $0xe0] sm:$0x3] %v374
                %v376 = vld [vmem:[%s358 + $0x10] sm:$0x3]
                %377 = vst [vmem:[%s359 + $0x100] sm:$0x3] %v376
              $region92: #{reverse.3} parent=79 // loop_footer
                %s357 = sadd.s32 1, %s353
              $region93: #{reverse.3} parent=79 // loop_footer_branch
                %352 = sbr.rel target = $region89
              $region94: #{reverse.3} parent=79 // loop_exit
                _
            $region80: #{reverse.3} parent=64 // pred_fallthru
              _
          $region65: #{reverse.3} parent=60 // pred_fallthru
            _
          // Predicated region
          $region66: #{reverse.3} parent=60 // pred_check
            _
          $region67: #{reverse.3} parent=60 // pred_check_branch
            %313 = sbr.rel (0) target = $region69
          $region68: #{reverse.3} parent=60 // pred_region
            loop: start=0, step=1, limit=1
            $region70: #{reverse.3} parent=68 // loop_pre_header
              _
            $region71: #{reverse.3} parent=68 // loop_header
              %s316 = sphi 0, %s320
              %p317 = scmp.ge.s32.totalorder %s316, 1
              %s321 = sphi %s300, %s300
              %s322 = sphi %s307, %s307
            $region72: #{reverse.3} parent=68 // loop_header_branch
              %319 = sbr.rel (%p317) target = $region76
            $region73: #{reverse.3} parent=68 // loop_body
              %v323 = vld [vmem:[%s321] sm:$0x3]
              %324 = vst [vmem:[%s322] sm:$0x3] %v323
              %v325 = vld [vmem:[%s321 + $0x2] sm:$0x3]
              %326 = vst [vmem:[%s322 + $0x20] sm:$0x3] %v325
              %v327 = vld [vmem:[%s321 + $0x4] sm:$0x3]
              %328 = vst [vmem:[%s322 + $0x40] sm:$0x3] %v327
              %v329 = vld [vmem:[%s321 + $0x6] sm:$0x3]
              %330 = vst [vmem:[%s322 + $0x60] sm:$0x3] %v329
              %v331 = vld [vmem:[%s321 + $0x8] sm:$0x3]
              %332 = vst [vmem:[%s322 + $0x80] sm:$0x3] %v331
              %v333 = vld [vmem:[%s321 + $0xa] sm:$0x3]
              %334 = vst [vmem:[%s322 + $0xa0] sm:$0x3] %v333
              %v335 = vld [vmem:[%s321 + $0xc] sm:$0x3]
              %336 = vst [vmem:[%s322 + $0xc0] sm:$0x3] %v335
              %v337 = vld [vmem:[%s321 + $0xe] sm:$0x3]
              %338 = vst [vmem:[%s322 + $0xe0] sm:$0x3] %v337
              %v339 = vld [vmem:[%s321 + $0x10] sm:$0x3]
              %340 = vst [vmem:[%s322 + $0x100] sm:$0x3] %v339
            $region74: #{reverse.3} parent=68 // loop_footer
              %s320 = sadd.s32 1, %s316
            $region75: #{reverse.3} parent=68 // loop_footer_branch
              %315 = sbr.rel target = $region71
            $region76: #{reverse.3} parent=68 // loop_exit
              _
          $region69: #{reverse.3} parent=60 // pred_fallthru
            _
        $region61: #{reverse.3} parent=56 // pred_fallthru
          _
        %378 = vnop
      $region57: #{reverse.3} parent=5 // pred_fallthru
        _
      %p379 = scmp.le.s32.totalorder 2, %s6
      // Predicated region
      $region95: #{reverse.3} parent=5 // pred_check
        %p380 = pneg %p379
      $region96: #{reverse.3} parent=5 // pred_check_branch
        %382 = sbr.rel (%p380) target = $region98
      $region97: #{reverse.3} parent=5 // pred_region
        %s383 = ssub.s32 %s6, 2
        %s384 = sand.u32 %s12, 1
        %s385 = sand.u32 %s12, 1
        %s386 = smul.addr %s385, 18
        %s387 = scalar_lea.vmem [#allocation3], %s386
      $region98: #{reverse.3} parent=5 // pred_fallthru
        _
    $region6: #{reverse.3} parent=1 // loop_footer
      %s10 = sadd.s32 1, %s6
    $region7: #{reverse.3} parent=1 // loop_footer_branch
      %5 = sbr.rel target = $region3
    $region8: #{reverse.3} parent=1 // loop_exit
      _

// kernel: context_block_forward.3
$region0: #{context_block_forward.3}
  #allocation0 [shape = 'u32[]', space=smem, size = 0x4, offset = 0x4, fixed_abs, tag = 'smem constant byte address 0x4 - core index']
  #allocation1 [shape = 'u32[144,128]{1,0:T(1,128)}', space=vmem, size = 0x12000, scoped, tag = 'internal scratch']
  %s0 = inlined_call_operand.vmem [shape: f32[2], index: 0, kind: input, shape index: {}]
  %s1 = inlined_call_operand.vmem [shape: f32[2,4,9], index: 1, kind: input, shape index: {}]
  %s2 = inlined_call_operand.vmem [shape: f32[2,4,9], index: 2, kind: input, shape index: {}]
  %s3 = inlined_call_operand.vmem [shape: f32[2,8,144], index: 3, kind: input, shape index: {}]
  %s4 = inlined_call_operand.vmem [shape: f32[2,8,36], index: 4, kind: input, shape index: {}]
  %s5 = inlined_call_operand.vmem [shape: f32[4,8], index: 5, kind: input, shape index: {}]
  %s6 = inlined_call_operand.vmem [shape: f32[4,8], index: 6, kind: input, shape index: {}]
  %s7 = inlined_call_operand.vmem [shape: f32[8,4], index: 7, kind: input, shape index: {}]
  %s8 = inlined_call_operand.vmem [shape: f32[8,1], index: 8, kind: input, shape index: {}]
  %s9 = inlined_call_operand.vmem [shape: f32[2,8], index: 9, kind: input, shape index: {}]
  %s10 = inlined_call_operand.vmem [shape: f32[8,2], index: 10, kind: input, shape index: {}]
  %s11 = inlined_call_operand.vmem [shape: f32[2,8,144], index: 11, kind: output, shape index: {0}]
  %s12 = inlined_call_operand.vmem [shape: f32[2,8,36], index: 12, kind: output, shape index: {1}]
  %13 = xla_tuple %s11, %s12
  %s14 = sld [smem:[#allocation0]]
  $region89: #{context_block_forward.3} parent=0
    _
  %s16 = ssub.s32 1, %s14
  %s17 = scalar_select 0, %s16, %s14
  $region1: #{context_block_forward.3} parent=0
    #allocation2 [shape = 'u8[512]{0}', space=smem, size = 0x200, scoped, tag = 'input window, operand 0, single buffered']
    #allocation3 [shape = 's32[2]{0}', space=sflag, size = 0x8, scoped, tag = 'scoped memory for context_block_forward.3']
    %18 = vsyncpa [#allocation3], 0
    loop: start=0, step=1, limit=4
    $region2: #{context_block_forward.3} parent=1 // loop_pre_header
      _
    $region3: #{context_block_forward.3} parent=1 // loop_header
      %s20 = sphi 0, %s24
      %p21 = scmp.ge.s32.totalorder %s20, 4
      %s28 = sphi 0, %s28
      %s30 = sphi 0, %s28
      %s31 = sphi 0, %s30
      %s45 = sphi 0, %s31
      %s51 = sphi 0, %s53
      %s54 = sphi 0, %s51
      %s55 = sphi 0, %s54
      %s71 = sphi 0, %s55
      %s77 = sphi 0, %s79
      %s80 = sphi 0, %s77
      %s81 = sphi 0, %s80
      %s97 = sphi 0, %s81
      %s103 = sphi 0, %s105
      %s106 = sphi 0, %s103
      %s107 = sphi 0, %s106
      %s123 = sphi 0, %s107
      %s129 = sphi 0, %s131
      %s132 = sphi 0, %s129
      %s133 = sphi 0, %s132
      %s149 = sphi 0, %s133
      %s153 = sphi 0, %s153
      %s155 = sphi 0, %s153
      %s156 = sphi 0, %s155
      %s170 = sphi 0, %s156
      %s174 = sphi 0, %s174
      %s176 = sphi 0, %s174
      %s177 = sphi 0, %s176
      %s191 = sphi 0, %s177
      %s195 = sphi 0, %s195
      %s197 = sphi 0, %s195
      %s198 = sphi 0, %s197
      %s212 = sphi 0, %s198
      %s216 = sphi 0, %s216
      %s218 = sphi 0, %s216
      %s219 = sphi 0, %s218
      %s233 = sphi 0, %s219
      %s237 = sphi 0, %s237
      %s239 = sphi 0, %s237
      %s240 = sphi 0, %s239
      %s254 = sphi 0, %s240
      %s258 = sphi 0, %s258
      %s260 = sphi 0, %s258
      %s261 = sphi 0, %s260
      %s275 = sphi 0, %s261
      %s281 = sphi 0, %s283
      %s284 = sphi 0, %s281
      %s285 = sphi 0, %s284
      %s301 = sphi 0, %s285
      %s307 = sphi 0, %s309
      %s310 = sphi 0, %s307
      %s311 = sphi 0, %s310
      %s327 = sphi 0, %s311
    $region4: #{context_block_forward.3} parent=1 // loop_header_branch
      %23 = sbr.rel (%p21) target = $region8
    $region5: #{context_block_forward.3} parent=1 // loop_body
      %s25 = ssub.s32 %s20, 1
      %s26 = ssub.s32 %s20, 2
      %s27 = sadd.s32 %s20, 1
      %s29 = sadd.s32 %s28, 1
      %p32 = scmp.eq.s32.totalorder %s20, 1
      %p33 = scmp.ne.s32.totalorder %s28, %s30
      %p34 = scmp.eq.s32.totalorder %s20, 0
      %p35 = por %p33, %p34
      %p36 = scmp.ne.s32.totalorder %s28, %s30
      %p37 = scmp.eq.s32.totalorder %s25, 1
      %p38 = por %p36, %p37
      %p39 = scmp.ne.s32.totalorder %s30, %s31
      %p40 = scmp.eq.s32.totalorder %s25, 0
      %p41 = por %p39, %p40
      %p42 = scmp.ne.s32.totalorder %s30, %s31
      %p43 = scmp.eq.s32.totalorder %s26, 1
      %p44 = por %p42, %p43
      %p46 = scmp.ne.s32.totalorder %s31, %s45
      %p47 = scmp.eq.s32.totalorder %s26, 0
      %p48 = por %p46, %p47
      %s49 = ssub.s32 %s20, %s27
      %p50 = scmp.eq.s32.totalorder %s49, 0
      %s52 = sadd.s32 %s51, 1
      %s53 = scalar_select %p50, %s51, %s52
      %p56 = pneg %p50
      %p57 = scmp.eq.s32.totalorder %s20, 1
      %p58 = por %p56, %p57
      %p59 = scmp.ne.s32.totalorder %s51, %s54
      %p60 = scmp.eq.s32.totalorder %s20, 0
      %p61 = por %p59, %p60
      %p62 = scmp.ne.s32.totalorder %s51, %s54
      %p63 = scmp.eq.s32.totalorder %s25, 1
      %p64 = por %p62, %p63
      %p65 = scmp.ne.s32.totalorder %s54, %s55
      %p66 = scmp.eq.s32.totalorder %s25, 0
      %p67 = por %p65, %p66
      %p68 = scmp.ne.s32.totalorder %s54, %s55
      %p69 = scmp.eq.s32.totalorder %s26, 1
      %p70 = por %p68, %p69
      %p72 = scmp.ne.s32.totalorder %s55, %s71
      %p73 = scmp.eq.s32.totalorder %s26, 0
      %p74 = por %p72, %p73
      %s75 = ssub.s32 %s20, %s27
      %p76 = scmp.eq.s32.totalorder %s75, 0
      %s78 = sadd.s32 %s77, 1
      %s79 = scalar_select %p76, %s77, %s78
      %p82 = pneg %p76
      %p83 = scmp.eq.s32.totalorder %s20, 1
      %p84 = por %p82, %p83
      %p85 = scmp.ne.s32.totalorder %s77, %s80
      %p86 = scmp.eq.s32.totalorder %s20, 0
      %p87 = por %p85, %p86
      %p88 = scmp.ne.s32.totalorder %s77, %s80
      %p89 = scmp.eq.s32.totalorder %s25, 1
      %p90 = por %p88, %p89
      %p91 = scmp.ne.s32.totalorder %s80, %s81
      %p92 = scmp.eq.s32.totalorder %s25, 0
      %p93 = por %p91, %p92
      %p94 = scmp.ne.s32.totalorder %s80, %s81
      %p95 = scmp.eq.s32.totalorder %s26, 1
      %p96 = por %p94, %p95
      %p98 = scmp.ne.s32.totalorder %s81, %s97
      %p99 = scmp.eq.s32.totalorder %s26, 0
      %p100 = por %p98, %p99
      %s101 = ssub.s32 %s20, %s27
      %p102 = scmp.eq.s32.totalorder %s101, 0
      %s104 = sadd.s32 %s103, 1
      %s105 = scalar_select %p102, %s103, %s104
      %p108 = pneg %p102
      %p109 = scmp.eq.s32.totalorder %s20, 1
      %p110 = por %p108, %p109
      %p111 = scmp.ne.s32.totalorder %s103, %s106
      %p112 = scmp.eq.s32.totalorder %s20, 0
      %p113 = por %p111, %p112
      %p114 = scmp.ne.s32.totalorder %s103, %s106
      %p115 = scmp.eq.s32.totalorder %s25, 1
      %p116 = por %p114, %p115
      %p117 = scmp.ne.s32.totalorder %s106, %s107
      %p118 = scmp.eq.s32.totalorder %s25, 0
      %p119 = por %p117, %p118
      %p120 = scmp.ne.s32.totalorder %s106, %s107
      %p121 = scmp.eq.s32.totalorder %s26, 1
      %p122 = por %p120, %p121
      %p124 = scmp.ne.s32.totalorder %s107, %s123
      %p125 = scmp.eq.s32.totalorder %s26, 0
      %p126 = por %p124, %p125
      %s127 = ssub.s32 %s20, %s27
      %p128 = scmp.eq.s32.totalorder %s127, 0
      %s130 = sadd.s32 %s129, 1
      %s131 = scalar_select %p128, %s129, %s130
      %p134 = pneg %p128
      %p135 = scmp.eq.s32.totalorder %s20, 1
      %p136 = por %p134, %p135
      %p137 = scmp.ne.s32.totalorder %s129, %s132
      %p138 = scmp.eq.s32.totalorder %s20, 0
      %p139 = por %p137, %p138
      %p140 = scmp.ne.s32.totalorder %s129, %s132
      %p141 = scmp.eq.s32.totalorder %s25, 1
      %p142 = por %p140, %p141
      %p143 = scmp.ne.s32.totalorder %s132, %s133
      %p144 = scmp.eq.s32.totalorder %s25, 0
      %p145 = por %p143, %p144
      %p146 = scmp.ne.s32.totalorder %s132, %s133
      %p147 = scmp.eq.s32.totalorder %s26, 1
      %p148 = por %p146, %p147
      %p150 = scmp.ne.s32.totalorder %s133, %s149
      %p151 = scmp.eq.s32.totalorder %s26, 0
      %p152 = por %p150, %p151
      %s154 = sadd.s32 %s153, 1
      %p157 = scmp.eq.s32.totalorder %s20, 1
      %p158 = scmp.ne.s32.totalorder %s153, %s155
      %p159 = scmp.eq.s32.totalorder %s20, 0
      %p160 = por %p158, %p159
      %p161 = scmp.ne.s32.totalorder %s153, %s155
      %p162 = scmp.eq.s32.totalorder %s25, 1
      %p163 = por %p161, %p162
      %p164 = scmp.ne.s32.totalorder %s155, %s156
      %p165 = scmp.eq.s32.totalorder %s25, 0
      %p166 = por %p164, %p165
      %p167 = scmp.ne.s32.totalorder %s155, %s156
      %p168 = scmp.eq.s32.totalorder %s26, 1
      %p169 = por %p167, %p168
      %p171 = scmp.ne.s32.totalorder %s156, %s170
      %p172 = scmp.eq.s32.totalorder %s26, 0
      %p173 = por %p171, %p172
      %s175 = sadd.s32 %s174, 1
      %p178 = scmp.eq.s32.totalorder %s20, 1
      %p179 = scmp.ne.s32.totalorder %s174, %s176
      %p180 = scmp.eq.s32.totalorder %s20, 0
      %p181 = por %p179, %p180
      %p182 = scmp.ne.s32.totalorder %s174, %s176
      %p183 = scmp.eq.s32.totalorder %s25, 1
      %p184 = por %p182, %p183
      %p185 = scmp.ne.s32.totalorder %s176, %s177
      %p186 = scmp.eq.s32.totalorder %s25, 0
      %p187 = por %p185, %p186
      %p188 = scmp.ne.s32.totalorder %s176, %s177
      %p189 = scmp.eq.s32.totalorder %s26, 1
      %p190 = por %p188, %p189
      %p192 = scmp.ne.s32.totalorder %s177, %s191
      %p193 = scmp.eq.s32.totalorder %s26, 0
      %p194 = por %p192, %p193
      %s196 = sadd.s32 %s195, 1
      %p199 = scmp.eq.s32.totalorder %s20, 1
      %p200 = scmp.ne.s32.totalorder %s195, %s197
      %p201 = scmp.eq.s32.totalorder %s20, 0
      %p202 = por %p200, %p201
      %p203 = scmp.ne.s32.totalorder %s195, %s197
      %p204 = scmp.eq.s32.totalorder %s25, 1
      %p205 = por %p203, %p204
      %p206 = scmp.ne.s32.totalorder %s197, %s198
      %p207 = scmp.eq.s32.totalorder %s25, 0
      %p208 = por %p206, %p207
      %p209 = scmp.ne.s32.totalorder %s197, %s198
      %p210 = scmp.eq.s32.totalorder %s26, 1
      %p211 = por %p209, %p210
      %p213 = scmp.ne.s32.totalorder %s198, %s212
      %p214 = scmp.eq.s32.totalorder %s26, 0
      %p215 = por %p213, %p214
      %s217 = sadd.s32 %s216, 1
      %p220 = scmp.eq.s32.totalorder %s20, 1
      %p221 = scmp.ne.s32.totalorder %s216, %s218
      %p222 = scmp.eq.s32.totalorder %s20, 0
      %p223 = por %p221, %p222
      %p224 = scmp.ne.s32.totalorder %s216, %s218
      %p225 = scmp.eq.s32.totalorder %s25, 1
      %p226 = por %p224, %p225
      %p227 = scmp.ne.s32.totalorder %s218, %s219
      %p228 = scmp.eq.s32.totalorder %s25, 0
      %p229 = por %p227, %p228
      %p230 = scmp.ne.s32.totalorder %s218, %s219
      %p231 = scmp.eq.s32.totalorder %s26, 1
      %p232 = por %p230, %p231
      %p234 = scmp.ne.s32.totalorder %s219, %s233
      %p235 = scmp.eq.s32.totalorder %s26, 0
      %p236 = por %p234, %p235
      %s238 = sadd.s32 %s237, 1
      %p241 = scmp.eq.s32.totalorder %s20, 1
      %p242 = scmp.ne.s32.totalorder %s237, %s239
      %p243 = scmp.eq.s32.totalorder %s20, 0
      %p244 = por %p242, %p243
      %p245 = scmp.ne.s32.totalorder %s237, %s239
      %p246 = scmp.eq.s32.totalorder %s25, 1
      %p247 = por %p245, %p246
      %p248 = scmp.ne.s32.totalorder %s239, %s240
      %p249 = scmp.eq.s32.totalorder %s25, 0
      %p250 = por %p248, %p249
      %p251 = scmp.ne.s32.totalorder %s239, %s240
      %p252 = scmp.eq.s32.totalorder %s26, 1
      %p253 = por %p251, %p252
      %p255 = scmp.ne.s32.totalorder %s240, %s254
      %p256 = scmp.eq.s32.totalorder %s26, 0
      %p257 = por %p255, %p256
      %s259 = sadd.s32 %s258, 1
      %p262 = scmp.eq.s32.totalorder %s20, 1
      %p263 = scmp.ne.s32.totalorder %s258, %s260
      %p264 = scmp.eq.s32.totalorder %s20, 0
      %p265 = por %p263, %p264
      %p266 = scmp.ne.s32.totalorder %s258, %s260
      %p267 = scmp.eq.s32.totalorder %s25, 1
      %p268 = por %p266, %p267
      %p269 = scmp.ne.s32.totalorder %s260, %s261
      %p270 = scmp.eq.s32.totalorder %s25, 0
      %p271 = por %p269, %p270
      %p272 = scmp.ne.s32.totalorder %s260, %s261
      %p273 = scmp.eq.s32.totalorder %s26, 1
      %p274 = por %p272, %p273
      %p276 = scmp.ne.s32.totalorder %s261, %s275
      %p277 = scmp.eq.s32.totalorder %s26, 0
      %p278 = por %p276, %p277
      %s279 = ssub.s32 %s20, %s27
      %p280 = scmp.eq.s32.totalorder %s279, 0
      %s282 = sadd.s32 %s281, 1
      %s283 = scalar_select %p280, %s281, %s282
      %p286 = pneg %p280
      %p287 = scmp.eq.s32.totalorder %s20, 1
      %p288 = por %p286, %p287
      %p289 = scmp.ne.s32.totalorder %s281, %s284
      %p290 = scmp.eq.s32.totalorder %s20, 0
      %p291 = por %p289, %p290
      %p292 = scmp.ne.s32.totalorder %s281, %s284
      %p293 = scmp.eq.s32.totalorder %s25, 1
      %p294 = por %p292, %p293
      %p295 = scmp.ne.s32.totalorder %s284, %s285
      %p296 = scmp.eq.s32.totalorder %s25, 0
      %p297 = por %p295, %p296
      %p298 = scmp.ne.s32.totalorder %s284, %s285
      %p299 = scmp.eq.s32.totalorder %s26, 1
      %p300 = por %p298, %p299
      %p302 = scmp.ne.s32.totalorder %s285, %s301
      %p303 = scmp.eq.s32.totalorder %s26, 0
      %p304 = por %p302, %p303
      %s305 = ssub.s32 %s20, %s27
      %p306 = scmp.eq.s32.totalorder %s305, 0
      %s308 = sadd.s32 %s307, 1
      %s309 = scalar_select %p306, %s307, %s308
      %p312 = pneg %p306
      %p313 = scmp.eq.s32.totalorder %s20, 1
      %p314 = por %p312, %p313
      %p315 = scmp.ne.s32.totalorder %s307, %s310
      %p316 = scmp.eq.s32.totalorder %s20, 0
      %p317 = por %p315, %p316
      %p318 = scmp.ne.s32.totalorder %s307, %s310
      %p319 = scmp.eq.s32.totalorder %s25, 1
      %p320 = por %p318, %p319
      %p321 = scmp.ne.s32.totalorder %s310, %s311
      %p322 = scmp.eq.s32.totalorder %s25, 0
      %p323 = por %p321, %p322
      %p324 = scmp.ne.s32.totalorder %s310, %s311
      %p325 = scmp.eq.s32.totalorder %s26, 1
      %p326 = por %p324, %p325
      %p328 = scmp.ne.s32.totalorder %s311, %s327
      %p329 = scmp.eq.s32.totalorder %s26, 0
      %p330 = por %p328, %p329
      %p331 = scmp.le.s32.totalorder 1, %s20
      %p332 = scmp.lt.s32.totalorder %s20, 3
      %p333 = pnand %p331, %p332
      %p334 = pneg %p333
      // Predicated region
      $region9: #{context_block_forward.3} parent=5 // pred_check
        _
      $region10: #{context_block_forward.3} parent=5 // pred_check_branch
        %336 = sbr.rel (%p333) target = $region12
      $region11: #{context_block_forward.3} parent=5 // pred_region
        %s337 = ssub.s32 %s20, 1
        // Predicated region
        $region13: #{context_block_forward.3} parent=11 // pred_check
          %p338 = pneg %p41
        $region14: #{context_block_forward.3} parent=11 // pred_check_branch
          %340 = sbr.rel (%p338) target = $region16
        $region15: #{context_block_forward.3} parent=11 // pred_region
          %s342 = ssub.s32 16, 16
          %343 = vsyncadd [#allocation3], %s342
          %s345 = sshll.u32 %s0, 4
          %s346 = int_to_ptr.vmem [resolvable:$true] %s345
          %348 = dma.vmem_to_smem %s346, 16, [#allocation2], [#allocation3]
        $region16: #{context_block_forward.3} parent=11 // pred_fallthru
          _
        // Predicated region
        $region17: #{context_block_forward.3} parent=11 // pred_check
          %p349 = pneg %p166
        $region18: #{context_block_forward.3} parent=11 // pred_check_branch
          %351 = sbr.rel (%p349) target = $region20
        $region19: #{context_block_forward.3} parent=11 // pred_region
          _
        $region20: #{context_block_forward.3} parent=11 // pred_fallthru
          _
        // Predicated region
        $region21: #{context_block_forward.3} parent=11 // pred_check
          %p352 = pneg %p187
        $region22: #{context_block_forward.3} parent=11 // pred_check_branch
          %354 = sbr.rel (%p352) target = $region24
        $region23: #{context_block_forward.3} parent=11 // pred_region
          _
        $region24: #{context_block_forward.3} parent=11 // pred_fallthru
          _
        // Predicated region
        $region25: #{context_block_forward.3} parent=11 // pred_check
          %p355 = pneg %p208
        $region26: #{context_block_forward.3} parent=11 // pred_check_branch
          %357 = sbr.rel (%p355) target = $region28
        $region27: #{context_block_forward.3} parent=11 // pred_region
          _
        $region28: #{context_block_forward.3} parent=11 // pred_fallthru
          _
        // Predicated region
        $region29: #{context_block_forward.3} parent=11 // pred_check
          %p358 = pneg %p229
        $region30: #{context_block_forward.3} parent=11 // pred_check_branch
          %360 = sbr.rel (%p358) target = $region32
        $region31: #{context_block_forward.3} parent=11 // pred_region
          _
        $region32: #{context_block_forward.3} parent=11 // pred_fallthru
          _
        // Predicated region
        $region33: #{context_block_forward.3} parent=11 // pred_check
          %p361 = pneg %p250
        $region34: #{context_block_forward.3} parent=11 // pred_check_branch
          %363 = sbr.rel (%p361) target = $region36
        $region35: #{context_block_forward.3} parent=11 // pred_region
          _
        $region36: #{context_block_forward.3} parent=11 // pred_fallthru
          _
        // Predicated region
        $region37: #{context_block_forward.3} parent=11 // pred_check
          %p364 = pneg %p271
        $region38: #{context_block_forward.3} parent=11 // pred_check_branch
          %366 = sbr.rel (%p364) target = $region40
        $region39: #{context_block_forward.3} parent=11 // pred_region
          _
        $region40: #{context_block_forward.3} parent=11 // pred_fallthru
          _
      $region12: #{context_block_forward.3} parent=5 // pred_fallthru
        _
      %p367 = scmp.lt.s32.totalorder %s20, 2
      // Predicated region
      $region41: #{context_block_forward.3} parent=5 // pred_check
        %p368 = pneg %p367
      $region42: #{context_block_forward.3} parent=5 // pred_check_branch
        %370 = sbr.rel (%p368) target = $region44
      $region43: #{context_block_forward.3} parent=5 // pred_region
        // Predicated region
        $region45: #{context_block_forward.3} parent=43 // pred_check
          %p371 = pneg %p61
        $region46: #{context_block_forward.3} parent=43 // pred_check_branch
          %373 = sbr.rel (%p371) target = $region48
        $region47: #{context_block_forward.3} parent=43 // pred_region
          %p374 = scmp.lt.s32.totalorder %s20, 1
          %s375 = scalar_select %p374, %s20, 1
          %s376 = smul.addr %s375, 4
          %s377 = scalar_lea.vmem %s1, %s376
        $region48: #{context_block_forward.3} parent=43 // pred_fallthru
          _
        // Predicated region
        $region49: #{context_block_forward.3} parent=43 // pred_check
          %p378 = pneg %p87
        $region50: #{context_block_forward.3} parent=43 // pred_check_branch
          %380 = sbr.rel (%p378) target = $region52
        $region51: #{context_block_forward.3} parent=43 // pred_region
          %p381 = scmp.lt.s32.totalorder %s20, 1
          %s382 = scalar_select %p381, %s20, 1
          %s383 = smul.addr %s382, 4
          %s384 = scalar_lea.vmem %s2, %s383
        $region52: #{context_block_forward.3} parent=43 // pred_fallthru
          _
        // Predicated region
        $region53: #{context_block_forward.3} parent=43 // pred_check
          %p385 = pneg %p113
        $region54: #{context_block_forward.3} parent=43 // pred_check_branch
          %387 = sbr.rel (%p385) target = $region56
        $region55: #{context_block_forward.3} parent=43 // pred_region
          %p388 = scmp.lt.s32.totalorder %s20, 1
          %s389 = scalar_select %p388, %s20, 1
          %s390 = smul.addr %s389, 2
          %s391 = smul.addr %s390, 8
          %s392 = scalar_lea.vmem %s3, %s391
        $region56: #{context_block_forward.3} parent=43 // pred_fallthru
          _
        // Predicated region
        $region57: #{context_block_forward.3} parent=43 // pred_check
          %p393 = pneg %p139
        $region58: #{context_block_forward.3} parent=43 // pred_check_branch
          %395 = sbr.rel (%p393) target = $region60
        $region59: #{context_block_forward.3} parent=43 // pred_region
          %p396 = scmp.lt.s32.totalorder %s20, 1
          %s397 = scalar_select %p396, %s20, 1
          %s398 = smul.addr %s397, 8
          %s399 = scalar_lea.vmem %s4, %s398
        $region60: #{context_block_forward.3} parent=43 // pred_fallthru
          _
      $region44: #{context_block_forward.3} parent=5 // pred_fallthru
        _
      %p400 = scmp.le.s32.totalorder 1, %s20
      %p401 = scmp.lt.s32.totalorder %s20, 3
      %p402 = pnand %p400, %p401
      %p403 = pneg %p402
      // Predicated region
      $region61: #{context_block_forward.3} parent=5 // pred_check
        _
      $region62: #{context_block_forward.3} parent=5 // pred_check_branch
        %405 = sbr.rel (%p402) target = $region64
      $region63: #{context_block_forward.3} parent=5 // pred_region
        %s406 = ssub.s32 %s20, 1
        // Predicated region
        $region65: #{context_block_forward.3} parent=63 // pred_check
          %p407 = pneg %p41
        $region66: #{context_block_forward.3} parent=63 // pred_check_branch
          %409 = sbr.rel (%p407) target = $region68
        $region67: #{context_block_forward.3} parent=63 // pred_region
          %410 = dma.done [#allocation3], 16
        $region68: #{context_block_forward.3} parent=63 // pred_fallthru
          _
        %411 = sfence
        %p412 = pneg %p41
        %p413 = pneg %p38
        %p414 = scmp.lt.s32.totalorder %s25, 1
        %s415 = scalar_select %p414, %s25, 1
        %s416 = smul.addr %s415, 4
        %s417 = scalar_lea.vmem %s1, %s416
        %p418 = pneg %p67
        %p419 = pneg %p64
        %p420 = scmp.lt.s32.totalorder %s25, 1
        %s421 = scalar_select %p420, %s25, 1
        %s422 = smul.addr %s421, 4
        %s423 = scalar_lea.vmem %s2, %s422
        %p424 = pneg %p93
        %p425 = pneg %p90
        %p426 = scmp.lt.s32.totalorder %s25, 1
        %s427 = scalar_select %p426, %s25, 1
        %s428 = smul.addr %s427, 2
        %s429 = smul.addr %s428, 8
        %s430 = scalar_lea.vmem %s3, %s429
        %p431 = pneg %p119
        %p432 = pneg %p116
        %p433 = scmp.lt.s32.totalorder %s25, 1
        %s434 = scalar_select %p433, %s25, 1
        %s435 = smul.addr %s434, 8
        %s436 = scalar_lea.vmem %s4, %s435
        %p437 = pneg %p145
        %p438 = pneg %p142
        %p439 = pneg %p166
        %p440 = pneg %p163
        %p441 = pneg %p187
        %p442 = pneg %p184
        %p443 = pneg %p208
        %p444 = pneg %p205
        %p445 = pneg %p229
        %p446 = pneg %p226
        %p447 = pneg %p250
        %p448 = pneg %p247
        %p449 = pneg %p271
        %p450 = pneg %p268
        %p451 = pneg %p297
        %p452 = pneg %p294
        %p453 = scmp.lt.s32.totalorder %s25, 1
        %s454 = scalar_select %p453, %s25, 1
        %s455 = smul.addr %s454, 2
        %s456 = smul.addr %s455, 8
        %s457 = scalar_lea.vmem %s11, %s456
        %p458 = pneg %p323
        %p459 = pneg %p320
        %p460 = scmp.lt.s32.totalorder %s25, 1
        %s461 = scalar_select %p460, %s25, 1
        %s462 = smul.addr %s461, 8
        %s463 = scalar_lea.vmem %s12, %s462
        %p464 = scmp.lt.s32.totalorder %s25, 1
        %s465 = scalar_select %p464, %s25, 1
        %s466 = smul.addr %s465, 4
        %s467 = scalar_lea.vmem %s1, %s466
        %p468 = scmp.lt.s32.totalorder %s25, 1
        %s469 = scalar_select %p468, %s25, 1
        %s470 = smul.addr %s469, 4
        %s471 = scalar_lea.vmem %s2, %s470
        %p472 = scmp.lt.s32.totalorder %s25, 1
        %s473 = scalar_select %p472, %s25, 1
        %s474 = smul.addr %s473, 2
        %s475 = smul.addr %s474, 8
        %s476 = scalar_lea.vmem %s3, %s475
        %p477 = scmp.lt.s32.totalorder %s25, 1
        %s478 = scalar_select %p477, %s25, 1
        %s479 = smul.addr %s478, 8
        %s480 = scalar_lea.vmem %s4, %s479
        %p481 = scmp.lt.s32.totalorder %s25, 1
        %s482 = scalar_select %p481, %s25, 1
        %s483 = smul.addr %s482, 2
        %s484 = smul.addr %s483, 8
        %s485 = scalar_lea.vmem %s11, %s484
        %p486 = scmp.lt.s32.totalorder %s25, 1
        %s487 = scalar_select %p486, %s25, 1
        %s488 = smul.addr %s487, 8
        %s489 = scalar_lea.vmem %s12, %s488
        %s490 = sld [smem:[#allocation2 + %s25]]
        %v491 = vld [vmem:[%s476] sm:$0xff]
        %v492 = vld [vmem:[%s476 + $0x8] sm:$0xff]
        %v493 = vld [vmem:[%s480] sm:$0xff]
        %v494 = vld [vmem:[%s467] sm:$0xf]
        %v495 = vld [vmem:[%s471] sm:$0xf]
        %vm496 = vcmask 72704
        %v498 = vsel %vm496, %v494, 0
        %v501 = vsel %vm496, %v495, 0
        %503 = vmatprep.subr.mxu0 0.0
        %504 = vmatpush1.xpose.msra.mxu0 %v501
        %505 = vmatprep.subr.mxu0 0.0
        %506 = vmatpush1.xpose.msra.mxu0 0.0
        %507 = vmatprep.subr.mxu0 0.0
        %508 = vmatpush1.xpose.msra.mxu0 0.0
        %509 = vmatprep.subr.mxu0 0.0
        %510 = vmatpush1.xpose.msra.mxu0 0.0
        %511 = vmatprep.subr.mxu0 0.0
        %512 = vmatpush1.xpose.msra.mxu0 0.0
        %513 = vmatprep.subr.mxu0 0.0
        %514 = vmatpush1.xpose.msra.mxu0 0.0
        %515 = vmatprep.subr.mxu0 0.0
        %516 = vmatpush1.xpose.msra.mxu0 0.0
        %517 = vmatprep.subr.mxu0 0.0
        %518 = vmatpush1.xpose.msra.mxu0 0.0
        %519 = vmatprep.subr.mxu0 0.0
        %520 = vmatpush1.xpose.msra.mxu0 0.0
        %521 = vmatprep.subr.mxu0 0.0
        %522 = vmatpush1.xpose.msra.mxu0 0.0
        %523 = vmatprep.subr.mxu0 0.0
        %524 = vmatpush1.xpose.msra.mxu0 0.0
        %525 = vmatprep.subr.mxu0 0.0
        %526 = vmatpush1.xpose.msra.mxu0 0.0
        %527 = vmatprep.subr.mxu0 0.0
        %528 = vmatpush1.xpose.msra.mxu0 0.0
        %529 = vmatprep.subr.mxu0 0.0
        %530 = vmatpush1.xpose.msra.mxu0 0.0
        %531 = vmatprep.subr.mxu0 0.0
        %532 = vmatpush1.xpose.msra.mxu0 0.0
        %533 = vmatprep.subr.mxu0 0.0
        %534 = vmatpush1.xpose.msra.mxu0 0.0
        %535 = vmatprep.subr.mxu0 0.0
        %536 = vmatpush1.xpose.msra.mxu0 0.0
        %537 = vmatprep.subr.mxu0 0.0
        %538 = vmatpush1.xpose.msra.mxu0 0.0
        %539 = vmatprep.subr.mxu0 0.0
        %540 = vmatpush1.xpose.msra.mxu0 0.0
        %541 = vmatprep.subr.mxu0 0.0
        %542 = vmatpush1.xpose.msra.mxu0 0.0
        %543 = vmatprep.subr.mxu0 0.0
        %544 = vmatpush1.xpose.msra.mxu0 0.0
        %545 = vmatprep.subr.mxu0 0.0
        %546 = vmatpush1.xpose.msra.mxu0 0.0
        %547 = vmatprep.subr.mxu0 0.0
        %548 = vmatpush1.xpose.msra.mxu0 0.0
        %549 = vmatprep.subr.mxu0 0.0
        %550 = vmatpush1.xpose.msra.mxu0 0.0
        %551 = vmatprep.subr.mxu0 0.0
        %552 = vmatpush1.xpose.msra.mxu0 0.0
        %553 = vmatprep.subr.mxu0 0.0
        %554 = vmatpush1.xpose.msra.mxu0 0.0
        %555 = vmatprep.subr.mxu0 0.0
        %556 = vmatpush1.xpose.msra.mxu0 0.0
        %557 = vmatprep.subr.mxu0 0.0
        %558 = vmatpush1.xpose.msra.mxu0 0.0
        %559 = vmatprep.subr.mxu0 0.0
        %560 = vmatpush1.xpose.msra.mxu0 0.0
        %561 = vmatprep.subr.mxu0 0.0
        %562 = vmatpush1.xpose.msra.mxu0 0.0
        %563 = vmatprep.subr.mxu0 0.0
        %564 = vmatpush1.xpose.msra.mxu0 0.0
        %565 = vmatprep.subr.mxu0 0.0
        %566 = vmatpush1.xpose.msra.mxu0 0.0
        %567 = vmatprep.mubr.f32.mxu0 0.0
        %568 = vmatmul.mubr.f32.gmra.mrb[0].mxu0 %v498
        %v569 = vpop.f32.mrb[0].mxu0
        %v570 = vadd.f32 0.0, %v569
        %v571 = vpop.f32.mrb[0].mxu0
        %572 = vdwg.mxu0
        %vm573 = vcmask 27648
        %v574 = vsel %vm573, %v570, -inf
        %575 = vmax.xlane.f32.xlu0 %v574
        %v576 = vpop.xlane.xlu0 %575
        %v577 = vsub.f32 %v570, %v576
        %v578 = vmul.f32 %v577, 1.442695
        %v579 = vpow.pop %v578
        %v580 = vsel %vm573, %v579, 0.0
        %581 = vadd.xlane.f32.xlu0 %v580
        %v582 = vpop.xlane.xlu0 %581
        %v583 = vrcp.pop %v582
        %v584 = vmul.f32 %v579, %v583
        %v585 = vld [vmem:[%s7] sm:$0xff]
        %v586 = vld [vmem:[%s5] sm:$0xf]
        %vm587 = vcmask 31744
        %v589 = vsel %vm587, %v584, 0
        %vm591 = vcmask 1043456
        %v593 = vsel %vm591, %v586, 0
        %595 = vmatprep.subr.mxu0 0.0
        %596 = vmatpush1.msra.mxu0 %v593
        %597 = vmatprep.subr.mxu0 0.0
        %598 = vmatpush1.msra.mxu0 0.0
        %599 = vmatprep.subr.mxu0 0.0
        %600 = vmatpush1.msra.mxu0 0.0
        %601 = vmatprep.subr.mxu0 0.0
        %602 = vmatpush1.msra.mxu0 0.0
        %603 = vmatprep.subr.mxu0 0.0
        %604 = vmatpush1.msra.mxu0 0.0
        %605 = vmatprep.subr.mxu0 0.0
        %606 = vmatpush1.msra.mxu0 0.0
        %607 = vmatprep.subr.mxu0 0.0
        %608 = vmatpush1.msra.mxu0 0.0
        %609 = vmatprep.subr.mxu0 0.0
        %610 = vmatpush1.msra.mxu0 0.0
        %611 = vmatprep.subr.mxu0 0.0
        %612 = vmatpush1.msra.mxu0 0.0
        %613 = vmatprep.subr.mxu0 0.0
        %614 = vmatpush1.msra.mxu0 0.0
        %615 = vmatprep.subr.mxu0 0.0
        %616 = vmatpush1.msra.mxu0 0.0
        %617 = vmatprep.subr.mxu0 0.0
        %618 = vmatpush1.msra.mxu0 0.0
        %619 = vmatprep.subr.mxu0 0.0
        %620 = vmatpush1.msra.mxu0 0.0
        %621 = vmatprep.subr.mxu0 0.0
        %622 = vmatpush1.msra.mxu0 0.0
        %623 = vmatprep.subr.mxu0 0.0
        %624 = vmatpush1.msra.mxu0 0.0
        %625 = vmatprep.subr.mxu0 0.0
        %626 = vmatpush1.msra.mxu0 0.0
        %627 = vmatprep.subr.mxu0 0.0
        %628 = vmatpush1.msra.mxu0 0.0
        %629 = vmatprep.subr.mxu0 0.0
        %630 = vmatpush1.msra.mxu0 0.0
        %631 = vmatprep.subr.mxu0 0.0
        %632 = vmatpush1.msra.mxu0 0.0
        %633 = vmatprep.subr.mxu0 0.0
        %634 = vmatpush1.msra.mxu0 0.0
        %635 = vmatprep.subr.mxu0 0.0
        %636 = vmatpush1.msra.mxu0 0.0
        %637 = vmatprep.subr.mxu0 0.0
        %638 = vmatpush1.msra.mxu0 0.0
        %639 = vmatprep.subr.mxu0 0.0
        %640 = vmatpush1.msra.mxu0 0.0
        %641 = vmatprep.subr.mxu0 0.0
        %642 = vmatpush1.msra.mxu0 0.0
        %643 = vmatprep.subr.mxu0 0.0
        %644 = vmatpush1.msra.mxu0 0.0
        %645 = vmatprep.subr.mxu0 0.0
        %646 = vmatpush1.msra.mxu0 0.0
        %647 = vmatprep.subr.mxu0 0.0
        %648 = vmatpush1.msra.mxu0 0.0
        %649 = vmatprep.subr.mxu0 0.0
        %650 = vmatpush1.msra.mxu0 0.0
        %651 = vmatprep.subr.mxu0 0.0
        %652 = vmatpush1.msra.mxu0 0.0
        %653 = vmatprep.subr.mxu0 0.0
        %654 = vmatpush1.msra.mxu0 0.0
        %655 = vmatprep.subr.mxu0 0.0
        %656 = vmatpush1.msra.mxu0 0.0
        %657 = vmatprep.subr.mxu0 0.0
        %658 = vmatpush1.msra.mxu0 0.0
        %659 = vmatprep.mubr.f32.mxu0 0.0
        %660 = vmatmul.mubr.f32.gmra.mrb[0].mxu0 %v589
        %v661 = vpop.f32.mrb[0].mxu0
        %v662 = vadd.f32 0.0, %v661
        %v663 = vpop.f32.mrb[0].mxu0
        %664 = vdwg.mxu0
        %v666 = vsel %vm587, %v585, 0
        %v669 = vsel %vm591, %v662, 0
        %671 = vmatprep.subr.mxu0 0.0
        %672 = vmatpush1.msra.mxu0 %v669
        %673 = vmatprep.subr.mxu0 0.0
        %674 = vmatpush1.msra.mxu0 0.0
        %675 = vmatprep.subr.mxu0 0.0
        %676 = vmatpush1.msra.mxu0 0.0
        %677 = vmatprep.subr.mxu0 0.0
        %678 = vmatpush1.msra.mxu0 0.0
        %679 = vmatprep.subr.mxu0 0.0
        %680 = vmatpush1.msra.mxu0 0.0
        %681 = vmatprep.subr.mxu0 0.0
        %682 = vmatpush1.msra.mxu0 0.0
        %683 = vmatprep.subr.mxu0 0.0
        %684 = vmatpush1.msra.mxu0 0.0
        %685 = vmatprep.subr.mxu0 0.0
        %686 = vmatpush1.msra.mxu0 0.0
        %687 = vmatprep.subr.mxu0 0.0
        %688 = vmatpush1.msra.mxu0 0.0
        %689 = vmatprep.subr.mxu0 0.0
        %690 = vmatpush1.msra.mxu0 0.0
        %691 = vmatprep.subr.mxu0 0.0
        %692 = vmatpush1.msra.mxu0 0.0
        %693 = vmatprep.subr.mxu0 0.0
        %694 = vmatpush1.msra.mxu0 0.0
        %695 = vmatprep.subr.mxu0 0.0
        %696 = vmatpush1.msra.mxu0 0.0
        %697 = vmatprep.subr.mxu0 0.0
        %698 = vmatpush1.msra.mxu0 0.0
        %699 = vmatprep.subr.mxu0 0.0
        %700 = vmatpush1.msra.mxu0 0.0
        %701 = vmatprep.subr.mxu0 0.0
        %702 = vmatpush1.msra.mxu0 0.0
        %703 = vmatprep.subr.mxu0 0.0
        %704 = vmatpush1.msra.mxu0 0.0
        %705 = vmatprep.subr.mxu0 0.0
        %706 = vmatpush1.msra.mxu0 0.0
        %707 = vmatprep.subr.mxu0 0.0
        %708 = vmatpush1.msra.mxu0 0.0
        %709 = vmatprep.subr.mxu0 0.0
        %710 = vmatpush1.msra.mxu0 0.0
        %711 = vmatprep.subr.mxu0 0.0
        %712 = vmatpush1.msra.mxu0 0.0
        %713 = vmatprep.subr.mxu0 0.0
        %714 = vmatpush1.msra.mxu0 0.0
        %715 = vmatprep.subr.mxu0 0.0
        %716 = vmatpush1.msra.mxu0 0.0
        %717 = vmatprep.subr.mxu0 0.0
        %718 = vmatpush1.msra.mxu0 0.0
        %719 = vmatprep.subr.mxu0 0.0
        %720 = vmatpush1.msra.mxu0 0.0
        %721 = vmatprep.subr.mxu0 0.0
        %722 = vmatpush1.msra.mxu0 0.0
        %723 = vmatprep.subr.mxu0 0.0
        %724 = vmatpush1.msra.mxu0 0.0
        %725 = vmatprep.subr.mxu0 0.0
        %726 = vmatpush1.msra.mxu0 0.0
        %727 = vmatprep.subr.mxu0 0.0
        %728 = vmatpush1.msra.mxu0 0.0
        %729 = vmatprep.subr.mxu0 0.0
        %730 = vmatpush1.msra.mxu0 0.0
        %731 = vmatprep.subr.mxu0 0.0
        %732 = vmatpush1.msra.mxu0 0.0
        %733 = vmatprep.subr.mxu0 0.0
        %734 = vmatpush1.msra.mxu0 0.0
        %735 = vmatprep.mubr.f32.mxu0 0.0
        %736 = vmatmul.mubr.f32.gmra.mrb[0].mxu0 %v666
        %v737 = vpop.f32.mrb[0].mxu0
        %v738 = vadd.f32 0.0, %v737
        %v739 = vpop.f32.mrb[0].mxu0
        %740 = vdwg.mxu0
        %v741 = vld [vmem:[%s6] sm:$0xf]
        %v743 = vsel %vm591, %v741, 0
        %745 = vmatprep.subr.mxu0 0.0
        %746 = vmatpush1.msra.mxu0 %v743
        %747 = vmatprep.subr.mxu0 0.0
        %748 = vmatpush1.msra.mxu0 0.0
        %749 = vmatprep.subr.mxu0 0.0
        %750 = vmatpush1.msra.mxu0 0.0
        %751 = vmatprep.subr.mxu0 0.0
        %752 = vmatpush1.msra.mxu0 0.0
        %753 = vmatprep.subr.mxu0 0.0
        %754 = vmatpush1.msra.mxu0 0.0
        %755 = vmatprep.subr.mxu0 0.0
        %756 = vmatpush1.msra.mxu0 0.0
        %757 = vmatprep.subr.mxu0 0.0
        %758 = vmatpush1.msra.mxu0 0.0
        %759 = vmatprep.subr.mxu0 0.0
        %760 = vmatpush1.msra.mxu0 0.0
        %761 = vmatprep.subr.mxu0 0.0
        %762 = vmatpush1.msra.mxu0 0.0
        %763 = vmatprep.subr.mxu0 0.0
        %764 = vmatpush1.msra.mxu0 0.0
        %765 = vmatprep.subr.mxu0 0.0
        %766 = vmatpush1.msra.mxu0 0.0
        %767 = vmatprep.subr.mxu0 0.0
        %768 = vmatpush1.msra.mxu0 0.0
        %769 = vmatprep.subr.mxu0 0.0
        %770 = vmatpush1.msra.mxu0 0.0
        %771 = vmatprep.subr.mxu0 0.0
        %772 = vmatpush1.msra.mxu0 0.0
        %773 = vmatprep.subr.mxu0 0.0
        %774 = vmatpush1.msra.mxu0 0.0
        %775 = vmatprep.subr.mxu0 0.0
        %776 = vmatpush1.msra.mxu0 0.0
        %777 = vmatprep.subr.mxu0 0.0
        %778 = vmatpush1.msra.mxu0 0.0
        %779 = vmatprep.subr.mxu0 0.0
        %780 = vmatpush1.msra.mxu0 0.0
        %781 = vmatprep.subr.mxu0 0.0
        %782 = vmatpush1.msra.mxu0 0.0
        %783 = vmatprep.subr.mxu0 0.0
        %784 = vmatpush1.msra.mxu0 0.0
        %785 = vmatprep.subr.mxu0 0.0
        %786 = vmatpush1.msra.mxu0 0.0
        %787 = vmatprep.subr.mxu0 0.0
        %788 = vmatpush1.msra.mxu0 0.0
        %789 = vmatprep.subr.mxu0 0.0
        %790 = vmatpush1.msra.mxu0 0.0
        %791 = vmatprep.subr.mxu0 0.0
        %792 = vmatpush1.msra.mxu0 0.0
        %793 = vmatprep.subr.mxu0 0.0
        %794 = vmatpush1.msra.mxu0 0.0
        %795 = vmatprep.subr.mxu0 0.0
        %796 = vmatpush1.msra.mxu0 0.0
        %797 = vmatprep.subr.mxu0 0.0
        %798 = vmatpush1.msra.mxu0 0.0
        %799 = vmatprep.subr.mxu0 0.0
        %800 = vmatpush1.msra.mxu0 0.0
        %801 = vmatprep.subr.mxu0 0.0
        %802 = vmatpush1.msra.mxu0 0.0
        %803 = vmatprep.subr.mxu0 0.0
        %804 = vmatpush1.msra.mxu0 0.0
        %805 = vmatprep.subr.mxu0 0.0
        %806 = vmatpush1.msra.mxu0 0.0
        %807 = vmatprep.subr.mxu0 0.0
        %808 = vmatpush1.msra.mxu0 0.0
        %809 = vmatprep.mubr.f32.mxu0 0.0
        %810 = vmatmul.mubr.f32.gmra.mrb[0].mxu0 %v589
        %v811 = vpop.f32.mrb[0].mxu0
        %v812 = vadd.f32 0.0, %v811
        %v813 = vpop.f32.mrb[0].mxu0
        %814 = vdwg.mxu0
        %v816 = vsel %vm591, %v812, 0
        %818 = vmatprep.subr.mxu0 0.0
        %819 = vmatpush1.msra.mxu0 %v816
        %820 = vmatprep.subr.mxu0 0.0
        %821 = vmatpush1.msra.mxu0 0.0
        %822 = vmatprep.subr.mxu0 0.0
        %823 = vmatpush1.msra.mxu0 0.0
        %824 = vmatprep.subr.mxu0 0.0
        %825 = vmatpush1.msra.mxu0 0.0
        %826 = vmatprep.subr.mxu0 0.0
        %827 = vmatpush1.msra.mxu0 0.0
        %828 = vmatprep.subr.mxu0 0.0
        %829 = vmatpush1.msra.mxu0 0.0
        %830 = vmatprep.subr.mxu0 0.0
        %831 = vmatpush1.msra.mxu0 0.0
        %832 = vmatprep.subr.mxu0 0.0
        %833 = vmatpush1.msra.mxu0 0.0
        %834 = vmatprep.subr.mxu0 0.0
        %835 = vmatpush1.msra.mxu0 0.0
        %836 = vmatprep.subr.mxu0 0.0
        %837 = vmatpush1.msra.mxu0 0.0
        %838 = vmatprep.subr.mxu0 0.0
        %839 = vmatpush1.msra.mxu0 0.0
        %840 = vmatprep.subr.mxu0 0.0
        %841 = vmatpush1.msra.mxu0 0.0
        %842 = vmatprep.subr.mxu0 0.0
        %843 = vmatpush1.msra.mxu0 0.0
        %844 = vmatprep.subr.mxu0 0.0
        %845 = vmatpush1.msra.mxu0 0.0
        %846 = vmatprep.subr.mxu0 0.0
        %847 = vmatpush1.msra.mxu0 0.0
        %848 = vmatprep.subr.mxu0 0.0
        %849 = vmatpush1.msra.mxu0 0.0
        %850 = vmatprep.subr.mxu0 0.0
        %851 = vmatpush1.msra.mxu0 0.0
        %852 = vmatprep.subr.mxu0 0.0
        %853 = vmatpush1.msra.mxu0 0.0
        %854 = vmatprep.subr.mxu0 0.0
        %855 = vmatpush1.msra.mxu0 0.0
        %856 = vmatprep.subr.mxu0 0.0
        %857 = vmatpush1.msra.mxu0 0.0
        %858 = vmatprep.subr.mxu0 0.0
        %859 = vmatpush1.msra.mxu0 0.0
        %860 = vmatprep.subr.mxu0 0.0
        %861 = vmatpush1.msra.mxu0 0.0
        %862 = vmatprep.subr.mxu0 0.0
        %863 = vmatpush1.msra.mxu0 0.0
        %864 = vmatprep.subr.mxu0 0.0
        %865 = vmatpush1.msra.mxu0 0.0
        %866 = vmatprep.subr.mxu0 0.0
        %867 = vmatpush1.msra.mxu0 0.0
        %868 = vmatprep.subr.mxu0 0.0
        %869 = vmatpush1.msra.mxu0 0.0
        %870 = vmatprep.subr.mxu0 0.0
        %871 = vmatpush1.msra.mxu0 0.0
        %872 = vmatprep.subr.mxu0 0.0
        %873 = vmatpush1.msra.mxu0 0.0
        %874 = vmatprep.subr.mxu0 0.0
        %875 = vmatpush1.msra.mxu0 0.0
        %876 = vmatprep.subr.mxu0 0.0
        %877 = vmatpush1.msra.mxu0 0.0
        %878 = vmatprep.subr.mxu0 0.0
        %879 = vmatpush1.msra.mxu0 0.0
        %880 = vmatprep.subr.mxu0 0.0
        %881 = vmatpush1.msra.mxu0 0.0
        %882 = vmatprep.mubr.f32.mxu0 0.0
        %883 = vmatmul.mubr.f32.gmra.mrb[0].mxu0 %v666
        %v884 = vpop.f32.mrb[0].mxu0
        %v885 = vadd.f32 0.0, %v884
        %v886 = vpop.f32.mrb[0].mxu0
        %887 = vdwg.mxu0
        %v888 = vld [vmem:[%s8] sm:$0xff]
        %v889 = vstv %s490
        %v890 = vmul.f32 %v888, %v889
        %892 = vset.pattern.permute.xlu0 0
        %893 = vperm.xlu0 %892, %v890
        %v894 = vpop.permute.xlu0 %893
        %vm896 = vcmask 64512
        %v898 = vsel %vm896, %v738, 0
        %900 = vmatprep.subr.mxu0 %v492
        %901 = vmatpush1.msra.mxu0 %v491
        %902 = vmatprep.subr.mxu0 0.0
        %903 = vmatpush1.msra.mxu0 0.0
        %904 = vmatprep.subr.mxu0 0.0
        %905 = vmatpush1.msra.mxu0 0.0
        %906 = vmatprep.subr.mxu0 0.0
        %907 = vmatpush1.msra.mxu0 0.0
        %908 = vmatprep.subr.mxu0 0.0
        %909 = vmatpush1.msra.mxu0 0.0
        %910 = vmatprep.subr.mxu0 0.0
        %911 = vmatpush1.msra.mxu0 0.0
        %912 = vmatprep.subr.mxu0 0.0
        %913 = vmatpush1.msra.mxu0 0.0
        %914 = vmatprep.subr.mxu0 0.0
        %915 = vmatpush1.msra.mxu0 0.0
        %916 = vmatprep.subr.mxu0 0.0
        %917 = vmatpush1.msra.mxu0 0.0
        %918 = vmatprep.subr.mxu0 0.0
        %919 = vmatpush1.msra.mxu0 0.0
        %920 = vmatprep.subr.mxu0 0.0
        %921 = vmatpush1.msra.mxu0 0.0
        %922 = vmatprep.subr.mxu0 0.0
        %923 = vmatpush1.msra.mxu0 0.0
        %924 = vmatprep.subr.mxu0 0.0
        %925 = vmatpush1.msra.mxu0 0.0
        %926 = vmatprep.subr.mxu0 0.0
        %927 = vmatpush1.msra.mxu0 0.0
        %928 = vmatprep.subr.mxu0 0.0
        %929 = vmatpush1.msra.mxu0 0.0
        %930 = vmatprep.subr.mxu0 0.0
        %931 = vmatpush1.msra.mxu0 0.0
        %932 = vmatprep.subr.mxu0 0.0
        %933 = vmatpush1.msra.mxu0 0.0
        %934 = vmatprep.subr.mxu0 0.0
        %935 = vmatpush1.msra.mxu0 0.0
        %936 = vmatprep.subr.mxu0 0.0
        %937 = vmatpush1.msra.mxu0 0.0
        %938 = vmatprep.subr.mxu0 0.0
        %939 = vmatpush1.msra.mxu0 0.0
        %940 = vmatprep.subr.mxu0 0.0
        %941 = vmatpush1.msra.mxu0 0.0
        %942 = vmatprep.subr.mxu0 0.0
        %943 = vmatpush1.msra.mxu0 0.0
        %944 = vmatprep.subr.mxu0 0.0
        %945 = vmatpush1.msra.mxu0 0.0
        %946 = vmatprep.subr.mxu0 0.0
        %947 = vmatpush1.msra.mxu0 0.0
        %948 = vmatprep.subr.mxu0 0.0
        %949 = vmatpush1.msra.mxu0 0.0
        %950 = vmatprep.subr.mxu0 0.0
        %951 = vmatpush1.msra.mxu0 0.0
        %952 = vmatprep.subr.mxu0 0.0
        %953 = vmatpush1.msra.mxu0 0.0
        %954 = vmatprep.subr.mxu0 0.0
        %955 = vmatpush1.msra.mxu0 0.0
        %956 = vmatprep.subr.mxu0 0.0
        %957 = vmatpush1.msra.mxu0 0.0
        %958 = vmatprep.subr.mxu0 0.0
        %959 = vmatpush1.msra.mxu0 0.0
        %960 = vmatprep.subr.mxu0 0.0
        %961 = vmatpush1.msra.mxu0 0.0
        %962 = vmatprep.subr.mxu0 0.0
        %963 = vmatpush1.msra.mxu0 0.0
        %964 = vmatprep.mubr.f32.mxu0 0.0
        %965 = vmatmul.mubr.f32.gmra.mrb[0].mxu0 %v898
        %v966 = vpop.f32.mrb[0].mxu0
        %v967 = vadd.f32 %v894, %v966
        %v968 = vpop.f32.mrb[0].mxu0
        %v969 = vadd.f32 %v894, %v968
        %970 = vdwg.mxu0
        %v971 = vxor.u32 %v967, 2147483648
        %v972 = vxor.u32 %v969, 2147483648
        %v973 = vmul.f32 %v971, 1.442695
        %v974 = vpow.pop %v973
        %v975 = vmul.f32 %v972, 1.442695
        %v976 = vpow.pop %v975
        %v977 = vadd.f32 %v974, 1.0
        %v978 = vadd.f32 %v976, 1.0
        %v979 = vrcp.pop %v977
        %v980 = vmul.f32 1.0, %v979
        %v981 = vrcp.pop %v978
        %v982 = vmul.f32 1.0, %v981
        %v984 = vsel %vm896, %v885, 0
        %986 = vmatprep.subr.mxu0 0.0
        %987 = vmatpush1.msra.mxu0 %v493
        %988 = vmatprep.subr.mxu0 0.0
        %989 = vmatpush1.msra.mxu0 0.0
        %990 = vmatprep.subr.mxu0 0.0
        %991 = vmatpush1.msra.mxu0 0.0
        %992 = vmatprep.subr.mxu0 0.0
        %993 = vmatpush1.msra.mxu0 0.0
        %994 = vmatprep.subr.mxu0 0.0
        %995 = vmatpush1.msra.mxu0 0.0
        %996 = vmatprep.subr.mxu0 0.0
        %997 = vmatpush1.msra.mxu0 0.0
        %998 = vmatprep.subr.mxu0 0.0
        %999 = vmatpush1.msra.mxu0 0.0
        %1000 = vmatprep.subr.mxu0 0.0
        %1001 = vmatpush1.msra.mxu0 0.0
        %1002 = vmatprep.subr.mxu0 0.0
        %1003 = vmatpush1.msra.mxu0 0.0
        %1004 = vmatprep.subr.mxu0 0.0
        %1005 = vmatpush1.msra.mxu0 0.0
        %1006 = vmatprep.subr.mxu0 0.0
        %1007 = vmatpush1.msra.mxu0 0.0
        %1008 = vmatprep.subr.mxu0 0.0
        %1009 = vmatpush1.msra.mxu0 0.0
        %1010 = vmatprep.subr.mxu0 0.0
        %1011 = vmatpush1.msra.mxu0 0.0
        %1012 = vmatprep.subr.mxu0 0.0
        %1013 = vmatpush1.msra.mxu0 0.0
        %1014 = vmatprep.subr.mxu0 0.0
        %1015 = vmatpush1.msra.mxu0 0.0
        %1016 = vmatprep.subr.mxu0 0.0
        %1017 = vmatpush1.msra.mxu0 0.0
        %1018 = vmatprep.subr.mxu0 0.0
        %1019 = vmatpush1.msra.mxu0 0.0
        %1020 = vmatprep.subr.mxu0 0.0
        %1021 = vmatpush1.msra.mxu0 0.0
        %1022 = vmatprep.subr.mxu0 0.0
        %1023 = vmatpush1.msra.mxu0 0.0
        %1024 = vmatprep.subr.mxu0 0.0
        %1025 = vmatpush1.msra.mxu0 0.0
        %1026 = vmatprep.subr.mxu0 0.0
        %1027 = vmatpush1.msra.mxu0 0.0
        %1028 = vmatprep.subr.mxu0 0.0
        %1029 = vmatpush1.msra.mxu0 0.0
        %1030 = vmatprep.subr.mxu0 0.0
        %1031 = vmatpush1.msra.mxu0 0.0
        %1032 = vmatprep.subr.mxu0 0.0
        %1033 = vmatpush1.msra.mxu0 0.0
        %1034 = vmatprep.subr.mxu0 0.0
        %1035 = vmatpush1.msra.mxu0 0.0
        %1036 = vmatprep.subr.mxu0 0.0
        %1037 = vmatpush1.msra.mxu0 0.0
        %1038 = vmatprep.subr.mxu0 0.0
        %1039 = vmatpush1.msra.mxu0 0.0
        %1040 = vmatprep.subr.mxu0 0.0
        %1041 = vmatpush1.msra.mxu0 0.0
        %1042 = vmatprep.subr.mxu0 0.0
        %1043 = vmatpush1.msra.mxu0 0.0
        %1044 = vmatprep.subr.mxu0 0.0
        %1045 = vmatpush1.msra.mxu0 0.0
        %1046 = vmatprep.subr.mxu0 0.0
        %1047 = vmatpush1.msra.mxu0 0.0
        %1048 = vmatprep.subr.mxu0 0.0
        %1049 = vmatpush1.msra.mxu0 0.0
        %1050 = vmatprep.mubr.f32.mxu0 0.0
        %1051 = vmatmul.mubr.f32.gmra.mrb[0].mxu0 %v984
        %v1052 = vpop.f32.mrb[0].mxu0
        %v1053 = vadd.f32 %v894, %v1052
        %v1054 = vpop.f32.mrb[0].mxu0
        %1055 = vdwg.mxu0
        %v1056 = vxor.u32 %v1053, 2147483648
        %v1057 = vmul.f32 %v1056, 1.442695
        %v1058 = vpow.pop %v1057
        %v1059 = vadd.f32 %v1058, 1.0
        %v1060 = vrcp.pop %v1059
        %v1061 = vmul.f32 1.0, %v1060
        %vm1062 = vcmask 130048
        %v1063 = vsel %vm1062, %v982, 0.0
        %v1064 = vadd.f32 %v980, %v1063
        %1065 = vadd.xlane.f32.xlu0 %v1064
        %v1066 = vpop.xlane.xlu0 %1065
        %v1067 = vrcp.pop 144.0
        %v1068 = vmul.f32 %v1066, %v1067
        %v1069 = vsel %vm1062, %v982, -inf
        %v1070 = vmax.f32 %v980, %v1069
        %1071 = vmax.xlane.f32.xlu0 %v1070
        %v1072 = vpop.xlane.xlu0 %1071
        %vm1073 = vcmask 293888
        %v1074 = vsel %vm1073, %v1061, 0.0
        %1075 = vadd.xlane.f32.xlu0 %v1074
        %v1076 = vpop.xlane.xlu0 %1075
        %v1077 = vrcp.pop 36.0
        %v1078 = vmul.f32 %v1076, %v1077
        %v1079 = vsel %vm1073, %v1061, -inf
        %1080 = vmax.xlane.f32.xlu0 %v1079
        %v1081 = vpop.xlane.xlu0 %1080
        %vm1082 = vcmask 7168
        %v1083 = vsel %vm1082, %v1068, %v1072
        %vm1084 = vcmask 15360
        %v1085 = vsel %vm1084, %v1083, %v1078
        %vm1086 = vcmask 23552
        %v1087 = vsel %vm1086, %v1085, %v1081
        %v1088 = vld [vmem:[%s9] sm:$0x3]
        %v1090 = vsel %vm896, %v1088, 0
        %1092 = vmatprep.subr.mxu0 0.0
        %1093 = vmatpush1.msra.mxu0 %v1087
        %1094 = vmatprep.subr.mxu0 0.0
        %1095 = vmatpush1.msra.mxu0 0.0
        %1096 = vmatprep.subr.mxu0 0.0
        %1097 = vmatpush1.msra.mxu0 0.0
        %1098 = vmatprep.subr.mxu0 0.0
        %1099 = vmatpush1.msra.mxu0 0.0
        %1100 = vmatprep.subr.mxu0 0.0
        %1101 = vmatpush1.msra.mxu0 0.0
        %1102 = vmatprep.subr.mxu0 0.0
        %1103 = vmatpush1.msra.mxu0 0.0
        %1104 = vmatprep.subr.mxu0 0.0
        %1105 = vmatpush1.msra.mxu0 0.0
        %1106 = vmatprep.subr.mxu0 0.0
        %1107 = vmatpush1.msra.mxu0 0.0
        %1108 = vmatprep.subr.mxu0 0.0
        %1109 = vmatpush1.msra.mxu0 0.0
        %1110 = vmatprep.subr.mxu0 0.0
        %1111 = vmatpush1.msra.mxu0 0.0
        %1112 = vmatprep.subr.mxu0 0.0
        %1113 = vmatpush1.msra.mxu0 0.0
        %1114 = vmatprep.subr.mxu0 0.0
        %1115 = vmatpush1.msra.mxu0 0.0
        %1116 = vmatprep.subr.mxu0 0.0
        %1117 = vmatpush1.msra.mxu0 0.0
        %1118 = vmatprep.subr.mxu0 0.0
        %1119 = vmatpush1.msra.mxu0 0.0
        %1120 = vmatprep.subr.mxu0 0.0
        %1121 = vmatpush1.msra.mxu0 0.0
        %1122 = vmatprep.subr.mxu0 0.0
        %1123 = vmatpush1.msra.mxu0 0.0
        %1124 = vmatprep.subr.mxu0 0.0
        %1125 = vmatpush1.msra.mxu0 0.0
        %1126 = vmatprep.subr.mxu0 0.0
        %1127 = vmatpush1.msra.mxu0 0.0
        %1128 = vmatprep.subr.mxu0 0.0
        %1129 = vmatpush1.msra.mxu0 0.0
        %1130 = vmatprep.subr.mxu0 0.0
        %1131 = vmatpush1.msra.mxu0 0.0
        %1132 = vmatprep.subr.mxu0 0.0
        %1133 = vmatpush1.msra.mxu0 0.0
        %1134 = vmatprep.subr.mxu0 0.0
        %1135 = vmatpush1.msra.mxu0 0.0
        %1136 = vmatprep.subr.mxu0 0.0
        %1137 = vmatpush1.msra.mxu0 0.0
        %1138 = vmatprep.subr.mxu0 0.0
        %1139 = vmatpush1.msra.mxu0 0.0
        %1140 = vmatprep.subr.mxu0 0.0
        %1141 = vmatpush1.msra.mxu0 0.0
        %1142 = vmatprep.subr.mxu0 0.0
        %1143 = vmatpush1.msra.mxu0 0.0
        %1144 = vmatprep.subr.mxu0 0.0
        %1145 = vmatpush1.msra.mxu0 0.0
        %1146 = vmatprep.subr.mxu0 0.0
        %1147 = vmatpush1.msra.mxu0 0.0
        %1148 = vmatprep.subr.mxu0 0.0
        %1149 = vmatpush1.msra.mxu0 0.0
        %1150 = vmatprep.subr.mxu0 0.0
        %1151 = vmatpush1.msra.mxu0 0.0
        %1152 = vmatprep.subr.mxu0 0.0
        %1153 = vmatpush1.msra.mxu0 0.0
        %1154 = vmatprep.subr.mxu0 0.0
        %1155 = vmatpush1.msra.mxu0 0.0
        %1156 = vmatprep.mubr.f32.mxu0 0.0
        %1157 = vmatmul.mubr.f32.gmra.mrb[0].mxu0 %v1090
        %v1158 = vpop.f32.mrb[0].mxu0
        %v1159 = vadd.f32 0.0, %v1158
        %v1160 = vpop.f32.mrb[0].mxu0
        %1161 = vdwg.mxu0
        %v1162 = vmax.f32 %v1159, 0.0
        %v1163 = vld [vmem:[%s10] sm:$0xff]
        %v1165 = vsel %vm1084, %v1163, 0
        %vm1167 = vcmask 1041408
        %v1169 = vsel %vm1167, %v1162, 0
        %1171 = vmatprep.subr.mxu0 0.0
        %1172 = vmatpush1.msra.mxu0 %v1169
        %1173 = vmatprep.subr.mxu0 0.0
        %1174 = vmatpush1.msra.mxu0 0.0
        %1175 = vmatprep.subr.mxu0 0.0
        %1176 = vmatpush1.msra.mxu0 0.0
        %1177 = vmatprep.subr.mxu0 0.0
        %1178 = vmatpush1.msra.mxu0 0.0
        %1179 = vmatprep.subr.mxu0 0.0
        %1180 = vmatpush1.msra.mxu0 0.0
        %1181 = vmatprep.subr.mxu0 0.0
        %1182 = vmatpush1.msra.mxu0 0.0
        %1183 = vmatprep.subr.mxu0 0.0
        %1184 = vmatpush1.msra.mxu0 0.0
        %1185 = vmatprep.subr.mxu0 0.0
        %1186 = vmatpush1.msra.mxu0 0.0
        %1187 = vmatprep.subr.mxu0 0.0
        %1188 = vmatpush1.msra.mxu0 0.0
        %1189 = vmatprep.subr.mxu0 0.0
        %1190 = vmatpush1.msra.mxu0 0.0
        %1191 = vmatprep.subr.mxu0 0.0
        %1192 = vmatpush1.msra.mxu0 0.0
        %1193 = vmatprep.subr.mxu0 0.0
        %1194 = vmatpush1.msra.mxu0 0.0
        %1195 = vmatprep.subr.mxu0 0.0
        %1196 = vmatpush1.msra.mxu0 0.0
        %1197 = vmatprep.subr.mxu0 0.0
        %1198 = vmatpush1.msra.mxu0 0.0
        %1199 = vmatprep.subr.mxu0 0.0
        %1200 = vmatpush1.msra.mxu0 0.0
        %1201 = vmatprep.subr.mxu0 0.0
        %1202 = vmatpush1.msra.mxu0 0.0
        %1203 = vmatprep.subr.mxu0 0.0
        %1204 = vmatpush1.msra.mxu0 0.0
        %1205 = vmatprep.subr.mxu0 0.0
        %1206 = vmatpush1.msra.mxu0 0.0
        %1207 = vmatprep.subr.mxu0 0.0
        %1208 = vmatpush1.msra.mxu0 0.0
        %1209 = vmatprep.subr.mxu0 0.0
        %1210 = vmatpush1.msra.mxu0 0.0
        %1211 = vmatprep.subr.mxu0 0.0
        %1212 = vmatpush1.msra.mxu0 0.0
        %1213 = vmatprep.subr.mxu0 0.0
        %1214 = vmatpush1.msra.mxu0 0.0
        %1215 = vmatprep.subr.mxu0 0.0
        %1216 = vmatpush1.msra.mxu0 0.0
        %1217 = vmatprep.subr.mxu0 0.0
        %1218 = vmatpush1.msra.mxu0 0.0
        %1219 = vmatprep.subr.mxu0 0.0
        %1220 = vmatpush1.msra.mxu0 0.0
        %1221 = vmatprep.subr.mxu0 0.0
        %1222 = vmatpush1.msra.mxu0 0.0
        %1223 = vmatprep.subr.mxu0 0.0
        %1224 = vmatpush1.msra.mxu0 0.0
        %1225 = vmatprep.subr.mxu0 0.0
        %1226 = vmatpush1.msra.mxu0 0.0
        %1227 = vmatprep.subr.mxu0 0.0
        %1228 = vmatpush1.msra.mxu0 0.0
        %1229 = vmatprep.subr.mxu0 0.0
        %1230 = vmatpush1.msra.mxu0 0.0
        %1231 = vmatprep.subr.mxu0 0.0
        %1232 = vmatpush1.msra.mxu0 0.0
        %1233 = vmatprep.subr.mxu0 0.0
        %1234 = vmatpush1.msra.mxu0 0.0
        %1235 = vmatprep.mubr.f32.mxu0 0.0
        %1236 = vmatmul.mubr.f32.gmra.mrb[0].mxu0 %v1165
        %v1237 = vpop.f32.mrb[0].mxu0
        %v1238 = vadd.f32 0.0, %v1237
        %v1239 = vpop.f32.mrb[0].mxu0
        %1240 = vdwg.mxu0
        %v1241 = vxor.u32 %v1238, 2147483648
        %v1242 = vmul.f32 %v1241, 1.442695
        %v1243 = vpow.pop %v1242
        %v1244 = vadd.f32 %v1243, 1.0
        %v1245 = vrcp.pop %v1244
        %v1246 = vmul.f32 1.0, %v1245
        %1248 = vrot.lane.b32.xlu0 %v1246, 127
        %v1249 = vpop.permute.xlu0 %1248
        %v1251 = vadd.f32 %v1246, %v1249
        %v1252 = vmul.f32 %v980, %v980
        %v1253 = vmul.f32 %v982, %v982
        %v1254 = vsel %vm1062, %v1253, 0.0
        %v1255 = vadd.f32 %v1252, %v1254
        %1256 = vadd.xlane.f32.xlu0 %v1255
        %v1257 = vpop.xlane.xlu0 %1256
        %v1258 = vmul.f32 %v1257, %v1067
        %v1259 = vmul.f32 %v1068, %v1068
        %v1260 = vsub.f32 %v1258, %v1259
        %v1261 = vmax.f32 %v1260, 0.0
        %v1262 = vmul.f32 %v1061, %v1061
        %v1263 = vsel %vm1073, %v1262, 0.0
        %1264 = vadd.xlane.f32.xlu0 %v1263
        %v1265 = vpop.xlane.xlu0 %1264
        %v1266 = vmul.f32 %v1265, %v1077
        %v1267 = vmul.f32 %v1078, %v1078
        %v1268 = vsub.f32 %v1266, %v1267
        %v1269 = vmax.f32 %v1268, 0.0
        %v1270 = vsub.f32 %v980, %v1068
        %v1271 = vsub.f32 %v982, %v1068
        %v1272 = vadd.f32 %v1261, 1e-05
        %v1273 = vrsqrt.pop %v1272
        %v1274 = vmul.f32 %v1270, %v1273
        %v1275 = vmul.f32 %v1271, %v1273
        %v1276 = vsub.f32 %v1061, %v1078
        %v1277 = vadd.f32 %v1269, 1e-05
        %v1278 = vrsqrt.pop %v1277
        %v1279 = vmul.f32 %v1276, %v1278
        %1281 = vset.pattern.permute.xlu0 0
        %1282 = vperm.xlu0 %1281, %v1251
        %v1283 = vpop.permute.xlu0 %1282
        %v1285 = vmul.f32 %v491, %v1283
        %v1286 = vmul.f32 %v492, %v1283
        %v1287 = vsub.f32 1.0, %v1251
        %1289 = vset.pattern.permute.xlu0 0
        %1290 = vperm.xlu0 %1289, %v1287
        %v1291 = vpop.permute.xlu0 %1290
        %v1293 = vmul.f32 %v1274, %v1291
        %v1294 = vmul.f32 %v1275, %v1291
        %v1295 = vadd.f32 %v1285, %v1293
        %v1296 = vadd.f32 %v1286, %v1294
        %1297 = vst [vmem:[%s485] sm:$0xff] %v1295
        %1298 = vst.msk [vmem:[%s485 + $0x8] sm:$0xff] %vm1062, %v1296
        %1299 = vset.pattern.permute.xlu0 2
        %1300 = vperm.xlu0 %1299, %v1251
        %v1301 = vpop.permute.xlu0 %1300
        %v1303 = vmul.f32 %v493, %v1301
        %1304 = vset.pattern.permute.xlu0 2
        %1305 = vperm.xlu0 %1304, %v1287
        %v1306 = vpop.permute.xlu0 %1305
        %v1308 = vmul.f32 %v1279, %v1306
        %v1309 = vadd.f32 %v1303, %v1308
        %1310 = vst.msk [vmem:[%s489] sm:$0xff] %vm1073, %v1309
        %p1311 = scmp.lt.s32.totalorder %s25, 1
        %s1312 = scalar_select %p1311, %s25, 1
        %s1313 = smul.addr %s1312, 2
        %s1314 = smul.addr %s1313, 8
        %s1315 = scalar_lea.vmem %s11, %s1314
        %p1316 = scmp.lt.s32.totalorder %s25, 1
        %s1317 = scalar_select %p1316, %s25, 1
        %s1318 = smul.addr %s1317, 8
        %s1319 = scalar_lea.vmem %s12, %s1318
        // Predicated region
        $region69: #{context_block_forward.3} parent=63 // pred_check
          %p1320 = pneg %p294
        $region70: #{context_block_forward.3} parent=63 // pred_check_branch
          %1322 = sbr.rel (%p1320) target = $region72
        $region71: #{context_block_forward.3} parent=63 // pred_region
          _
        $region72: #{context_block_forward.3} parent=63 // pred_fallthru
          _
        // Predicated region
        $region73: #{context_block_forward.3} parent=63 // pred_check
          %p1323 = pneg %p320
        $region74: #{context_block_forward.3} parent=63 // pred_check_branch
          %1325 = sbr.rel (%p1323) target = $region76
        $region75: #{context_block_forward.3} parent=63 // pred_region
          _
        $region76: #{context_block_forward.3} parent=63 // pred_fallthru
          _
      $region64: #{context_block_forward.3} parent=5 // pred_fallthru
        _
      %p1326 = scmp.le.s32.totalorder 2, %s20
      // Predicated region
      $region77: #{context_block_forward.3} parent=5 // pred_check
        %p1327 = pneg %p1326
      $region78: #{context_block_forward.3} parent=5 // pred_check_branch
        %1329 = sbr.rel (%p1327) target = $region80
      $region79: #{context_block_forward.3} parent=5 // pred_region
        %s1330 = ssub.s32 %s20, 2
        // Predicated region
        $region81: #{context_block_forward.3} parent=79 // pred_check
          %p1331 = pneg %p300
        $region82: #{context_block_forward.3} parent=79 // pred_check_branch
          %1333 = sbr.rel (%p1331) target = $region84
        $region83: #{context_block_forward.3} parent=79 // pred_region
          %p1334 = scmp.lt.s32.totalorder %s26, 1
          %s1335 = scalar_select %p1334, %s26, 1
          %s1336 = smul.addr %s1335, 2
          %s1337 = smul.addr %s1336, 8
          %s1338 = scalar_lea.vmem %s11, %s1337
        $region84: #{context_block_forward.3} parent=79 // pred_fallthru
          _
        // Predicated region
        $region85: #{context_block_forward.3} parent=79 // pred_check
          %p1339 = pneg %p326
        $region86: #{context_block_forward.3} parent=79 // pred_check_branch
          %1341 = sbr.rel (%p1339) target = $region88
        $region87: #{context_block_forward.3} parent=79 // pred_region
          %p1342 = scmp.lt.s32.totalorder %s26, 1
          %s1343 = scalar_select %p1342, %s26, 1
          %s1344 = smul.addr %s1343, 8
          %s1345 = scalar_lea.vmem %s12, %s1344
        $region88: #{context_block_forward.3} parent=79 // pred_fallthru
          _
      $region80: #{context_block_forward.3} parent=5 // pred_fallthru
        _
    $region6: #{context_block_forward.3} parent=1 // loop_footer
      %s24 = sadd.s32 1, %s20
    $region7: #{context_block_forward.3} parent=1 // loop_footer_branch
      %19 = sbr.rel target = $region3
    $region8: #{context_block_forward.3} parent=1 // loop_exit
      _
    %1346 = vsyncpa [#allocation3], 1
    %s1347 = scalar_lea.sflag [#allocation3], 1
    %1348 = vsyncpa %s1347, 1

// kernel: context_block_forward.2
$region0: #{context_block_forward.2}
  #allocation0 [shape = 'u32[]', space=smem, size = 0x4, offset = 0x4, fixed_abs, tag = 'smem constant byte address 0x4 - core index']
  #allocation1 [shape = 'u32[144,128]{1,0:T(1,128)}', space=vmem, size = 0x12000, scoped, tag = 'internal scratch']
  #allocation2 [shape = 'f32[1,1]{1,0:T(1,128)S(1)}', space=vmem, size = 0x200, scoped, tag = 'scoped memory for context_block_forward.2']
  %s0 = inlined_call_operand.vmem [shape: f32[2,4000], index: 0, kind: input, shape index: {}]
  %s1 = inlined_call_operand.vmem [shape: bf16[4000,128], index: 1, kind: input, shape index: {}]
  %s2 = inlined_call_operand.vmem [shape: f32[1,128], index: 2, kind: input, shape index: {}, may-alias: {2,4}]
  %s3 = inlined_call_operand.vmem [shape: f32[1,128], index: 3, kind: input, shape index: {}]
  %s4 = inlined_call_operand.vmem [shape: f32[1,128], index: 4, kind: input, shape index: {}, may-alias: {2,4}]
  %s5 = inlined_call_operand.vmem [shape: f32[128,1], index: 5, kind: input, shape index: {}]
  %s6 = inlined_call_operand.<no memory space> [shape: f32[1,1], index: 6, kind: input, shape index: {}]
  %s7 = inlined_call_operand.vmem [shape: f32[2,1], index: 7, kind: output, shape index: {}]
  %s8 = sld [smem:[#allocation0]]
  $region38: #{context_block_forward.2} parent=0
    _
  %s10 = ssub.s32 1, %s8
  %s11 = scalar_select 0, %s10, %s8
  %v12 = vstv %s6
  %13 = vst [vmem:[#allocation2] sm:$0x1] %v12
  // Predicated region
  $region2: #{context_block_forward.2} parent=0 // pred_check
    _
  $region3: #{context_block_forward.2} parent=0 // pred_check_branch
    %15 = sbr.rel (0) target = $region5
  $region4: #{context_block_forward.2} parent=0 // pred_region
    _
  $region5: #{context_block_forward.2} parent=0 // pred_fallthru
    _
  // Predicated region
  $region6: #{context_block_forward.2} parent=0 // pred_check
    _
  $region7: #{context_block_forward.2} parent=0 // pred_check_branch
    %17 = sbr.rel (0) target = $region9
  $region8: #{context_block_forward.2} parent=0 // pred_region
    _
  $region9: #{context_block_forward.2} parent=0 // pred_fallthru
    _
  // Predicated region
  $region10: #{context_block_forward.2} parent=0 // pred_check
    _
  $region11: #{context_block_forward.2} parent=0 // pred_check_branch
    %19 = sbr.rel (0) target = $region13
  $region12: #{context_block_forward.2} parent=0 // pred_region
    _
  $region13: #{context_block_forward.2} parent=0 // pred_fallthru
    _
  // Predicated region
  $region14: #{context_block_forward.2} parent=0 // pred_check
    _
  $region15: #{context_block_forward.2} parent=0 // pred_check_branch
    %21 = sbr.rel (0) target = $region17
  $region16: #{context_block_forward.2} parent=0 // pred_region
    _
  $region17: #{context_block_forward.2} parent=0 // pred_fallthru
    _
  // Predicated region
  $region18: #{context_block_forward.2} parent=0 // pred_check
    _
  $region19: #{context_block_forward.2} parent=0 // pred_check_branch
    %23 = sbr.rel (0) target = $region21
  $region20: #{context_block_forward.2} parent=0 // pred_region
    _
  $region21: #{context_block_forward.2} parent=0 // pred_fallthru
    _
  // Predicated region
  $region22: #{context_block_forward.2} parent=0 // pred_check
    _
  $region23: #{context_block_forward.2} parent=0 // pred_check_branch
    %25 = sbr.rel (0) target = $region25
  $region24: #{context_block_forward.2} parent=0 // pred_region
    _
  $region25: #{context_block_forward.2} parent=0 // pred_fallthru
    _
  // Predicated region
  $region26: #{context_block_forward.2} parent=0 // pred_check
    _
  $region27: #{context_block_forward.2} parent=0 // pred_check_branch
    %27 = sbr.rel (0) target = $region29
  $region28: #{context_block_forward.2} parent=0 // pred_region
    _
  $region29: #{context_block_forward.2} parent=0 // pred_fallthru
    _
  %v29 = vld [vmem:[%s0] sm:$0xff]
  %v30 = vld [vmem:[%s0 + $0x8] sm:$0xff]
  %v31 = vld [vmem:[%s0 + $0x10] sm:$0xff]
  %v32 = vld [vmem:[%s0 + $0x18] sm:$0xff]
  %v33 = vld [vmem:[%s0 + $0x20] sm:$0xff]
  %v34 = vld [vmem:[%s0 + $0x28] sm:$0xff]
  %v35 = vld [vmem:[%s0 + $0x30] sm:$0xff]
  %v36 = vld [vmem:[%s0 + $0x38] sm:$0xff]
  %v45 = vcombine.high %v29, %v29
  %v47 = vunpack.c.l.s4 1983009808
  %v48 = vunpack.c.0.s8 %v47
  %v49 = vlaneseq
  %v50 = vshrl.u32 %v49, 7
  %v51 = vsub.s32 %v48, %v50
  %v52 = vrot.slane %v29, %v51
  %v54 = vunpack.c.l.s4 1983009808
  %v55 = vunpack.c.0.s8 %v54
  %v56 = vlaneseq
  %v57 = vshrl.u32 %v56, 7
  %v58 = vsub.s32 %v55, %v57
  %v59 = vrot.slane %v45, %v58
  %v60 = vcombine.high %v52, %v52
  %v61 = vcombine.high %v59, %v59
  %v62 = vcombine.high %v30, %v30
  %v64 = vunpack.c.l.s4 1983009808
  %v65 = vunpack.c.0.s8 %v64
  %v66 = vlaneseq
  %v67 = vshrl.u32 %v66, 7
  %v68 = vsub.s32 %v65, %v67
  %v69 = vrot.slane %v30, %v68
  %v71 = vunpack.c.l.s4 1983009808
  %v72 = vunpack.c.0.s8 %v71
  %v73 = vlaneseq
  %v74 = vshrl.u32 %v73, 7
  %v75 = vsub.s32 %v72, %v74
  %v76 = vrot.slane %v62, %v75
  %v77 = vcombine.high %v69, %v69
  %v78 = vcombine.high %v76, %v76
  %v79 = vcombine.high %v31, %v31
  %v81 = vunpack.c.l.s4 1983009808
  %v82 = vunpack.c.0.s8 %v81
  %v83 = vlaneseq
  %v84 = vshrl.u32 %v83, 7
  %v85 = vsub.s32 %v82, %v84
  %v86 = vrot.slane %v31, %v85
  %v88 = vunpack.c.l.s4 1983009808
  %v89 = vunpack.c.0.s8 %v88
  %v90 = vlaneseq
  %v91 = vshrl.u32 %v90, 7
  %v92 = vsub.s32 %v89, %v91
  %v93 = vrot.slane %v79, %v92
  %v94 = vcombine.high %v86, %v86
  %v95 = vcombine.high %v93, %v93
  %v96 = vcombine.high %v32, %v32
  %v98 = vunpack.c.l.s4 1983009808
  %v99 = vunpack.c.0.s8 %v98
  %v100 = vlaneseq
  %v101 = vshrl.u32 %v100, 7
  %v102 = vsub.s32 %v99, %v101
  %v103 = vrot.slane %v32, %v102
  %v105 = vunpack.c.l.s4 1983009808
  %v106 = vunpack.c.0.s8 %v105
  %v107 = vlaneseq
  %v108 = vshrl.u32 %v107, 7
  %v109 = vsub.s32 %v106, %v108
  %v110 = vrot.slane %v96, %v109
  %v111 = vcombine.high %v103, %v103
  %v112 = vcombine.high %v110, %v110
  %v113 = vcombine.high %v33, %v33
  %v115 = vunpack.c.l.s4 1983009808
  %v116 = vunpack.c.0.s8 %v115
  %v117 = vlaneseq
  %v118 = vshrl.u32 %v117, 7
  %v119 = vsub.s32 %v116, %v118
  %v120 = vrot.slane %v33, %v119
  %v122 = vunpack.c.l.s4 1983009808
  %v123 = vunpack.c.0.s8 %v122
  %v124 = vlaneseq
  %v125 = vshrl.u32 %v124, 7
  %v126 = vsub.s32 %v123, %v125
  %v127 = vrot.slane %v113, %v126
  %v128 = vcombine.high %v120, %v120
  %v129 = vcombine.high %v127, %v127
  %v130 = vcombine.high %v34, %v34
  %v132 = vunpack.c.l.s4 1983009808
  %v133 = vunpack.c.0.s8 %v132
  %v134 = vlaneseq
  %v135 = vshrl.u32 %v134, 7
  %v136 = vsub.s32 %v133, %v135
  %v137 = vrot.slane %v34, %v136
  %v139 = vunpack.c.l.s4 1983009808
  %v140 = vunpack.c.0.s8 %v139
  %v141 = vlaneseq
  %v142 = vshrl.u32 %v141, 7
  %v143 = vsub.s32 %v140, %v142
  %v144 = vrot.slane %v130, %v143
  %v145 = vcombine.high %v137, %v137
  %v146 = vcombine.high %v144, %v144
  %v147 = vcombine.high %v35, %v35
  %v149 = vunpack.c.l.s4 1983009808
  %v150 = vunpack.c.0.s8 %v149
  %v151 = vlaneseq
  %v152 = vshrl.u32 %v151, 7
  %v153 = vsub.s32 %v150, %v152
  %v154 = vrot.slane %v35, %v153
  %v156 = vunpack.c.l.s4 1983009808
  %v157 = vunpack.c.0.s8 %v156
  %v158 = vlaneseq
  %v159 = vshrl.u32 %v158, 7
  %v160 = vsub.s32 %v157, %v159
  %v161 = vrot.slane %v147, %v160
  %v162 = vcombine.high %v154, %v154
  %v163 = vcombine.high %v161, %v161
  %v164 = vcombine.high %v36, %v36
  %v166 = vunpack.c.l.s4 1983009808
  %v167 = vunpack.c.0.s8 %v166
  %v168 = vlaneseq
  %v169 = vshrl.u32 %v168, 7
  %v170 = vsub.s32 %v167, %v169
  %v171 = vrot.slane %v36, %v170
  %v173 = vunpack.c.l.s4 1983009808
  %v174 = vunpack.c.0.s8 %v173
  %v175 = vlaneseq
  %v176 = vshrl.u32 %v175, 7
  %v177 = vsub.s32 %v174, %v176
  %v178 = vrot.slane %v164, %v177
  %v179 = vcombine.high %v171, %v171
  %v180 = vcombine.high %v178, %v178
  %v213 = vpack.c.bf16 %v52, %v52
  %v214 = vpack.c.bf16 %v60, %v60
  %v215 = vpack.c.bf16 %v59, %v59
  %v216 = vpack.c.bf16 %v61, %v61
  %v217 = vpack.c.bf16 %v69, %v69
  %v218 = vpack.c.bf16 %v77, %v77
  %v219 = vpack.c.bf16 %v76, %v76
  %v220 = vpack.c.bf16 %v78, %v78
  %v221 = vpack.c.bf16 %v86, %v86
  %v222 = vpack.c.bf16 %v94, %v94
  %v223 = vpack.c.bf16 %v93, %v93
  %v224 = vpack.c.bf16 %v95, %v95
  %v225 = vpack.c.bf16 %v103, %v103
  %v226 = vpack.c.bf16 %v111, %v111
  %v227 = vpack.c.bf16 %v110, %v110
  %v228 = vpack.c.bf16 %v112, %v112
  %v229 = vpack.c.bf16 %v120, %v120
  %v230 = vpack.c.bf16 %v128, %v128
  %v231 = vpack.c.bf16 %v127, %v127
  %v232 = vpack.c.bf16 %v129, %v129
  %v233 = vpack.c.bf16 %v137, %v137
  %v234 = vpack.c.bf16 %v145, %v145
  %v235 = vpack.c.bf16 %v144, %v144
  %v236 = vpack.c.bf16 %v146, %v146
  %v237 = vpack.c.bf16 %v154, %v154
  %v238 = vpack.c.bf16 %v162, %v162
  %v239 = vpack.c.bf16 %v161, %v161
  %v240 = vpack.c.bf16 %v163, %v163
  %v241 = vpack.c.bf16 %v171, %v171
  %v242 = vpack.c.bf16 %v179, %v179
  %v243 = vpack.c.bf16 %v178, %v178
  %v244 = vpack.c.bf16 %v180, %v180
  %v245 = vld [vmem:[%s1] sm:$0xf]
  %v246 = vld [vmem:[%s1 + $0x4] sm:$0xf]
  %v247 = vld [vmem:[%s1 + $0x8] sm:$0xf]
  %v248 = vld [vmem:[%s1 + $0xc] sm:$0xf]
  %v249 = vld [vmem:[%s1 + $0x10] sm:$0xf]
  %v250 = vld [vmem:[%s1 + $0x14] sm:$0xf]
  %v251 = vld [vmem:[%s1 + $0x18] sm:$0xf]
  %v252 = vld [vmem:[%s1 + $0x1c] sm:$0xf]
  %v253 = vld [vmem:[%s1 + $0x20] sm:$0xf]
  %v254 = vld [vmem:[%s1 + $0x24] sm:$0xf]
  %v255 = vld [vmem:[%s1 + $0x28] sm:$0xf]
  %v256 = vld [vmem:[%s1 + $0x2c] sm:$0xf]
  %v257 = vld [vmem:[%s1 + $0x30] sm:$0xf]
  %v258 = vld [vmem:[%s1 + $0x34] sm:$0xf]
  %v259 = vld [vmem:[%s1 + $0x38] sm:$0xf]
  %v260 = vld [vmem:[%s1 + $0x3c] sm:$0xf]
  %v261 = vld [vmem:[%s1 + $0x40] sm:$0xf]
  %v262 = vld [vmem:[%s1 + $0x44] sm:$0xf]
  %v263 = vld [vmem:[%s1 + $0x48] sm:$0xf]
  %v264 = vld [vmem:[%s1 + $0x4c] sm:$0xf]
  %v265 = vld [vmem:[%s1 + $0x50] sm:$0xf]
  %v266 = vld [vmem:[%s1 + $0x54] sm:$0xf]
  %v267 = vld [vmem:[%s1 + $0x58] sm:$0xf]
  %v268 = vld [vmem:[%s1 + $0x5c] sm:$0xf]
  %v269 = vld [vmem:[%s1 + $0x60] sm:$0xf]
  %v270 = vld [vmem:[%s1 + $0x64] sm:$0xf]
  %v271 = vld [vmem:[%s1 + $0x68] sm:$0xf]
  %v272 = vld [vmem:[%s1 + $0x6c] sm:$0xf]
  %v273 = vld [vmem:[%s1 + $0x70] sm:$0xf]
  %v274 = vld [vmem:[%s1 + $0x74] sm:$0xf]
  %v275 = vld [vmem:[%s1 + $0x78] sm:$0xf]
  %v276 = vld [vmem:[%s1 + $0x7c] sm:$0xf]
  %v277 = vld [vmem:[%s1 + $0x80] sm:$0xf]
  %v278 = vld [vmem:[%s1 + $0x84] sm:$0xf]
  %v279 = vld [vmem:[%s1 + $0x88] sm:$0xf]
  %v280 = vld [vmem:[%s1 + $0x8c] sm:$0xf]
  %v281 = vld [vmem:[%s1 + $0x90] sm:$0xf]
  %v282 = vld [vmem:[%s1 + $0x94] sm:$0xf]
  %v283 = vld [vmem:[%s1 + $0x98] sm:$0xf]
  %v284 = vld [vmem:[%s1 + $0x9c] sm:$0xf]
  %v285 = vld [vmem:[%s1 + $0xa0] sm:$0xf]
  %v286 = vld [vmem:[%s1 + $0xa4] sm:$0xf]
  %v287 = vld [vmem:[%s1 + $0xa8] sm:$0xf]
  %v288 = vld [vmem:[%s1 + $0xac] sm:$0xf]
  %v289 = vld [vmem:[%s1 + $0xb0] sm:$0xf]
  %v290 = vld [vmem:[%s1 + $0xb4] sm:$0xf]
  %v291 = vld [vmem:[%s1 + $0xb8] sm:$0xf]
  %v292 = vld [vmem:[%s1 + $0xbc] sm:$0xf]
  %v293 = vld [vmem:[%s1 + $0xc0] sm:$0xf]
  %v294 = vld [vmem:[%s1 + $0xc4] sm:$0xf]
  %v295 = vld [vmem:[%s1 + $0xc8] sm:$0xf]
  %v296 = vld [vmem:[%s1 + $0xcc] sm:$0xf]
  %v297 = vld [vmem:[%s1 + $0xd0] sm:$0xf]
  %v298 = vld [vmem:[%s1 + $0xd4] sm:$0xf]
  %v299 = vld [vmem:[%s1 + $0xd8] sm:$0xf]
  %v300 = vld [vmem:[%s1 + $0xdc] sm:$0xf]
  %v301 = vld [vmem:[%s1 + $0xe0] sm:$0xf]
  %v302 = vld [vmem:[%s1 + $0xe4] sm:$0xf]
  %v303 = vld [vmem:[%s1 + $0xe8] sm:$0xf]
  %v304 = vld [vmem:[%s1 + $0xec] sm:$0xf]
  %v305 = vld [vmem:[%s1 + $0xf0] sm:$0xf]
  %v306 = vld [vmem:[%s1 + $0xf4] sm:$0xf]
  %v307 = vld [vmem:[%s1 + $0xf8] sm:$0xf]
  %v308 = vld [vmem:[%s1 + $0xfc] sm:$0xf]
  %v309 = vld [vmem:[%s1 + $0x100] sm:$0xf]
  %v310 = vld [vmem:[%s1 + $0x104] sm:$0xf]
  %v311 = vld [vmem:[%s1 + $0x108] sm:$0xf]
  %v312 = vld [vmem:[%s1 + $0x10c] sm:$0xf]
  %v313 = vld [vmem:[%s1 + $0x110] sm:$0xf]
  %v314 = vld [vmem:[%s1 + $0x114] sm:$0xf]
  %v315 = vld [vmem:[%s1 + $0x118] sm:$0xf]
  %v316 = vld [vmem:[%s1 + $0x11c] sm:$0xf]
  %v317 = vld [vmem:[%s1 + $0x120] sm:$0xf]
  %v318 = vld [vmem:[%s1 + $0x124] sm:$0xf]
  %v319 = vld [vmem:[%s1 + $0x128] sm:$0xf]
  %v320 = vld [vmem:[%s1 + $0x12c] sm:$0xf]
  %v321 = vld [vmem:[%s1 + $0x130] sm:$0xf]
  %v322 = vld [vmem:[%s1 + $0x134] sm:$0xf]
  %v323 = vld [vmem:[%s1 + $0x138] sm:$0xf]
  %v324 = vld [vmem:[%s1 + $0x13c] sm:$0xf]
  %v325 = vld [vmem:[%s1 + $0x140] sm:$0xf]
  %v326 = vld [vmem:[%s1 + $0x144] sm:$0xf]
  %v327 = vld [vmem:[%s1 + $0x148] sm:$0xf]
  %v328 = vld [vmem:[%s1 + $0x14c] sm:$0xf]
  %v329 = vld [vmem:[%s1 + $0x150] sm:$0xf]
  %v330 = vld [vmem:[%s1 + $0x154] sm:$0xf]
  %v331 = vld [vmem:[%s1 + $0x158] sm:$0xf]
  %v332 = vld [vmem:[%s1 + $0x15c] sm:$0xf]
  %v333 = vld [vmem:[%s1 + $0x160] sm:$0xf]
  %v334 = vld [vmem:[%s1 + $0x164] sm:$0xf]
  %v335 = vld [vmem:[%s1 + $0x168] sm:$0xf]
  %v336 = vld [vmem:[%s1 + $0x16c] sm:$0xf]
  %v337 = vld [vmem:[%s1 + $0x170] sm:$0xf]
  %v338 = vld [vmem:[%s1 + $0x174] sm:$0xf]
  %v339 = vld [vmem:[%s1 + $0x178] sm:$0xf]
  %v340 = vld [vmem:[%s1 + $0x17c] sm:$0xf]
  %v341 = vld [vmem:[%s1 + $0x180] sm:$0xf]
  %v342 = vld [vmem:[%s1 + $0x184] sm:$0xf]
  %v343 = vld [vmem:[%s1 + $0x188] sm:$0xf]
  %v344 = vld [vmem:[%s1 + $0x18c] sm:$0xf]
  %v345 = vld [vmem:[%s1 + $0x190] sm:$0xf]
  %v346 = vld [vmem:[%s1 + $0x194] sm:$0xf]
  %v347 = vld [vmem:[%s1 + $0x198] sm:$0xf]
  %v348 = vld [vmem:[%s1 + $0x19c] sm:$0xf]
  %v349 = vld [vmem:[%s1 + $0x1a0] sm:$0xf]
  %v350 = vld [vmem:[%s1 + $0x1a4] sm:$0xf]
  %v351 = vld [vmem:[%s1 + $0x1a8] sm:$0xf]
  %v352 = vld [vmem:[%s1 + $0x1ac] sm:$0xf]
  %v353 = vld [vmem:[%s1 + $0x1b0] sm:$0xf]
  %v354 = vld [vmem:[%s1 + $0x1b4] sm:$0xf]
  %v355 = vld [vmem:[%s1 + $0x1b8] sm:$0xf]
  %v356 = vld [vmem:[%s1 + $0x1bc] sm:$0xf]
  %v357 = vld [vmem:[%s1 + $0x1c0] sm:$0xf]
  %v358 = vld [vmem:[%s1 + $0x1c4] sm:$0xf]
  %v359 = vld [vmem:[%s1 + $0x1c8] sm:$0xf]
  %v360 = vld [vmem:[%s1 + $0x1cc] sm:$0xf]
  %v361 = vld [vmem:[%s1 + $0x1d0] sm:$0xf]
  %v362 = vld [vmem:[%s1 + $0x1d4] sm:$0xf]
  %v363 = vld [vmem:[%s1 + $0x1d8] sm:$0xf]
  %v364 = vld [vmem:[%s1 + $0x1dc] sm:$0xf]
  %v365 = vld [vmem:[%s1 + $0x1e0] sm:$0xf]
  %v366 = vld [vmem:[%s1 + $0x1e4] sm:$0xf]
  %v367 = vld [vmem:[%s1 + $0x1e8] sm:$0xf]
  %v368 = vld [vmem:[%s1 + $0x1ec] sm:$0xf]
  %v369 = vld [vmem:[%s1 + $0x1f0] sm:$0xf]
  %v370 = vld [vmem:[%s1 + $0x1f4] sm:$0xf]
  %v371 = vld [vmem:[%s1 + $0x1f8] sm:$0xf]
  %v372 = vld [vmem:[%s1 + $0x1fc] sm:$0xf]
  %v373 = vld [vmem:[%s1 + $0x200] sm:$0xf]
  %v374 = vld [vmem:[%s1 + $0x204] sm:$0xf]
  %v375 = vld [vmem:[%s1 + $0x208] sm:$0xf]
  %v376 = vld [vmem:[%s1 + $0x20c] sm:$0xf]
  %v377 = vld [vmem:[%s1 + $0x210] sm:$0xf]
  %v378 = vld [vmem:[%s1 + $0x214] sm:$0xf]
  %v379 = vld [vmem:[%s1 + $0x218] sm:$0xf]
  %v380 = vld [vmem:[%s1 + $0x21c] sm:$0xf]
  %v381 = vld [vmem:[%s1 + $0x220] sm:$0xf]
  %v382 = vld [vmem:[%s1 + $0x224] sm:$0xf]
  %v383 = vld [vmem:[%s1 + $0x228] sm:$0xf]
  %v384 = vld [vmem:[%s1 + $0x22c] sm:$0xf]
  %v385 = vld [vmem:[%s1 + $0x230] sm:$0xf]
  %v386 = vld [vmem:[%s1 + $0x234] sm:$0xf]
  %v387 = vld [vmem:[%s1 + $0x238] sm:$0xf]
  %v388 = vld [vmem:[%s1 + $0x23c] sm:$0xf]
  %v389 = vld [vmem:[%s1 + $0x240] sm:$0xf]
  %v390 = vld [vmem:[%s1 + $0x244] sm:$0xf]
  %v391 = vld [vmem:[%s1 + $0x248] sm:$0xf]
  %v392 = vld [vmem:[%s1 + $0x24c] sm:$0xf]
  %v393 = vld [vmem:[%s1 + $0x250] sm:$0xf]
  %v394 = vld [vmem:[%s1 + $0x254] sm:$0xf]
  %v395 = vld [vmem:[%s1 + $0x258] sm:$0xf]
  %v396 = vld [vmem:[%s1 + $0x25c] sm:$0xf]
  %v397 = vld [vmem:[%s1 + $0x260] sm:$0xf]
  %v398 = vld [vmem:[%s1 + $0x264] sm:$0xf]
  %v399 = vld [vmem:[%s1 + $0x268] sm:$0xf]
  %v400 = vld [vmem:[%s1 + $0x26c] sm:$0xf]
  %v401 = vld [vmem:[%s1 + $0x270] sm:$0xf]
  %v402 = vld [vmem:[%s1 + $0x274] sm:$0xf]
  %v403 = vld [vmem:[%s1 + $0x278] sm:$0xf]
  %v404 = vld [vmem:[%s1 + $0x27c] sm:$0xf]
  %v405 = vld [vmem:[%s1 + $0x280] sm:$0xf]
  %v406 = vld [vmem:[%s1 + $0x284] sm:$0xf]
  %v407 = vld [vmem:[%s1 + $0x288] sm:$0xf]
  %v408 = vld [vmem:[%s1 + $0x28c] sm:$0xf]
  %v409 = vld [vmem:[%s1 + $0x290] sm:$0xf]
  %v410 = vld [vmem:[%s1 + $0x294] sm:$0xf]
  %v411 = vld [vmem:[%s1 + $0x298] sm:$0xf]
  %v412 = vld [vmem:[%s1 + $0x29c] sm:$0xf]
  %v413 = vld [vmem:[%s1 + $0x2a0] sm:$0xf]
  %v414 = vld [vmem:[%s1 + $0x2a4] sm:$0xf]
  %v415 = vld [vmem:[%s1 + $0x2a8] sm:$0xf]
  %v416 = vld [vmem:[%s1 + $0x2ac] sm:$0xf]
  %v417 = vld [vmem:[%s1 + $0x2b0] sm:$0xf]
  %v418 = vld [vmem:[%s1 + $0x2b4] sm:$0xf]
  %v419 = vld [vmem:[%s1 + $0x2b8] sm:$0xf]
  %v420 = vld [vmem:[%s1 + $0x2bc] sm:$0xf]
  %v421 = vld [vmem:[%s1 + $0x2c0] sm:$0xf]
  %v422 = vld [vmem:[%s1 + $0x2c4] sm:$0xf]
  %v423 = vld [vmem:[%s1 + $0x2c8] sm:$0xf]
  %v424 = vld [vmem:[%s1 + $0x2cc] sm:$0xf]
  %v425 = vld [vmem:[%s1 + $0x2d0] sm:$0xf]
  %v426 = vld [vmem:[%s1 + $0x2d4] sm:$0xf]
  %v427 = vld [vmem:[%s1 + $0x2d8] sm:$0xf]
  %v428 = vld [vmem:[%s1 + $0x2dc] sm:$0xf]
  %v429 = vld [vmem:[%s1 + $0x2e0] sm:$0xf]
  %v430 = vld [vmem:[%s1 + $0x2e4] sm:$0xf]
  %v431 = vld [vmem:[%s1 + $0x2e8] sm:$0xf]
  %v432 = vld [vmem:[%s1 + $0x2ec] sm:$0xf]
  %v433 = vld [vmem:[%s1 + $0x2f0] sm:$0xf]
  %v434 = vld [vmem:[%s1 + $0x2f4] sm:$0xf]
  %v435 = vld [vmem:[%s1 + $0x2f8] sm:$0xf]
  %v436 = vld [vmem:[%s1 + $0x2fc] sm:$0xf]
  %v437 = vld [vmem:[%s1 + $0x300] sm:$0xf]
  %v438 = vld [vmem:[%s1 + $0x304] sm:$0xf]
  %v439 = vld [vmem:[%s1 + $0x308] sm:$0xf]
  %v440 = vld [vmem:[%s1 + $0x30c] sm:$0xf]
  %v441 = vld [vmem:[%s1 + $0x310] sm:$0xf]
  %v442 = vld [vmem:[%s1 + $0x314] sm:$0xf]
  %v443 = vld [vmem:[%s1 + $0x318] sm:$0xf]
  %v444 = vld [vmem:[%s1 + $0x31c] sm:$0xf]
  %v445 = vld [vmem:[%s1 + $0x320] sm:$0xf]
  %v446 = vld [vmem:[%s1 + $0x324] sm:$0xf]
  %v447 = vld [vmem:[%s1 + $0x328] sm:$0xf]
  %v448 = vld [vmem:[%s1 + $0x32c] sm:$0xf]
  %v449 = vld [vmem:[%s1 + $0x330] sm:$0xf]
  %v450 = vld [vmem:[%s1 + $0x334] sm:$0xf]
  %v451 = vld [vmem:[%s1 + $0x338] sm:$0xf]
  %v452 = vld [vmem:[%s1 + $0x33c] sm:$0xf]
  %v453 = vld [vmem:[%s1 + $0x340] sm:$0xf]
  %v454 = vld [vmem:[%s1 + $0x344] sm:$0xf]
  %v455 = vld [vmem:[%s1 + $0x348] sm:$0xf]
  %v456 = vld [vmem:[%s1 + $0x34c] sm:$0xf]
  %v457 = vld [vmem:[%s1 + $0x350] sm:$0xf]
  %v458 = vld [vmem:[%s1 + $0x354] sm:$0xf]
  %v459 = vld [vmem:[%s1 + $0x358] sm:$0xf]
  %v460 = vld [vmem:[%s1 + $0x35c] sm:$0xf]
  %v461 = vld [vmem:[%s1 + $0x360] sm:$0xf]
  %v462 = vld [vmem:[%s1 + $0x364] sm:$0xf]
  %v463 = vld [vmem:[%s1 + $0x368] sm:$0xf]
  %v464 = vld [vmem:[%s1 + $0x36c] sm:$0xf]
  %v465 = vld [vmem:[%s1 + $0x370] sm:$0xf]
  %v466 = vld [vmem:[%s1 + $0x374] sm:$0xf]
  %v467 = vld [vmem:[%s1 + $0x378] sm:$0xf]
  %v468 = vld [vmem:[%s1 + $0x37c] sm:$0xf]
  %v469 = vld [vmem:[%s1 + $0x380] sm:$0xf]
  %v470 = vld [vmem:[%s1 + $0x384] sm:$0xf]
  %v471 = vld [vmem:[%s1 + $0x388] sm:$0xf]
  %v472 = vld [vmem:[%s1 + $0x38c] sm:$0xf]
  %v473 = vld [vmem:[%s1 + $0x390] sm:$0xf]
  %v474 = vld [vmem:[%s1 + $0x394] sm:$0xf]
  %v475 = vld [vmem:[%s1 + $0x398] sm:$0xf]
  %v476 = vld [vmem:[%s1 + $0x39c] sm:$0xf]
  %v477 = vld [vmem:[%s1 + $0x3a0] sm:$0xf]
  %v478 = vld [vmem:[%s1 + $0x3a4] sm:$0xf]
  %v479 = vld [vmem:[%s1 + $0x3a8] sm:$0xf]
  %v480 = vld [vmem:[%s1 + $0x3ac] sm:$0xf]
  %v481 = vld [vmem:[%s1 + $0x3b0] sm:$0xf]
  %v482 = vld [vmem:[%s1 + $0x3b4] sm:$0xf]
  %v483 = vld [vmem:[%s1 + $0x3b8] sm:$0xf]
  %v484 = vld [vmem:[%s1 + $0x3bc] sm:$0xf]
  %v485 = vld [vmem:[%s1 + $0x3c0] sm:$0xf]
  %v486 = vld [vmem:[%s1 + $0x3c4] sm:$0xf]
  %v487 = vld [vmem:[%s1 + $0x3c8] sm:$0xf]
  %v488 = vld [vmem:[%s1 + $0x3cc] sm:$0xf]
  %v489 = vld [vmem:[%s1 + $0x3d0] sm:$0xf]
  %v490 = vld [vmem:[%s1 + $0x3d4] sm:$0xf]
  %v491 = vld [vmem:[%s1 + $0x3d8] sm:$0xf]
  %v492 = vld [vmem:[%s1 + $0x3dc] sm:$0xf]
  %v493 = vld [vmem:[%s1 + $0x3e0] sm:$0xf]
  %v494 = vld [vmem:[%s1 + $0x3e4] sm:$0xf]
  %v495 = vld [vmem:[%s1 + $0x3e8] sm:$0xf]
  %v496 = vld [vmem:[%s1 + $0x3ec] sm:$0xf]
  %v497 = vld [vmem:[%s1 + $0x3f0] sm:$0xf]
  %v498 = vld [vmem:[%s1 + $0x3f4] sm:$0xf]
  %v499 = vld [vmem:[%s1 + $0x3f8] sm:$0xf]
  %v500 = vld [vmem:[%s1 + $0x3fc] sm:$0xf]
  %v501 = vld [vmem:[%s1 + $0x400] sm:$0xf]
  %v502 = vld [vmem:[%s1 + $0x404] sm:$0xf]
  %v503 = vld [vmem:[%s1 + $0x408] sm:$0xf]
  %v504 = vld [vmem:[%s1 + $0x40c] sm:$0xf]
  %v505 = vld [vmem:[%s1 + $0x410] sm:$0xf]
  %v506 = vld [vmem:[%s1 + $0x414] sm:$0xf]
  %v507 = vld [vmem:[%s1 + $0x418] sm:$0xf]
  %v508 = vld [vmem:[%s1 + $0x41c] sm:$0xf]
  %v509 = vld [vmem:[%s1 + $0x420] sm:$0xf]
  %v510 = vld [vmem:[%s1 + $0x424] sm:$0xf]
  %v511 = vld [vmem:[%s1 + $0x428] sm:$0xf]
  %v512 = vld [vmem:[%s1 + $0x42c] sm:$0xf]
  %v513 = vld [vmem:[%s1 + $0x430] sm:$0xf]
  %v514 = vld [vmem:[%s1 + $0x434] sm:$0xf]
  %v515 = vld [vmem:[%s1 + $0x438] sm:$0xf]
  %v516 = vld [vmem:[%s1 + $0x43c] sm:$0xf]
  %v517 = vld [vmem:[%s1 + $0x440] sm:$0xf]
  %v518 = vld [vmem:[%s1 + $0x444] sm:$0xf]
  %v519 = vld [vmem:[%s1 + $0x448] sm:$0xf]
  %v520 = vld [vmem:[%s1 + $0x44c] sm:$0xf]
  %v521 = vld [vmem:[%s1 + $0x450] sm:$0xf]
  %v522 = vld [vmem:[%s1 + $0x454] sm:$0xf]
  %v523 = vld [vmem:[%s1 + $0x458] sm:$0xf]
  %v524 = vld [vmem:[%s1 + $0x45c] sm:$0xf]
  %v525 = vld [vmem:[%s1 + $0x460] sm:$0xf]
  %v526 = vld [vmem:[%s1 + $0x464] sm:$0xf]
  %v527 = vld [vmem:[%s1 + $0x468] sm:$0xf]
  %v528 = vld [vmem:[%s1 + $0x46c] sm:$0xf]
  %v529 = vld [vmem:[%s1 + $0x470] sm:$0xf]
  %v530 = vld [vmem:[%s1 + $0x474] sm:$0xf]
  %v531 = vld [vmem:[%s1 + $0x478] sm:$0xf]
  %v532 = vld [vmem:[%s1 + $0x47c] sm:$0xf]
  %v533 = vld [vmem:[%s1 + $0x480] sm:$0xf]
  %v534 = vld [vmem:[%s1 + $0x484] sm:$0xf]
  %v535 = vld [vmem:[%s1 + $0x488] sm:$0xf]
  %v536 = vld [vmem:[%s1 + $0x48c] sm:$0xf]
  %v537 = vld [vmem:[%s1 + $0x490] sm:$0xf]
  %v538 = vld [vmem:[%s1 + $0x494] sm:$0xf]
  %v539 = vld [vmem:[%s1 + $0x498] sm:$0xf]
  %v540 = vld [vmem:[%s1 + $0x49c] sm:$0xf]
  %v541 = vld [vmem:[%s1 + $0x4a0] sm:$0xf]
  %v542 = vld [vmem:[%s1 + $0x4a4] sm:$0xf]
  %v543 = vld [vmem:[%s1 + $0x4a8] sm:$0xf]
  %v544 = vld [vmem:[%s1 + $0x4ac] sm:$0xf]
  %v545 = vld [vmem:[%s1 + $0x4b0] sm:$0xf]
  %v546 = vld [vmem:[%s1 + $0x4b4] sm:$0xf]
  %v547 = vld [vmem:[%s1 + $0x4b8] sm:$0xf]
  %v548 = vld [vmem:[%s1 + $0x4bc] sm:$0xf]
  %v549 = vld [vmem:[%s1 + $0x4c0] sm:$0xf]
  %v550 = vld [vmem:[%s1 + $0x4c4] sm:$0xf]
  %v551 = vld [vmem:[%s1 + $0x4c8] sm:$0xf]
  %v552 = vld [vmem:[%s1 + $0x4cc] sm:$0xf]
  %v553 = vld [vmem:[%s1 + $0x4d0] sm:$0xf]
  %v554 = vld [vmem:[%s1 + $0x4d4] sm:$0xf]
  %v555 = vld [vmem:[%s1 + $0x4d8] sm:$0xf]
  %v556 = vld [vmem:[%s1 + $0x4dc] sm:$0xf]
  %v557 = vld [vmem:[%s1 + $0x4e0] sm:$0xf]
  %v558 = vld [vmem:[%s1 + $0x4e4] sm:$0xf]
  %v559 = vld [vmem:[%s1 + $0x4e8] sm:$0xf]
  %v560 = vld [vmem:[%s1 + $0x4ec] sm:$0xf]
  %v561 = vld [vmem:[%s1 + $0x4f0] sm:$0xf]
  %v562 = vld [vmem:[%s1 + $0x4f4] sm:$0xf]
  %v563 = vld [vmem:[%s1 + $0x4f8] sm:$0xf]
  %v564 = vld [vmem:[%s1 + $0x4fc] sm:$0xf]
  %v565 = vld [vmem:[%s1 + $0x500] sm:$0xf]
  %v566 = vld [vmem:[%s1 + $0x504] sm:$0xf]
  %v567 = vld [vmem:[%s1 + $0x508] sm:$0xf]
  %v568 = vld [vmem:[%s1 + $0x50c] sm:$0xf]
  %v569 = vld [vmem:[%s1 + $0x510] sm:$0xf]
  %v570 = vld [vmem:[%s1 + $0x514] sm:$0xf]
  %v571 = vld [vmem:[%s1 + $0x518] sm:$0xf]
  %v572 = vld [vmem:[%s1 + $0x51c] sm:$0xf]
  %v573 = vld [vmem:[%s1 + $0x520] sm:$0xf]
  %v574 = vld [vmem:[%s1 + $0x524] sm:$0xf]
  %v575 = vld [vmem:[%s1 + $0x528] sm:$0xf]
  %v576 = vld [vmem:[%s1 + $0x52c] sm:$0xf]
  %v577 = vld [vmem:[%s1 + $0x530] sm:$0xf]
  %v578 = vld [vmem:[%s1 + $0x534] sm:$0xf]
  %v579 = vld [vmem:[%s1 + $0x538] sm:$0xf]
  %v580 = vld [vmem:[%s1 + $0x53c] sm:$0xf]
  %v581 = vld [vmem:[%s1 + $0x540] sm:$0xf]
  %v582 = vld [vmem:[%s1 + $0x544] sm:$0xf]
  %v583 = vld [vmem:[%s1 + $0x548] sm:$0xf]
  %v584 = vld [vmem:[%s1 + $0x54c] sm:$0xf]
  %v585 = vld [vmem:[%s1 + $0x550] sm:$0xf]
  %v586 = vld [vmem:[%s1 + $0x554] sm:$0xf]
  %v587 = vld [vmem:[%s1 + $0x558] sm:$0xf]
  %v588 = vld [vmem:[%s1 + $0x55c] sm:$0xf]
  %v589 = vld [vmem:[%s1 + $0x560] sm:$0xf]
  %v590 = vld [vmem:[%s1 + $0x564] sm:$0xf]
  %v591 = vld [vmem:[%s1 + $0x568] sm:$0xf]
  %v592 = vld [vmem:[%s1 + $0x56c] sm:$0xf]
  %v593 = vld [vmem:[%s1 + $0x570] sm:$0xf]
  %v594 = vld [vmem:[%s1 + $0x574] sm:$0xf]
  %v595 = vld [vmem:[%s1 + $0x578] sm:$0xf]
  %v596 = vld [vmem:[%s1 + $0x57c] sm:$0xf]
  %v597 = vld [vmem:[%s1 + $0x580] sm:$0xf]
  %v598 = vld [vmem:[%s1 + $0x584] sm:$0xf]
  %v599 = vld [vmem:[%s1 + $0x588] sm:$0xf]
  %v600 = vld [vmem:[%s1 + $0x58c] sm:$0xf]
  %v601 = vld [vmem:[%s1 + $0x590] sm:$0xf]
  %v602 = vld [vmem:[%s1 + $0x594] sm:$0xf]
  %v603 = vld [vmem:[%s1 + $0x598] sm:$0xf]
  %v604 = vld [vmem:[%s1 + $0x59c] sm:$0xf]
  %v605 = vld [vmem:[%s1 + $0x5a0] sm:$0xf]
  %v606 = vld [vmem:[%s1 + $0x5a4] sm:$0xf]
  %v607 = vld [vmem:[%s1 + $0x5a8] sm:$0xf]
  %v608 = vld [vmem:[%s1 + $0x5ac] sm:$0xf]
  %v609 = vld [vmem:[%s1 + $0x5b0] sm:$0xf]
  %v610 = vld [vmem:[%s1 + $0x5b4] sm:$0xf]
  %v611 = vld [vmem:[%s1 + $0x5b8] sm:$0xf]
  %v612 = vld [vmem:[%s1 + $0x5bc] sm:$0xf]
  %v613 = vld [vmem:[%s1 + $0x5c0] sm:$0xf]
  %v614 = vld [vmem:[%s1 + $0x5c4] sm:$0xf]
  %v615 = vld [vmem:[%s1 + $0x5c8] sm:$0xf]
  %v616 = vld [vmem:[%s1 + $0x5cc] sm:$0xf]
  %v617 = vld [vmem:[%s1 + $0x5d0] sm:$0xf]
  %v618 = vld [vmem:[%s1 + $0x5d4] sm:$0xf]
  %v619 = vld [vmem:[%s1 + $0x5d8] sm:$0xf]
  %v620 = vld [vmem:[%s1 + $0x5dc] sm:$0xf]
  %v621 = vld [vmem:[%s1 + $0x5e0] sm:$0xf]
  %v622 = vld [vmem:[%s1 + $0x5e4] sm:$0xf]
  %v623 = vld [vmem:[%s1 + $0x5e8] sm:$0xf]
  %v624 = vld [vmem:[%s1 + $0x5ec] sm:$0xf]
  %v625 = vld [vmem:[%s1 + $0x5f0] sm:$0xf]
  %v626 = vld [vmem:[%s1 + $0x5f4] sm:$0xf]
  %v627 = vld [vmem:[%s1 + $0x5f8] sm:$0xf]
  %v628 = vld [vmem:[%s1 + $0x5fc] sm:$0xf]
  %v629 = vld [vmem:[%s1 + $0x600] sm:$0xf]
  %v630 = vld [vmem:[%s1 + $0x604] sm:$0xf]
  %v631 = vld [vmem:[%s1 + $0x608] sm:$0xf]
  %v632 = vld [vmem:[%s1 + $0x60c] sm:$0xf]
  %v633 = vld [vmem:[%s1 + $0x610] sm:$0xf]
  %v634 = vld [vmem:[%s1 + $0x614] sm:$0xf]
  %v635 = vld [vmem:[%s1 + $0x618] sm:$0xf]
  %v636 = vld [vmem:[%s1 + $0x61c] sm:$0xf]
  %v637 = vld [vmem:[%s1 + $0x620] sm:$0xf]
  %v638 = vld [vmem:[%s1 + $0x624] sm:$0xf]
  %v639 = vld [vmem:[%s1 + $0x628] sm:$0xf]
  %v640 = vld [vmem:[%s1 + $0x62c] sm:$0xf]
  %v641 = vld [vmem:[%s1 + $0x630] sm:$0xf]
  %v642 = vld [vmem:[%s1 + $0x634] sm:$0xf]
  %v643 = vld [vmem:[%s1 + $0x638] sm:$0xf]
  %v644 = vld [vmem:[%s1 + $0x63c] sm:$0xf]
  %v645 = vld [vmem:[%s1 + $0x640] sm:$0xf]
  %v646 = vld [vmem:[%s1 + $0x644] sm:$0xf]
  %v647 = vld [vmem:[%s1 + $0x648] sm:$0xf]
  %v648 = vld [vmem:[%s1 + $0x64c] sm:$0xf]
  %v649 = vld [vmem:[%s1 + $0x650] sm:$0xf]
  %v650 = vld [vmem:[%s1 + $0x654] sm:$0xf]
  %v651 = vld [vmem:[%s1 + $0x658] sm:$0xf]
  %v652 = vld [vmem:[%s1 + $0x65c] sm:$0xf]
  %v653 = vld [vmem:[%s1 + $0x660] sm:$0xf]
  %v654 = vld [vmem:[%s1 + $0x664] sm:$0xf]
  %v655 = vld [vmem:[%s1 + $0x668] sm:$0xf]
  %v656 = vld [vmem:[%s1 + $0x66c] sm:$0xf]
  %v657 = vld [vmem:[%s1 + $0x670] sm:$0xf]
  %v658 = vld [vmem:[%s1 + $0x674] sm:$0xf]
  %v659 = vld [vmem:[%s1 + $0x678] sm:$0xf]
  %v660 = vld [vmem:[%s1 + $0x67c] sm:$0xf]
  %v661 = vld [vmem:[%s1 + $0x680] sm:$0xf]
  %v662 = vld [vmem:[%s1 + $0x684] sm:$0xf]
  %v663 = vld [vmem:[%s1 + $0x688] sm:$0xf]
  %v664 = vld [vmem:[%s1 + $0x68c] sm:$0xf]
  %v665 = vld [vmem:[%s1 + $0x690] sm:$0xf]
  %v666 = vld [vmem:[%s1 + $0x694] sm:$0xf]
  %v667 = vld [vmem:[%s1 + $0x698] sm:$0xf]
  %v668 = vld [vmem:[%s1 + $0x69c] sm:$0xf]
  %v669 = vld [vmem:[%s1 + $0x6a0] sm:$0xf]
  %v670 = vld [vmem:[%s1 + $0x6a4] sm:$0xf]
  %v671 = vld [vmem:[%s1 + $0x6a8] sm:$0xf]
  %v672 = vld [vmem:[%s1 + $0x6ac] sm:$0xf]
  %v673 = vld [vmem:[%s1 + $0x6b0] sm:$0xf]
  %v674 = vld [vmem:[%s1 + $0x6b4] sm:$0xf]
  %v675 = vld [vmem:[%s1 + $0x6b8] sm:$0xf]
  %v676 = vld [vmem:[%s1 + $0x6bc] sm:$0xf]
  %v677 = vld [vmem:[%s1 + $0x6c0] sm:$0xf]
  %v678 = vld [vmem:[%s1 + $0x6c4] sm:$0xf]
  %v679 = vld [vmem:[%s1 + $0x6c8] sm:$0xf]
  %v680 = vld [vmem:[%s1 + $0x6cc] sm:$0xf]
  %v681 = vld [vmem:[%s1 + $0x6d0] sm:$0xf]
  %v682 = vld [vmem:[%s1 + $0x6d4] sm:$0xf]
  %v683 = vld [vmem:[%s1 + $0x6d8] sm:$0xf]
  %v684 = vld [vmem:[%s1 + $0x6dc] sm:$0xf]
  %v685 = vld [vmem:[%s1 + $0x6e0] sm:$0xf]
  %v686 = vld [vmem:[%s1 + $0x6e4] sm:$0xf]
  %v687 = vld [vmem:[%s1 + $0x6e8] sm:$0xf]
  %v688 = vld [vmem:[%s1 + $0x6ec] sm:$0xf]
  %v689 = vld [vmem:[%s1 + $0x6f0] sm:$0xf]
  %v690 = vld [vmem:[%s1 + $0x6f4] sm:$0xf]
  %v691 = vld [vmem:[%s1 + $0x6f8] sm:$0xf]
  %v692 = vld [vmem:[%s1 + $0x6fc] sm:$0xf]
  %v693 = vld [vmem:[%s1 + $0x700] sm:$0xf]
  %v694 = vld [vmem:[%s1 + $0x704] sm:$0xf]
  %v695 = vld [vmem:[%s1 + $0x708] sm:$0xf]
  %v696 = vld [vmem:[%s1 + $0x70c] sm:$0xf]
  %v697 = vld [vmem:[%s1 + $0x710] sm:$0xf]
  %v698 = vld [vmem:[%s1 + $0x714] sm:$0xf]
  %v699 = vld [vmem:[%s1 + $0x718] sm:$0xf]
  %v700 = vld [vmem:[%s1 + $0x71c] sm:$0xf]
  %v701 = vld [vmem:[%s1 + $0x720] sm:$0xf]
  %v702 = vld [vmem:[%s1 + $0x724] sm:$0xf]
  %v703 = vld [vmem:[%s1 + $0x728] sm:$0xf]
  %v704 = vld [vmem:[%s1 + $0x72c] sm:$0xf]
  %v705 = vld [vmem:[%s1 + $0x730] sm:$0xf]
  %v706 = vld [vmem:[%s1 + $0x734] sm:$0xf]
  %v707 = vld [vmem:[%s1 + $0x738] sm:$0xf]
  %v708 = vld [vmem:[%s1 + $0x73c] sm:$0xf]
  %v709 = vld [vmem:[%s1 + $0x740] sm:$0xf]
  %v710 = vld [vmem:[%s1 + $0x744] sm:$0xf]
  %v711 = vld [vmem:[%s1 + $0x748] sm:$0xf]
  %v712 = vld [vmem:[%s1 + $0x74c] sm:$0xf]
  %v713 = vld [vmem:[%s1 + $0x750] sm:$0xf]
  %v714 = vld [vmem:[%s1 + $0x754] sm:$0xf]
  %v715 = vld [vmem:[%s1 + $0x758] sm:$0xf]
  %v716 = vld [vmem:[%s1 + $0x75c] sm:$0xf]
  %v717 = vld [vmem:[%s1 + $0x760] sm:$0xf]
  %v718 = vld [vmem:[%s1 + $0x764] sm:$0xf]
  %v719 = vld [vmem:[%s1 + $0x768] sm:$0xf]
  %v720 = vld [vmem:[%s1 + $0x76c] sm:$0xf]
  %v721 = vld [vmem:[%s1 + $0x770] sm:$0xf]
  %v722 = vld [vmem:[%s1 + $0x774] sm:$0xf]
  %v723 = vld [vmem:[%s1 + $0x778] sm:$0xf]
  %v724 = vld [vmem:[%s1 + $0x77c] sm:$0xf]
  %v725 = vld [vmem:[%s1 + $0x780] sm:$0xf]
  %v726 = vld [vmem:[%s1 + $0x784] sm:$0xf]
  %v727 = vld [vmem:[%s1 + $0x788] sm:$0xf]
  %v728 = vld [vmem:[%s1 + $0x78c] sm:$0xf]
  %v729 = vld [vmem:[%s1 + $0x790] sm:$0xf]
  %v730 = vld [vmem:[%s1 + $0x794] sm:$0xf]
  %v731 = vld [vmem:[%s1 + $0x798] sm:$0xf]
  %v732 = vld [vmem:[%s1 + $0x79c] sm:$0xf]
  %v733 = vld [vmem:[%s1 + $0x7a0] sm:$0xf]
  %v734 = vld [vmem:[%s1 + $0x7a4] sm:$0xf]
  %v735 = vld [vmem:[%s1 + $0x7a8] sm:$0xf]
  %v736 = vld [vmem:[%s1 + $0x7ac] sm:$0xf]
  %v737 = vld [vmem:[%s1 + $0x7b0] sm:$0xf]
  %v738 = vld [vmem:[%s1 + $0x7b4] sm:$0xf]
  %v739 = vld [vmem:[%s1 + $0x7b8] sm:$0xf]
  %v740 = vld [vmem:[%s1 + $0x7bc] sm:$0xf]
  %v741 = vld [vmem:[%s1 + $0x7c0] sm:$0xf]
  %v742 = vld [vmem:[%s1 + $0x7c4] sm:$0xf]
  %v743 = vld [vmem:[%s1 + $0x7c8] sm:$0xf]
  %v744 = vld [vmem:[%s1 + $0x7cc] sm:$0xf]
  %v745 = vld [vmem:[%s2] sm:$0x1]
  %v747 = vlaneseq
  %v748 = vshrl.u32 %v747, 7
  %v749 = vsub.s32 0, %v748
  %v750 = vrot.slane %v745, %v749
  %v1252 = vunpack.c.l.b16 %v245
  %v1253 = vunpack.c.l.b16 %v246
  %v1254 = vunpack.c.l.b16 %v247
  %v1255 = vunpack.c.l.b16 %v248
  %v1256 = vunpack.c.l.b16 %v249
  %v1257 = vunpack.c.l.b16 %v250
  %v1258 = vunpack.c.l.b16 %v251
  %v1259 = vunpack.c.l.b16 %v252
  %v1260 = vunpack.c.l.b16 %v253
  %v1261 = vunpack.c.l.b16 %v254
  %v1262 = vunpack.c.l.b16 %v255
  %v1263 = vunpack.c.l.b16 %v256
  %v1264 = vunpack.c.l.b16 %v257
  %v1265 = vunpack.c.l.b16 %v258
  %v1266 = vunpack.c.l.b16 %v259
  %v1267 = vunpack.c.l.b16 %v260
  %v1268 = vunpack.c.l.b16 %v261
  %v1269 = vunpack.c.l.b16 %v262
  %v1270 = vunpack.c.l.b16 %v263
  %v1271 = vunpack.c.l.b16 %v264
  %v1272 = vunpack.c.l.b16 %v265
  %v1273 = vunpack.c.l.b16 %v266
  %v1274 = vunpack.c.l.b16 %v267
  %v1275 = vunpack.c.l.b16 %v268
  %v1276 = vunpack.c.l.b16 %v269
  %v1277 = vunpack.c.l.b16 %v270
  %v1278 = vunpack.c.l.b16 %v271
  %v1279 = vunpack.c.l.b16 %v272
  %v1280 = vunpack.c.l.b16 %v273
  %v1281 = vunpack.c.l.b16 %v274
  %v1282 = vunpack.c.l.b16 %v275
  %v1283 = vunpack.c.l.b16 %v276
  %v1284 = vunpack.c.l.b16 %v277
  %v1285 = vunpack.c.l.b16 %v278
  %v1286 = vunpack.c.l.b16 %v279
  %v1287 = vunpack.c.l.b16 %v280
  %v1288 = vunpack.c.l.b16 %v281
  %v1289 = vunpack.c.l.b16 %v282
  %v1290 = vunpack.c.l.b16 %v283
  %v1291 = vunpack.c.l.b16 %v284
  %v1292 = vunpack.c.l.b16 %v285
  %v1293 = vunpack.c.l.b16 %v286
  %v1294 = vunpack.c.l.b16 %v287
  %v1295 = vunpack.c.l.b16 %v288
  %v1296 = vunpack.c.l.b16 %v289
  %v1297 = vunpack.c.l.b16 %v290
  %v1298 = vunpack.c.l.b16 %v291
  %v1299 = vunpack.c.l.b16 %v292
  %v1300 = vunpack.c.l.b16 %v293
  %v1301 = vunpack.c.l.b16 %v294
  %v1302 = vunpack.c.l.b16 %v295
  %v1303 = vunpack.c.l.b16 %v296
  %v1304 = vunpack.c.l.b16 %v297
  %v1305 = vunpack.c.l.b16 %v298
  %v1306 = vunpack.c.l.b16 %v299
  %v1307 = vunpack.c.l.b16 %v300
  %v1308 = vunpack.c.l.b16 %v301
  %v1309 = vunpack.c.l.b16 %v302
  %v1310 = vunpack.c.l.b16 %v303
  %v1311 = vunpack.c.l.b16 %v304
  %v1312 = vunpack.c.l.b16 %v305
  %v1313 = vunpack.c.l.b16 %v306
  %v1314 = vunpack.c.l.b16 %v307
  %v1315 = vunpack.c.l.b16 %v308
  %v1316 = vunpack.c.l.b16 %v309
  %v1317 = vunpack.c.l.b16 %v310
  %v1318 = vunpack.c.l.b16 %v311
  %v1319 = vunpack.c.l.b16 %v312
  %v1320 = vunpack.c.l.b16 %v313
  %v1321 = vunpack.c.l.b16 %v314
  %v1322 = vunpack.c.l.b16 %v315
  %v1323 = vunpack.c.l.b16 %v316
  %v1324 = vunpack.c.l.b16 %v317
  %v1325 = vunpack.c.l.b16 %v318
  %v1326 = vunpack.c.l.b16 %v319
  %v1327 = vunpack.c.l.b16 %v320
  %v1328 = vunpack.c.l.b16 %v321
  %v1329 = vunpack.c.l.b16 %v322
  %v1330 = vunpack.c.l.b16 %v323
  %v1331 = vunpack.c.l.b16 %v324
  %v1332 = vunpack.c.l.b16 %v325
  %v1333 = vunpack.c.l.b16 %v326
  %v1334 = vunpack.c.l.b16 %v327
  %v1335 = vunpack.c.l.b16 %v328
  %v1336 = vunpack.c.l.b16 %v329
  %v1337 = vunpack.c.l.b16 %v330
  %v1338 = vunpack.c.l.b16 %v331
  %v1339 = vunpack.c.l.b16 %v332
  %v1340 = vunpack.c.l.b16 %v333
  %v1341 = vunpack.c.l.b16 %v334
  %v1342 = vunpack.c.l.b16 %v335
  %v1343 = vunpack.c.l.b16 %v336
  %v1344 = vunpack.c.l.b16 %v337
  %v1345 = vunpack.c.l.b16 %v338
  %v1346 = vunpack.c.l.b16 %v339
  %v1347 = vunpack.c.l.b16 %v340
  %v1348 = vunpack.c.l.b16 %v341
  %v1349 = vunpack.c.l.b16 %v342
  %v1350 = vunpack.c.l.b16 %v343
  %v1351 = vunpack.c.l.b16 %v344
  %v1352 = vunpack.c.l.b16 %v345
  %v1353 = vunpack.c.l.b16 %v346
  %v1354 = vunpack.c.l.b16 %v347
  %v1355 = vunpack.c.l.b16 %v348
  %v1356 = vunpack.c.l.b16 %v349
  %v1357 = vunpack.c.l.b16 %v350
  %v1358 = vunpack.c.l.b16 %v351
  %v1359 = vunpack.c.l.b16 %v352
  %v1360 = vunpack.c.l.b16 %v353
  %v1361 = vunpack.c.l.b16 %v354
  %v1362 = vunpack.c.l.b16 %v355
  %v1363 = vunpack.c.l.b16 %v356
  %v1364 = vunpack.c.l.b16 %v357
  %v1365 = vunpack.c.l.b16 %v358
  %v1366 = vunpack.c.l.b16 %v359
  %v1367 = vunpack.c.l.b16 %v360
  %v1368 = vunpack.c.l.b16 %v361
  %v1369 = vunpack.c.l.b16 %v362
  %v1370 = vunpack.c.l.b16 %v363
  %v1371 = vunpack.c.l.b16 %v364
  %v1372 = vunpack.c.l.b16 %v365
  %v1373 = vunpack.c.l.b16 %v366
  %v1374 = vunpack.c.l.b16 %v367
  %v1375 = vunpack.c.l.b16 %v368
  %v1376 = vunpack.c.l.b16 %v369
  %v1377 = vunpack.c.l.b16 %v370
  %v1378 = vunpack.c.l.b16 %v371
  %v1379 = vunpack.c.l.b16 %v372
  %v1380 = vunpack.c.l.b16 %v373
  %v1381 = vunpack.c.l.b16 %v374
  %v1382 = vunpack.c.l.b16 %v375
  %v1383 = vunpack.c.l.b16 %v376
  %v1384 = vunpack.c.l.b16 %v377
  %v1385 = vunpack.c.l.b16 %v378
  %v1386 = vunpack.c.l.b16 %v379
  %v1387 = vunpack.c.l.b16 %v380
  %v1388 = vunpack.c.l.b16 %v381
  %v1389 = vunpack.c.l.b16 %v382
  %v1390 = vunpack.c.l.b16 %v383
  %v1391 = vunpack.c.l.b16 %v384
  %v1392 = vunpack.c.l.b16 %v385
  %v1393 = vunpack.c.l.b16 %v386
  %v1394 = vunpack.c.l.b16 %v387
  %v1395 = vunpack.c.l.b16 %v388
  %v1396 = vunpack.c.l.b16 %v389
  %v1397 = vunpack.c.l.b16 %v390
  %v1398 = vunpack.c.l.b16 %v391
  %v1399 = vunpack.c.l.b16 %v392
  %v1400 = vunpack.c.l.b16 %v393
  %v1401 = vunpack.c.l.b16 %v394
  %v1402 = vunpack.c.l.b16 %v395
  %v1403 = vunpack.c.l.b16 %v396
  %v1404 = vunpack.c.l.b16 %v397
  %v1405 = vunpack.c.l.b16 %v398
  %v1406 = vunpack.c.l.b16 %v399
  %v1407 = vunpack.c.l.b16 %v400
  %v1408 = vunpack.c.l.b16 %v401
  %v1409 = vunpack.c.l.b16 %v402
  %v1410 = vunpack.c.l.b16 %v403
  %v1411 = vunpack.c.l.b16 %v404
  %v1412 = vunpack.c.l.b16 %v405
  %v1413 = vunpack.c.l.b16 %v406
  %v1414 = vunpack.c.l.b16 %v407
  %v1415 = vunpack.c.l.b16 %v408
  %v1416 = vunpack.c.l.b16 %v409
  %v1417 = vunpack.c.l.b16 %v410
  %v1418 = vunpack.c.l.b16 %v411
  %v1419 = vunpack.c.l.b16 %v412
  %v1420 = vunpack.c.l.b16 %v413
  %v1421 = vunpack.c.l.b16 %v414
  %v1422 = vunpack.c.l.b16 %v415
  %v1423 = vunpack.c.l.b16 %v416
  %v1424 = vunpack.c.l.b16 %v417
  %v1425 = vunpack.c.l.b16 %v418
  %v1426 = vunpack.c.l.b16 %v419
  %v1427 = vunpack.c.l.b16 %v420
  %v1428 = vunpack.c.l.b16 %v421
  %v1429 = vunpack.c.l.b16 %v422
  %v1430 = vunpack.c.l.b16 %v423
  %v1431 = vunpack.c.l.b16 %v424
  %v1432 = vunpack.c.l.b16 %v425
  %v1433 = vunpack.c.l.b16 %v426
  %v1434 = vunpack.c.l.b16 %v427
  %v1435 = vunpack.c.l.b16 %v428
  %v1436 = vunpack.c.l.b16 %v429
  %v1437 = vunpack.c.l.b16 %v430
  %v1438 = vunpack.c.l.b16 %v431
  %v1439 = vunpack.c.l.b16 %v432
  %v1440 = vunpack.c.l.b16 %v433
  %v1441 = vunpack.c.l.b16 %v434
  %v1442 = vunpack.c.l.b16 %v435
  %v1443 = vunpack.c.l.b16 %v436
  %v1444 = vunpack.c.l.b16 %v437
  %v1445 = vunpack.c.l.b16 %v438
  %v1446 = vunpack.c.l.b16 %v439
  %v1447 = vunpack.c.l.b16 %v440
  %v1448 = vunpack.c.l.b16 %v441
  %v1449 = vunpack.c.l.b16 %v442
  %v1450 = vunpack.c.l.b16 %v443
  %v1451 = vunpack.c.l.b16 %v444
  %v1452 = vunpack.c.l.b16 %v445
  %v1453 = vunpack.c.l.b16 %v446
  %v1454 = vunpack.c.l.b16 %v447
  %v1455 = vunpack.c.l.b16 %v448
  %v1456 = vunpack.c.l.b16 %v449
  %v1457 = vunpack.c.l.b16 %v450
  %v1458 = vunpack.c.l.b16 %v451
  %v1459 = vunpack.c.l.b16 %v452
  %v1460 = vunpack.c.l.b16 %v453
  %v1461 = vunpack.c.l.b16 %v454
  %v1462 = vunpack.c.l.b16 %v455
  %v1463 = vunpack.c.l.b16 %v456
  %v1464 = vunpack.c.l.b16 %v457
  %v1465 = vunpack.c.l.b16 %v458
  %v1466 = vunpack.c.l.b16 %v459
  %v1467 = vunpack.c.l.b16 %v460
  %v1468 = vunpack.c.l.b16 %v461
  %v1469 = vunpack.c.l.b16 %v462
  %v1470 = vunpack.c.l.b16 %v463
  %v1471 = vunpack.c.l.b16 %v464
  %v1472 = vunpack.c.l.b16 %v465
  %v1473 = vunpack.c.l.b16 %v466
  %v1474 = vunpack.c.l.b16 %v467
  %v1475 = vunpack.c.l.b16 %v468
  %v1476 = vunpack.c.l.b16 %v469
  %v1477 = vunpack.c.l.b16 %v470
  %v1478 = vunpack.c.l.b16 %v471
  %v1479 = vunpack.c.l.b16 %v472
  %v1480 = vunpack.c.l.b16 %v473
  %v1481 = vunpack.c.l.b16 %v474
  %v1482 = vunpack.c.l.b16 %v475
  %v1483 = vunpack.c.l.b16 %v476
  %v1484 = vunpack.c.l.b16 %v477
  %v1485 = vunpack.c.l.b16 %v478
  %v1486 = vunpack.c.l.b16 %v479
  %v1487 = vunpack.c.l.b16 %v480
  %v1488 = vunpack.c.l.b16 %v481
  %v1489 = vunpack.c.l.b16 %v482
  %v1490 = vunpack.c.l.b16 %v483
  %v1491 = vunpack.c.l.b16 %v484
  %v1492 = vunpack.c.l.b16 %v485
  %v1493 = vunpack.c.l.b16 %v486
  %v1494 = vunpack.c.l.b16 %v487
  %v1495 = vunpack.c.l.b16 %v488
  %v1496 = vunpack.c.l.b16 %v489
  %v1497 = vunpack.c.l.b16 %v490
  %v1498 = vunpack.c.l.b16 %v491
  %v1499 = vunpack.c.l.b16 %v492
  %v1500 = vunpack.c.l.b16 %v493
  %v1501 = vunpack.c.l.b16 %v494
  %v1502 = vunpack.c.l.b16 %v495
  %v1503 = vunpack.c.l.b16 %v496
  %v1504 = vunpack.c.l.b16 %v497
  %v1505 = vunpack.c.l.b16 %v498
  %v1506 = vunpack.c.l.b16 %v499
  %v1507 = vunpack.c.l.b16 %v500
  %v1508 = vunpack.c.l.b16 %v501
  %v1509 = vunpack.c.l.b16 %v502
  %v1510 = vunpack.c.l.b16 %v503
  %v1511 = vunpack.c.l.b16 %v504
  %v1512 = vunpack.c.l.b16 %v505
  %v1513 = vunpack.c.l.b16 %v506
  %v1514 = vunpack.c.l.b16 %v507
  %v1515 = vunpack.c.l.b16 %v508
  %v1516 = vunpack.c.l.b16 %v509
  %v1517 = vunpack.c.l.b16 %v510
  %v1518 = vunpack.c.l.b16 %v511
  %v1519 = vunpack.c.l.b16 %v512
  %v1520 = vunpack.c.l.b16 %v513
  %v1521 = vunpack.c.l.b16 %v514
  %v1522 = vunpack.c.l.b16 %v515
  %v1523 = vunpack.c.l.b16 %v516
  %v1524 = vunpack.c.l.b16 %v517
  %v1525 = vunpack.c.l.b16 %v518
  %v1526 = vunpack.c.l.b16 %v519
  %v1527 = vunpack.c.l.b16 %v520
  %v1528 = vunpack.c.l.b16 %v521
  %v1529 = vunpack.c.l.b16 %v522
  %v1530 = vunpack.c.l.b16 %v523
  %v1531 = vunpack.c.l.b16 %v524
  %v1532 = vunpack.c.l.b16 %v525
  %v1533 = vunpack.c.l.b16 %v526
  %v1534 = vunpack.c.l.b16 %v527
  %v1535 = vunpack.c.l.b16 %v528
  %v1536 = vunpack.c.l.b16 %v529
  %v1537 = vunpack.c.l.b16 %v530
  %v1538 = vunpack.c.l.b16 %v531
  %v1539 = vunpack.c.l.b16 %v532
  %v1540 = vunpack.c.l.b16 %v533
  %v1541 = vunpack.c.l.b16 %v534
  %v1542 = vunpack.c.l.b16 %v535
  %v1543 = vunpack.c.l.b16 %v536
  %v1544 = vunpack.c.l.b16 %v537
  %v1545 = vunpack.c.l.b16 %v538
  %v1546 = vunpack.c.l.b16 %v539
  %v1547 = vunpack.c.l.b16 %v540
  %v1548 = vunpack.c.l.b16 %v541
  %v1549 = vunpack.c.l.b16 %v542
  %v1550 = vunpack.c.l.b16 %v543
  %v1551 = vunpack.c.l.b16 %v544
  %v1552 = vunpack.c.l.b16 %v545
  %v1553 = vunpack.c.l.b16 %v546
  %v1554 = vunpack.c.l.b16 %v547
  %v1555 = vunpack.c.l.b16 %v548
  %v1556 = vunpack.c.l.b16 %v549
  %v1557 = vunpack.c.l.b16 %v550
  %v1558 = vunpack.c.l.b16 %v551
  %v1559 = vunpack.c.l.b16 %v552
  %v1560 = vunpack.c.l.b16 %v553
  %v1561 = vunpack.c.l.b16 %v554
  %v1562 = vunpack.c.l.b16 %v555
  %v1563 = vunpack.c.l.b16 %v556
  %v1564 = vunpack.c.l.b16 %v557
  %v1565 = vunpack.c.l.b16 %v558
  %v1566 = vunpack.c.l.b16 %v559
  %v1567 = vunpack.c.l.b16 %v560
  %v1568 = vunpack.c.l.b16 %v561
  %v1569 = vunpack.c.l.b16 %v562
  %v1570 = vunpack.c.l.b16 %v563
  %v1571 = vunpack.c.l.b16 %v564
  %v1572 = vunpack.c.l.b16 %v565
  %v1573 = vunpack.c.l.b16 %v566
  %v1574 = vunpack.c.l.b16 %v567
  %v1575 = vunpack.c.l.b16 %v568
  %v1576 = vunpack.c.l.b16 %v569
  %v1577 = vunpack.c.l.b16 %v570
  %v1578 = vunpack.c.l.b16 %v571
  %v1579 = vunpack.c.l.b16 %v572
  %v1580 = vunpack.c.l.b16 %v573
  %v1581 = vunpack.c.l.b16 %v574
  %v1582 = vunpack.c.l.b16 %v575
  %v1583 = vunpack.c.l.b16 %v576
  %v1584 = vunpack.c.l.b16 %v577
  %v1585 = vunpack.c.l.b16 %v578
  %v1586 = vunpack.c.l.b16 %v579
  %v1587 = vunpack.c.l.b16 %v580
  %v1588 = vunpack.c.l.b16 %v581
  %v1589 = vunpack.c.l.b16 %v582
  %v1590 = vunpack.c.l.b16 %v583
  %v1591 = vunpack.c.l.b16 %v584
  %v1592 = vunpack.c.l.b16 %v585
  %v1593 = vunpack.c.l.b16 %v586
  %v1594 = vunpack.c.l.b16 %v587
  %v1595 = vunpack.c.l.b16 %v588
  %v1596 = vunpack.c.l.b16 %v589
  %v1597 = vunpack.c.l.b16 %v590
  %v1598 = vunpack.c.l.b16 %v591
  %v1599 = vunpack.c.l.b16 %v592
  %v1600 = vunpack.c.l.b16 %v593
  %v1601 = vunpack.c.l.b16 %v594
  %v1602 = vunpack.c.l.b16 %v595
  %v1603 = vunpack.c.l.b16 %v596
  %v1604 = vunpack.c.l.b16 %v597
  %v1605 = vunpack.c.l.b16 %v598
  %v1606 = vunpack.c.l.b16 %v599
  %v1607 = vunpack.c.l.b16 %v600
  %v1608 = vunpack.c.l.b16 %v601
  %v1609 = vunpack.c.l.b16 %v602
  %v1610 = vunpack.c.l.b16 %v603
  %v1611 = vunpack.c.l.b16 %v604
  %v1612 = vunpack.c.l.b16 %v605
  %v1613 = vunpack.c.l.b16 %v606
  %v1614 = vunpack.c.l.b16 %v607
  %v1615 = vunpack.c.l.b16 %v608
  %v1616 = vunpack.c.l.b16 %v609
  %v1617 = vunpack.c.l.b16 %v610
  %v1618 = vunpack.c.l.b16 %v611
  %v1619 = vunpack.c.l.b16 %v612
  %v1620 = vunpack.c.l.b16 %v613
  %v1621 = vunpack.c.l.b16 %v614
  %v1622 = vunpack.c.l.b16 %v615
  %v1623 = vunpack.c.l.b16 %v616
  %v1624 = vunpack.c.l.b16 %v617
  %v1625 = vunpack.c.l.b16 %v618
  %v1626 = vunpack.c.l.b16 %v619
  %v1627 = vunpack.c.l.b16 %v620
  %v1628 = vunpack.c.l.b16 %v621
  %v1629 = vunpack.c.l.b16 %v622
  %v1630 = vunpack.c.l.b16 %v623
  %v1631 = vunpack.c.l.b16 %v624
  %v1632 = vunpack.c.l.b16 %v625
  %v1633 = vunpack.c.l.b16 %v626
  %v1634 = vunpack.c.l.b16 %v627
  %v1635 = vunpack.c.l.b16 %v628
  %v1636 = vunpack.c.l.b16 %v629
  %v1637 = vunpack.c.l.b16 %v630
  %v1638 = vunpack.c.l.b16 %v631
  %v1639 = vunpack.c.l.b16 %v632
  %v1640 = vunpack.c.l.b16 %v633
  %v1641 = vunpack.c.l.b16 %v634
  %v1642 = vunpack.c.l.b16 %v635
  %v1643 = vunpack.c.l.b16 %v636
  %v1644 = vunpack.c.l.b16 %v637
  %v1645 = vunpack.c.l.b16 %v638
  %v1646 = vunpack.c.l.b16 %v639
  %v1647 = vunpack.c.l.b16 %v640
  %v1648 = vunpack.c.l.b16 %v641
  %v1649 = vunpack.c.l.b16 %v642
  %v1650 = vunpack.c.l.b16 %v643
  %v1651 = vunpack.c.l.b16 %v644
  %v1652 = vunpack.c.l.b16 %v645
  %v1653 = vunpack.c.l.b16 %v646
  %v1654 = vunpack.c.l.b16 %v647
  %v1655 = vunpack.c.l.b16 %v648
  %v1656 = vunpack.c.l.b16 %v649
  %v1657 = vunpack.c.l.b16 %v650
  %v1658 = vunpack.c.l.b16 %v651
  %v1659 = vunpack.c.l.b16 %v652
  %v1660 = vunpack.c.l.b16 %v653
  %v1661 = vunpack.c.l.b16 %v654
  %v1662 = vunpack.c.l.b16 %v655
  %v1663 = vunpack.c.l.b16 %v656
  %v1664 = vunpack.c.l.b16 %v657
  %v1665 = vunpack.c.l.b16 %v658
  %v1666 = vunpack.c.l.b16 %v659
  %v1667 = vunpack.c.l.b16 %v660
  %v1668 = vunpack.c.l.b16 %v661
  %v1669 = vunpack.c.l.b16 %v662
  %v1670 = vunpack.c.l.b16 %v663
  %v1671 = vunpack.c.l.b16 %v664
  %v1672 = vunpack.c.l.b16 %v665
  %v1673 = vunpack.c.l.b16 %v666
  %v1674 = vunpack.c.l.b16 %v667
  %v1675 = vunpack.c.l.b16 %v668
  %v1676 = vunpack.c.l.b16 %v669
  %v1677 = vunpack.c.l.b16 %v670
  %v1678 = vunpack.c.l.b16 %v671
  %v1679 = vunpack.c.l.b16 %v672
  %v1680 = vunpack.c.l.b16 %v673
  %v1681 = vunpack.c.l.b16 %v674
  %v1682 = vunpack.c.l.b16 %v675
  %v1683 = vunpack.c.l.b16 %v676
  %v1684 = vunpack.c.l.b16 %v677
  %v1685 = vunpack.c.l.b16 %v678
  %v1686 = vunpack.c.l.b16 %v679
  %v1687 = vunpack.c.l.b16 %v680
  %v1688 = vunpack.c.l.b16 %v681
  %v1689 = vunpack.c.l.b16 %v682
  %v1690 = vunpack.c.l.b16 %v683
  %v1691 = vunpack.c.l.b16 %v684
  %v1692 = vunpack.c.l.b16 %v685
  %v1693 = vunpack.c.l.b16 %v686
  %v1694 = vunpack.c.l.b16 %v687
  %v1695 = vunpack.c.l.b16 %v688
  %v1696 = vunpack.c.l.b16 %v689
  %v1697 = vunpack.c.l.b16 %v690
  %v1698 = vunpack.c.l.b16 %v691
  %v1699 = vunpack.c.l.b16 %v692
  %v1700 = vunpack.c.l.b16 %v693
  %v1701 = vunpack.c.l.b16 %v694
  %v1702 = vunpack.c.l.b16 %v695
  %v1703 = vunpack.c.l.b16 %v696
  %v1704 = vunpack.c.l.b16 %v697
  %v1705 = vunpack.c.l.b16 %v698
  %v1706 = vunpack.c.l.b16 %v699
  %v1707 = vunpack.c.l.b16 %v700
  %v1708 = vunpack.c.l.b16 %v701
  %v1709 = vunpack.c.l.b16 %v702
  %v1710 = vunpack.c.l.b16 %v703
  %v1711 = vunpack.c.l.b16 %v704
  %v1712 = vunpack.c.l.b16 %v705
  %v1713 = vunpack.c.l.b16 %v706
  %v1714 = vunpack.c.l.b16 %v707
  %v1715 = vunpack.c.l.b16 %v708
  %v1716 = vunpack.c.l.b16 %v709
  %v1717 = vunpack.c.l.b16 %v710
  %v1718 = vunpack.c.l.b16 %v711
  %v1719 = vunpack.c.l.b16 %v712
  %v1720 = vunpack.c.l.b16 %v713
  %v1721 = vunpack.c.l.b16 %v714
  %v1722 = vunpack.c.l.b16 %v715
  %v1723 = vunpack.c.l.b16 %v716
  %v1724 = vunpack.c.l.b16 %v717
  %v1725 = vunpack.c.l.b16 %v718
  %v1726 = vunpack.c.l.b16 %v719
  %v1727 = vunpack.c.l.b16 %v720
  %v1728 = vunpack.c.l.b16 %v721
  %v1729 = vunpack.c.l.b16 %v722
  %v1730 = vunpack.c.l.b16 %v723
  %v1731 = vunpack.c.l.b16 %v724
  %v1732 = vunpack.c.l.b16 %v725
  %v1733 = vunpack.c.l.b16 %v726
  %v1734 = vunpack.c.l.b16 %v727
  %v1735 = vunpack.c.l.b16 %v728
  %v1736 = vunpack.c.l.b16 %v729
  %v1737 = vunpack.c.l.b16 %v730
  %v1738 = vunpack.c.l.b16 %v731
  %v1739 = vunpack.c.l.b16 %v732
  %v1740 = vunpack.c.l.b16 %v733
  %v1741 = vunpack.c.l.b16 %v734
  %v1742 = vunpack.c.l.b16 %v735
  %v1743 = vunpack.c.l.b16 %v736
  %v1744 = vunpack.c.l.b16 %v737
  %v1745 = vunpack.c.l.b16 %v738
  %v1746 = vunpack.c.l.b16 %v739
  %v1747 = vunpack.c.l.b16 %v740
  %v1748 = vunpack.c.l.b16 %v741
  %v1749 = vunpack.c.l.b16 %v742
  %v1750 = vunpack.c.l.b16 %v743
  %v1751 = vunpack.c.l.b16 %v744
  %v1752 = vpack.c.b16 %v1253, %v1252
  %v1753 = vpack.c.b16 %v1255, %v1254
  %v1754 = vpack.c.b16 %v1257, %v1256
  %v1755 = vpack.c.b16 %v1259, %v1258
  %v1756 = vpack.c.b16 %v1261, %v1260
  %v1757 = vpack.c.b16 %v1263, %v1262
  %v1758 = vpack.c.b16 %v1265, %v1264
  %v1759 = vpack.c.b16 %v1267, %v1266
  %v1760 = vpack.c.b16 %v1269, %v1268
  %v1761 = vpack.c.b16 %v1271, %v1270
  %v1762 = vpack.c.b16 %v1273, %v1272
  %v1763 = vpack.c.b16 %v1275, %v1274
  %v1764 = vpack.c.b16 %v1277, %v1276
  %v1765 = vpack.c.b16 %v1279, %v1278
  %v1766 = vpack.c.b16 %v1281, %v1280
  %v1767 = vpack.c.b16 %v1283, %v1282
  %v1768 = vpack.c.b16 %v1285, %v1284
  %v1769 = vpack.c.b16 %v1287, %v1286
  %v1770 = vpack.c.b16 %v1289, %v1288
  %v1771 = vpack.c.b16 %v1291, %v1290
  %v1772 = vpack.c.b16 %v1293, %v1292
  %v1773 = vpack.c.b16 %v1295, %v1294
  %v1774 = vpack.c.b16 %v1297, %v1296
  %v1775 = vpack.c.b16 %v1299, %v1298
  %v1776 = vpack.c.b16 %v1301, %v1300
  %v1777 = vpack.c.b16 %v1303, %v1302
  %v1778 = vpack.c.b16 %v1305, %v1304
  %v1779 = vpack.c.b16 %v1307, %v1306
  %v1780 = vpack.c.b16 %v1309, %v1308
  %v1781 = vpack.c.b16 %v1311, %v1310
  %v1782 = vpack.c.b16 %v1313, %v1312
  %v1783 = vpack.c.b16 %v1315, %v1314
  %v1784 = vpack.c.b16 %v1317, %v1316
  %v1785 = vpack.c.b16 %v1319, %v1318
  %v1786 = vpack.c.b16 %v1321, %v1320
  %v1787 = vpack.c.b16 %v1323, %v1322
  %v1788 = vpack.c.b16 %v1325, %v1324
  %v1789 = vpack.c.b16 %v1327, %v1326
  %v1790 = vpack.c.b16 %v1329, %v1328
  %v1791 = vpack.c.b16 %v1331, %v1330
  %v1792 = vpack.c.b16 %v1333, %v1332
  %v1793 = vpack.c.b16 %v1335, %v1334
  %v1794 = vpack.c.b16 %v1337, %v1336
  %v1795 = vpack.c.b16 %v1339, %v1338
  %v1796 = vpack.c.b16 %v1341, %v1340
  %v1797 = vpack.c.b16 %v1343, %v1342
  %v1798 = vpack.c.b16 %v1345, %v1344
  %v1799 = vpack.c.b16 %v1347, %v1346
  %v1800 = vpack.c.b16 %v1349, %v1348
  %v1801 = vpack.c.b16 %v1351, %v1350
  %v1802 = vpack.c.b16 %v1353, %v1352
  %v1803 = vpack.c.b16 %v1355, %v1354
  %v1804 = vpack.c.b16 %v1357, %v1356
  %v1805 = vpack.c.b16 %v1359, %v1358
  %v1806 = vpack.c.b16 %v1361, %v1360
  %v1807 = vpack.c.b16 %v1363, %v1362
  %v1808 = vpack.c.b16 %v1365, %v1364
  %v1809 = vpack.c.b16 %v1367, %v1366
  %v1810 = vpack.c.b16 %v1369, %v1368
  %v1811 = vpack.c.b16 %v1371, %v1370
  %v1812 = vpack.c.b16 %v1373, %v1372
  %v1813 = vpack.c.b16 %v1375, %v1374
  %v1814 = vpack.c.b16 %v1377, %v1376
  %v1815 = vpack.c.b16 %v1379, %v1378
  %v1816 = vpack.c.b16 %v1381, %v1380
  %v1817 = vpack.c.b16 %v1383, %v1382
  %v1818 = vpack.c.b16 %v1385, %v1384
  %v1819 = vpack.c.b16 %v1387, %v1386
  %v1820 = vpack.c.b16 %v1389, %v1388
  %v1821 = vpack.c.b16 %v1391, %v1390
  %v1822 = vpack.c.b16 %v1393, %v1392
  %v1823 = vpack.c.b16 %v1395, %v1394
  %v1824 = vpack.c.b16 %v1397, %v1396
  %v1825 = vpack.c.b16 %v1399, %v1398
  %v1826 = vpack.c.b16 %v1401, %v1400
  %v1827 = vpack.c.b16 %v1403, %v1402
  %v1828 = vpack.c.b16 %v1405, %v1404
  %v1829 = vpack.c.b16 %v1407, %v1406
  %v1830 = vpack.c.b16 %v1409, %v1408
  %v1831 = vpack.c.b16 %v1411, %v1410
  %v1832 = vpack.c.b16 %v1413, %v1412
  %v1833 = vpack.c.b16 %v1415, %v1414
  %v1834 = vpack.c.b16 %v1417, %v1416
  %v1835 = vpack.c.b16 %v1419, %v1418
  %v1836 = vpack.c.b16 %v1421, %v1420
  %v1837 = vpack.c.b16 %v1423, %v1422
  %v1838 = vpack.c.b16 %v1425, %v1424
  %v1839 = vpack.c.b16 %v1427, %v1426
  %v1840 = vpack.c.b16 %v1429, %v1428
  %v1841 = vpack.c.b16 %v1431, %v1430
  %v1842 = vpack.c.b16 %v1433, %v1432
  %v1843 = vpack.c.b16 %v1435, %v1434
  %v1844 = vpack.c.b16 %v1437, %v1436
  %v1845 = vpack.c.b16 %v1439, %v1438
  %v1846 = vpack.c.b16 %v1441, %v1440
  %v1847 = vpack.c.b16 %v1443, %v1442
  %v1848 = vpack.c.b16 %v1445, %v1444
  %v1849 = vpack.c.b16 %v1447, %v1446
  %v1850 = vpack.c.b16 %v1449, %v1448
  %v1851 = vpack.c.b16 %v1451, %v1450
  %v1852 = vpack.c.b16 %v1453, %v1452
  %v1853 = vpack.c.b16 %v1455, %v1454
  %v1854 = vpack.c.b16 %v1457, %v1456
  %v1855 = vpack.c.b16 %v1459, %v1458
  %v1856 = vpack.c.b16 %v1461, %v1460
  %v1857 = vpack.c.b16 %v1463, %v1462
  %v1858 = vpack.c.b16 %v1465, %v1464
  %v1859 = vpack.c.b16 %v1467, %v1466
  %v1860 = vpack.c.b16 %v1469, %v1468
  %v1861 = vpack.c.b16 %v1471, %v1470
  %v1862 = vpack.c.b16 %v1473, %v1472
  %v1863 = vpack.c.b16 %v1475, %v1474
  %v1864 = vpack.c.b16 %v1477, %v1476
  %v1865 = vpack.c.b16 %v1479, %v1478
  %v1866 = vpack.c.b16 %v1481, %v1480
  %v1867 = vpack.c.b16 %v1483, %v1482
  %v1868 = vpack.c.b16 %v1485, %v1484
  %v1869 = vpack.c.b16 %v1487, %v1486
  %v1870 = vpack.c.b16 %v1489, %v1488
  %v1871 = vpack.c.b16 %v1491, %v1490
  %v1872 = vpack.c.b16 %v1493, %v1492
  %v1873 = vpack.c.b16 %v1495, %v1494
  %v1874 = vpack.c.b16 %v1497, %v1496
  %v1875 = vpack.c.b16 %v1499, %v1498
  %v1876 = vpack.c.b16 %v1501, %v1500
  %v1877 = vpack.c.b16 %v1503, %v1502
  %v1878 = vpack.c.b16 %v1505, %v1504
  %v1879 = vpack.c.b16 %v1507, %v1506
  %v1880 = vpack.c.b16 %v1509, %v1508
  %v1881 = vpack.c.b16 %v1511, %v1510
  %v1882 = vpack.c.b16 %v1513, %v1512
  %v1883 = vpack.c.b16 %v1515, %v1514
  %v1884 = vpack.c.b16 %v1517, %v1516
  %v1885 = vpack.c.b16 %v1519, %v1518
  %v1886 = vpack.c.b16 %v1521, %v1520
  %v1887 = vpack.c.b16 %v1523, %v1522
  %v1888 = vpack.c.b16 %v1525, %v1524
  %v1889 = vpack.c.b16 %v1527, %v1526
  %v1890 = vpack.c.b16 %v1529, %v1528
  %v1891 = vpack.c.b16 %v1531, %v1530
  %v1892 = vpack.c.b16 %v1533, %v1532
  %v1893 = vpack.c.b16 %v1535, %v1534
  %v1894 = vpack.c.b16 %v1537, %v1536
  %v1895 = vpack.c.b16 %v1539, %v1538
  %v1896 = vpack.c.b16 %v1541, %v1540
  %v1897 = vpack.c.b16 %v1543, %v1542
  %v1898 = vpack.c.b16 %v1545, %v1544
  %v1899 = vpack.c.b16 %v1547, %v1546
  %v1900 = vpack.c.b16 %v1549, %v1548
  %v1901 = vpack.c.b16 %v1551, %v1550
  %v1902 = vpack.c.b16 %v1553, %v1552
  %v1903 = vpack.c.b16 %v1555, %v1554
  %v1904 = vpack.c.b16 %v1557, %v1556
  %v1905 = vpack.c.b16 %v1559, %v1558
  %v1906 = vpack.c.b16 %v1561, %v1560
  %v1907 = vpack.c.b16 %v1563, %v1562
  %v1908 = vpack.c.b16 %v1565, %v1564
  %v1909 = vpack.c.b16 %v1567, %v1566
  %v1910 = vpack.c.b16 %v1569, %v1568
  %v1911 = vpack.c.b16 %v1571, %v1570
  %v1912 = vpack.c.b16 %v1573, %v1572
  %v1913 = vpack.c.b16 %v1575, %v1574
  %v1914 = vpack.c.b16 %v1577, %v1576
  %v1915 = vpack.c.b16 %v1579, %v1578
  %v1916 = vpack.c.b16 %v1581, %v1580
  %v1917 = vpack.c.b16 %v1583, %v1582
  %v1918 = vpack.c.b16 %v1585, %v1584
  %v1919 = vpack.c.b16 %v1587, %v1586
  %v1920 = vpack.c.b16 %v1589, %v1588
  %v1921 = vpack.c.b16 %v1591, %v1590
  %v1922 = vpack.c.b16 %v1593, %v1592
  %v1923 = vpack.c.b16 %v1595, %v1594
  %v1924 = vpack.c.b16 %v1597, %v1596
  %v1925 = vpack.c.b16 %v1599, %v1598
  %v1926 = vpack.c.b16 %v1601, %v1600
  %v1927 = vpack.c.b16 %v1603, %v1602
  %v1928 = vpack.c.b16 %v1605, %v1604
  %v1929 = vpack.c.b16 %v1607, %v1606
  %v1930 = vpack.c.b16 %v1609, %v1608
  %v1931 = vpack.c.b16 %v1611, %v1610
  %v1932 = vpack.c.b16 %v1613, %v1612
  %v1933 = vpack.c.b16 %v1615, %v1614
  %v1934 = vpack.c.b16 %v1617, %v1616
  %v1935 = vpack.c.b16 %v1619, %v1618
  %v1936 = vpack.c.b16 %v1621, %v1620
  %v1937 = vpack.c.b16 %v1623, %v1622
  %v1938 = vpack.c.b16 %v1625, %v1624
  %v1939 = vpack.c.b16 %v1627, %v1626
  %v1940 = vpack.c.b16 %v1629, %v1628
  %v1941 = vpack.c.b16 %v1631, %v1630
  %v1942 = vpack.c.b16 %v1633, %v1632
  %v1943 = vpack.c.b16 %v1635, %v1634
  %v1944 = vpack.c.b16 %v1637, %v1636
  %v1945 = vpack.c.b16 %v1639, %v1638
  %v1946 = vpack.c.b16 %v1641, %v1640
  %v1947 = vpack.c.b16 %v1643, %v1642
  %v1948 = vpack.c.b16 %v1645, %v1644
  %v1949 = vpack.c.b16 %v1647, %v1646
  %v1950 = vpack.c.b16 %v1649, %v1648
  %v1951 = vpack.c.b16 %v1651, %v1650
  %v1952 = vpack.c.b16 %v1653, %v1652
  %v1953 = vpack.c.b16 %v1655, %v1654
  %v1954 = vpack.c.b16 %v1657, %v1656
  %v1955 = vpack.c.b16 %v1659, %v1658
  %v1956 = vpack.c.b16 %v1661, %v1660
  %v1957 = vpack.c.b16 %v1663, %v1662
  %v1958 = vpack.c.b16 %v1665, %v1664
  %v1959 = vpack.c.b16 %v1667, %v1666
  %v1960 = vpack.c.b16 %v1669, %v1668
  %v1961 = vpack.c.b16 %v1671, %v1670
  %v1962 = vpack.c.b16 %v1673, %v1672
  %v1963 = vpack.c.b16 %v1675, %v1674
  %v1964 = vpack.c.b16 %v1677, %v1676
  %v1965 = vpack.c.b16 %v1679, %v1678
  %v1966 = vpack.c.b16 %v1681, %v1680
  %v1967 = vpack.c.b16 %v1683, %v1682
  %v1968 = vpack.c.b16 %v1685, %v1684
  %v1969 = vpack.c.b16 %v1687, %v1686
  %v1970 = vpack.c.b16 %v1689, %v1688
  %v1971 = vpack.c.b16 %v1691, %v1690
  %v1972 = vpack.c.b16 %v1693, %v1692
  %v1973 = vpack.c.b16 %v1695, %v1694
  %v1974 = vpack.c.b16 %v1697, %v1696
  %v1975 = vpack.c.b16 %v1699, %v1698
  %v1976 = vpack.c.b16 %v1701, %v1700
  %v1977 = vpack.c.b16 %v1703, %v1702
  %v1978 = vpack.c.b16 %v1705, %v1704
  %v1979 = vpack.c.b16 %v1707, %v1706
  %v1980 = vpack.c.b16 %v1709, %v1708
  %v1981 = vpack.c.b16 %v1711, %v1710
  %v1982 = vpack.c.b16 %v1713, %v1712
  %v1983 = vpack.c.b16 %v1715, %v1714
  %v1984 = vpack.c.b16 %v1717, %v1716
  %v1985 = vpack.c.b16 %v1719, %v1718
  %v1986 = vpack.c.b16 %v1721, %v1720
  %v1987 = vpack.c.b16 %v1723, %v1722
  %v1988 = vpack.c.b16 %v1725, %v1724
  %v1989 = vpack.c.b16 %v1727, %v1726
  %v1990 = vpack.c.b16 %v1729, %v1728
  %v1991 = vpack.c.b16 %v1731, %v1730
  %v1992 = vpack.c.b16 %v1733, %v1732
  %v1993 = vpack.c.b16 %v1735, %v1734
  %v1994 = vpack.c.b16 %v1737, %v1736
  %v1995 = vpack.c.b16 %v1739, %v1738
  %v1996 = vpack.c.b16 %v1741, %v1740
  %v1997 = vpack.c.b16 %v1743, %v1742
  %v1998 = vpack.c.b16 %v1745, %v1744
  %v1999 = vpack.c.b16 %v1747, %v1746
  %v2000 = vpack.c.b16 %v1749, %v1748
  %v2001 = vpack.c.b16 %v1751, %v1750
  %vm2252 = vcmask 261120
  %v2254 = vsel %vm2252, %v244, 0
  %2256 = vmatprep.subr.bf16.mxu0 0
  %2257 = vmatpush1.bf16.msra.mxu0 %v1752
  %2258 = vmatprep.subr.bf16.mxu0 0
  %2259 = vmatpush1.bf16.msra.mxu0 %v1753
  %2260 = vmatprep.subr.bf16.mxu0 0
  %2261 = vmatpush1.bf16.msra.mxu0 %v1754
  %2262 = vmatprep.subr.bf16.mxu0 0
  %2263 = vmatpush1.bf16.msra.mxu0 %v1755
  %2264 = vmatprep.subr.bf16.mxu0 0
  %2265 = vmatpush1.bf16.msra.mxu0 %v1756
  %2266 = vmatprep.subr.bf16.mxu0 0
  %2267 = vmatpush1.bf16.msra.mxu0 %v1757
  %2268 = vmatprep.subr.bf16.mxu0 0
  %2269 = vmatpush1.bf16.msra.mxu0 %v1758
  %2270 = vmatprep.subr.bf16.mxu0 0
  %2271 = vmatpush1.bf16.msra.mxu0 %v1759
  %2272 = vmatprep.subr.bf16.mxu0 0
  %2273 = vmatpush1.bf16.msra.mxu0 %v1760
  %2274 = vmatprep.subr.bf16.mxu0 0
  %2275 = vmatpush1.bf16.msra.mxu0 %v1761
  %2276 = vmatprep.subr.bf16.mxu0 0
  %2277 = vmatpush1.bf16.msra.mxu0 %v1762
  %2278 = vmatprep.subr.bf16.mxu0 0
  %2279 = vmatpush1.bf16.msra.mxu0 %v1763
  %2280 = vmatprep.subr.bf16.mxu0 0
  %2281 = vmatpush1.bf16.msra.mxu0 %v1764
  %2282 = vmatprep.subr.bf16.mxu0 0
  %2283 = vmatpush1.bf16.msra.mxu0 %v1765
  %2284 = vmatprep.subr.bf16.mxu0 0
  %2285 = vmatpush1.bf16.msra.mxu0 %v1766
  %2286 = vmatprep.subr.bf16.mxu0 0
  %2287 = vmatpush1.bf16.msra.mxu0 %v1767
  %2288 = vmatprep.mubr.bf16.mxu0 %v214
  %2289 = vmatmul.mubr.bf16.gmra.mrb[0].mxu0 %v213
  %v2290 = vpop.f32.mrb[0].mxu0
  %v2291 = vadd.f32 %v750, %v2290
  %v2292 = vpop.f32.mrb[0].mxu0
  %v2293 = vpop.f32.mrb[0].mxu0
  %v2294 = vpop.f32.mrb[0].mxu0
  %2295 = vdwg.mxu0
  %2296 = vmatprep.subr.bf16.mxu0 0
  %2297 = vmatpush1.bf16.msra.mxu0 %v1768
  %2298 = vmatprep.subr.bf16.mxu0 0
  %2299 = vmatpush1.bf16.msra.mxu0 %v1769
  %2300 = vmatprep.subr.bf16.mxu0 0
  %2301 = vmatpush1.bf16.msra.mxu0 %v1770
  %2302 = vmatprep.subr.bf16.mxu0 0
  %2303 = vmatpush1.bf16.msra.mxu0 %v1771
  %2304 = vmatprep.subr.bf16.mxu0 0
  %2305 = vmatpush1.bf16.msra.mxu0 %v1772
  %2306 = vmatprep.subr.bf16.mxu0 0
  %2307 = vmatpush1.bf16.msra.mxu0 %v1773
  %2308 = vmatprep.subr.bf16.mxu0 0
  %2309 = vmatpush1.bf16.msra.mxu0 %v1774
  %2310 = vmatprep.subr.bf16.mxu0 0
  %2311 = vmatpush1.bf16.msra.mxu0 %v1775
  %2312 = vmatprep.subr.bf16.mxu0 0
  %2313 = vmatpush1.bf16.msra.mxu0 %v1776
  %2314 = vmatprep.subr.bf16.mxu0 0
  %2315 = vmatpush1.bf16.msra.mxu0 %v1777
  %2316 = vmatprep.subr.bf16.mxu0 0
  %2317 = vmatpush1.bf16.msra.mxu0 %v1778
  %2318 = vmatprep.subr.bf16.mxu0 0
  %2319 = vmatpush1.bf16.msra.mxu0 %v1779
  %2320 = vmatprep.subr.bf16.mxu0 0
  %2321 = vmatpush1.bf16.msra.mxu0 %v1780
  %2322 = vmatprep.subr.bf16.mxu0 0
  %2323 = vmatpush1.bf16.msra.mxu0 %v1781
  %2324 = vmatprep.subr.bf16.mxu0 0
  %2325 = vmatpush1.bf16.msra.mxu0 %v1782
  %2326 = vmatprep.subr.bf16.mxu0 0
  %2327 = vmatpush1.bf16.msra.mxu0 %v1783
  %2328 = vmatprep.mubr.bf16.mxu0 %v216
  %2329 = vmatmul.mubr.bf16.gmra.mrb[0].mxu0 %v215
  %v2330 = vpop.f32.mrb[0].mxu0
  %v2331 = vadd.f32 %v2291, %v2330
  %v2332 = vpop.f32.mrb[0].mxu0
  %v2333 = vpop.f32.mrb[0].mxu0
  %v2334 = vpop.f32.mrb[0].mxu0
  %2335 = vdwg.mxu0
  %2336 = vmatprep.subr.bf16.mxu0 0
  %2337 = vmatpush1.bf16.msra.mxu0 %v1784
  %2338 = vmatprep.subr.bf16.mxu0 0
  %2339 = vmatpush1.bf16.msra.mxu0 %v1785
  %2340 = vmatprep.subr.bf16.mxu0 0
  %2341 = vmatpush1.bf16.msra.mxu0 %v1786
  %2342 = vmatprep.subr.bf16.mxu0 0
  %2343 = vmatpush1.bf16.msra.mxu0 %v1787
  %2344 = vmatprep.subr.bf16.mxu0 0
  %2345 = vmatpush1.bf16.msra.mxu0 %v1788
  %2346 = vmatprep.subr.bf16.mxu0 0
  %2347 = vmatpush1.bf16.msra.mxu0 %v1789
  %2348 = vmatprep.subr.bf16.mxu0 0
  %2349 = vmatpush1.bf16.msra.mxu0 %v1790
  %2350 = vmatprep.subr.bf16.mxu0 0
  %2351 = vmatpush1.bf16.msra.mxu0 %v1791
  %2352 = vmatprep.subr.bf16.mxu0 0
  %2353 = vmatpush1.bf16.msra.mxu0 %v1792
  %2354 = vmatprep.subr.bf16.mxu0 0
  %2355 = vmatpush1.bf16.msra.mxu0 %v1793
  %2356 = vmatprep.subr.bf16.mxu0 0
  %2357 = vmatpush1.bf16.msra.mxu0 %v1794
  %2358 = vmatprep.subr.bf16.mxu0 0
  %2359 = vmatpush1.bf16.msra.mxu0 %v1795
  %2360 = vmatprep.subr.bf16.mxu0 0
  %2361 = vmatpush1.bf16.msra.mxu0 %v1796
  %2362 = vmatprep.subr.bf16.mxu0 0
  %2363 = vmatpush1.bf16.msra.mxu0 %v1797
  %2364 = vmatprep.subr.bf16.mxu0 0
  %2365 = vmatpush1.bf16.msra.mxu0 %v1798
  %2366 = vmatprep.subr.bf16.mxu0 0
  %2367 = vmatpush1.bf16.msra.mxu0 %v1799
  %2368 = vmatprep.mubr.bf16.mxu0 %v218
  %2369 = vmatmul.mubr.bf16.gmra.mrb[0].mxu0 %v217
  %v2370 = vpop.f32.mrb[0].mxu0
  %v2371 = vadd.f32 %v2331, %v2370
  %v2372 = vpop.f32.mrb[0].mxu0
  %v2373 = vpop.f32.mrb[0].mxu0
  %v2374 = vpop.f32.mrb[0].mxu0
  %2375 = vdwg.mxu0
  %2376 = vmatprep.subr.bf16.mxu0 0
  %2377 = vmatpush1.bf16.msra.mxu0 %v1800
  %2378 = vmatprep.subr.bf16.mxu0 0
  %2379 = vmatpush1.bf16.msra.mxu0 %v1801
  %2380 = vmatprep.subr.bf16.mxu0 0
  %2381 = vmatpush1.bf16.msra.mxu0 %v1802
  %2382 = vmatprep.subr.bf16.mxu0 0
  %2383 = vmatpush1.bf16.msra.mxu0 %v1803
  %2384 = vmatprep.subr.bf16.mxu0 0
  %2385 = vmatpush1.bf16.msra.mxu0 %v1804
  %2386 = vmatprep.subr.bf16.mxu0 0
  %2387 = vmatpush1.bf16.msra.mxu0 %v1805
  %2388 = vmatprep.subr.bf16.mxu0 0
  %2389 = vmatpush1.bf16.msra.mxu0 %v1806
  %2390 = vmatprep.subr.bf16.mxu0 0
  %2391 = vmatpush1.bf16.msra.mxu0 %v1807
  %2392 = vmatprep.subr.bf16.mxu0 0
  %2393 = vmatpush1.bf16.msra.mxu0 %v1808
  %2394 = vmatprep.subr.bf16.mxu0 0
  %2395 = vmatpush1.bf16.msra.mxu0 %v1809
  %2396 = vmatprep.subr.bf16.mxu0 0
  %2397 = vmatpush1.bf16.msra.mxu0 %v1810
  %2398 = vmatprep.subr.bf16.mxu0 0
  %2399 = vmatpush1.bf16.msra.mxu0 %v1811
  %2400 = vmatprep.subr.bf16.mxu0 0
  %2401 = vmatpush1.bf16.msra.mxu0 %v1812
  %2402 = vmatprep.subr.bf16.mxu0 0
  %2403 = vmatpush1.bf16.msra.mxu0 %v1813
  %2404 = vmatprep.subr.bf16.mxu0 0
  %2405 = vmatpush1.bf16.msra.mxu0 %v1814
  %2406 = vmatprep.subr.bf16.mxu0 0
  %2407 = vmatpush1.bf16.msra.mxu0 %v1815
  %2408 = vmatprep.mubr.bf16.mxu0 %v220
  %2409 = vmatmul.mubr.bf16.gmra.mrb[0].mxu0 %v219
  %v2410 = vpop.f32.mrb[0].mxu0
  %v2411 = vadd.f32 %v2371, %v2410
  %v2412 = vpop.f32.mrb[0].mxu0
  %v2413 = vpop.f32.mrb[0].mxu0
  %v2414 = vpop.f32.mrb[0].mxu0
  %2415 = vdwg.mxu0
  %2416 = vmatprep.subr.bf16.mxu0 0
  %2417 = vmatpush1.bf16.msra.mxu0 %v1816
  %2418 = vmatprep.subr.bf16.mxu0 0
  %2419 = vmatpush1.bf16.msra.mxu0 %v1817
  %2420 = vmatprep.subr.bf16.mxu0 0
  %2421 = vmatpush1.bf16.msra.mxu0 %v1818
  %2422 = vmatprep.subr.bf16.mxu0 0
  %2423 = vmatpush1.bf16.msra.mxu0 %v1819
  %2424 = vmatprep.subr.bf16.mxu0 0
  %2425 = vmatpush1.bf16.msra.mxu0 %v1820
  %2426 = vmatprep.subr.bf16.mxu0 0
  %2427 = vmatpush1.bf16.msra.mxu0 %v1821
  %2428 = vmatprep.subr.bf16.mxu0 0
  %2429 = vmatpush1.bf16.msra.mxu0 %v1822
  %2430 = vmatprep.subr.bf16.mxu0 0
  %2431 = vmatpush1.bf16.msra.mxu0 %v1823
  %2432 = vmatprep.subr.bf16.mxu0 0
  %2433 = vmatpush1.bf16.msra.mxu0 %v1824
  %2434 = vmatprep.subr.bf16.mxu0 0
  %2435 = vmatpush1.bf16.msra.mxu0 %v1825
  %2436 = vmatprep.subr.bf16.mxu0 0
  %2437 = vmatpush1.bf16.msra.mxu0 %v1826
  %2438 = vmatprep.subr.bf16.mxu0 0
  %2439 = vmatpush1.bf16.msra.mxu0 %v1827
  %2440 = vmatprep.subr.bf16.mxu0 0
  %2441 = vmatpush1.bf16.msra.mxu0 %v1828
  %2442 = vmatprep.subr.bf16.mxu0 0
  %2443 = vmatpush1.bf16.msra.mxu0 %v1829
  %2444 = vmatprep.subr.bf16.mxu0 0
  %2445 = vmatpush1.bf16.msra.mxu0 %v1830
  %2446 = vmatprep.subr.bf16.mxu0 0
  %2447 = vmatpush1.bf16.msra.mxu0 %v1831
  %2448 = vmatprep.mubr.bf16.mxu0 %v222
  %2449 = vmatmul.mubr.bf16.gmra.mrb[0].mxu0 %v221
  %v2450 = vpop.f32.mrb[0].mxu0
  %v2451 = vadd.f32 %v2411, %v2450
  %v2452 = vpop.f32.mrb[0].mxu0
  %v2453 = vpop.f32.mrb[0].mxu0
  %v2454 = vpop.f32.mrb[0].mxu0
  %2455 = vdwg.mxu0
  %2456 = vmatprep.subr.bf16.mxu0 0
  %2457 = vmatpush1.bf16.msra.mxu0 %v1832
  %2458 = vmatprep.subr.bf16.mxu0 0
  %2459 = vmatpush1.bf16.msra.mxu0 %v1833
  %2460 = vmatprep.subr.bf16.mxu0 0
  %2461 = vmatpush1.bf16.msra.mxu0 %v1834
  %2462 = vmatprep.subr.bf16.mxu0 0
  %2463 = vmatpush1.bf16.msra.mxu0 %v1835
  %2464 = vmatprep.subr.bf16.mxu0 0
  %2465 = vmatpush1.bf16.msra.mxu0 %v1836
  %2466 = vmatprep.subr.bf16.mxu0 0
  %2467 = vmatpush1.bf16.msra.mxu0 %v1837
  %2468 = vmatprep.subr.bf16.mxu0 0
  %2469 = vmatpush1.bf16.msra.mxu0 %v1838
  %2470 = vmatprep.subr.bf16.mxu0 0
  %2471 = vmatpush1.bf16.msra.mxu0 %v1839
  %2472 = vmatprep.subr.bf16.mxu0 0
  %2473 = vmatpush1.bf16.msra.mxu0 %v1840
  %2474 = vmatprep.subr.bf16.mxu0 0
  %2475 = vmatpush1.bf16.msra.mxu0 %v1841
  %2476 = vmatprep.subr.bf16.mxu0 0
  %2477 = vmatpush1.bf16.msra.mxu0 %v1842
  %2478 = vmatprep.subr.bf16.mxu0 0
  %2479 = vmatpush1.bf16.msra.mxu0 %v1843
  %2480 = vmatprep.subr.bf16.mxu0 0
  %2481 = vmatpush1.bf16.msra.mxu0 %v1844
  %2482 = vmatprep.subr.bf16.mxu0 0
  %2483 = vmatpush1.bf16.msra.mxu0 %v1845
  %2484 = vmatprep.subr.bf16.mxu0 0
  %2485 = vmatpush1.bf16.msra.mxu0 %v1846
  %2486 = vmatprep.subr.bf16.mxu0 0
  %2487 = vmatpush1.bf16.msra.mxu0 %v1847
  %2488 = vmatprep.mubr.bf16.mxu0 %v224
  %2489 = vmatmul.mubr.bf16.gmra.mrb[0].mxu0 %v223
  %v2490 = vpop.f32.mrb[0].mxu0
  %v2491 = vadd.f32 %v2451, %v2490
  %v2492 = vpop.f32.mrb[0].mxu0
  %v2493 = vpop.f32.mrb[0].mxu0
  %v2494 = vpop.f32.mrb[0].mxu0
  %2495 = vdwg.mxu0
  %2496 = vmatprep.subr.bf16.mxu0 0
  %2497 = vmatpush1.bf16.msra.mxu0 %v1848
  %2498 = vmatprep.subr.bf16.mxu0 0
  %2499 = vmatpush1.bf16.msra.mxu0 %v1849
  %2500 = vmatprep.subr.bf16.mxu0 0
  %2501 = vmatpush1.bf16.msra.mxu0 %v1850
  %2502 = vmatprep.subr.bf16.mxu0 0
  %2503 = vmatpush1.bf16.msra.mxu0 %v1851
  %2504 = vmatprep.subr.bf16.mxu0 0
  %2505 = vmatpush1.bf16.msra.mxu0 %v1852
  %2506 = vmatprep.subr.bf16.mxu0 0
  %2507 = vmatpush1.bf16.msra.mxu0 %v1853
  %2508 = vmatprep.subr.bf16.mxu0 0
  %2509 = vmatpush1.bf16.msra.mxu0 %v1854
  %2510 = vmatprep.subr.bf16.mxu0 0
  %2511 = vmatpush1.bf16.msra.mxu0 %v1855
  %2512 = vmatprep.subr.bf16.mxu0 0
  %2513 = vmatpush1.bf16.msra.mxu0 %v1856
  %2514 = vmatprep.subr.bf16.mxu0 0
  %2515 = vmatpush1.bf16.msra.mxu0 %v1857
  %2516 = vmatprep.subr.bf16.mxu0 0
  %2517 = vmatpush1.bf16.msra.mxu0 %v1858
  %2518 = vmatprep.subr.bf16.mxu0 0
  %2519 = vmatpush1.bf16.msra.mxu0 %v1859
  %2520 = vmatprep.subr.bf16.mxu0 0
  %2521 = vmatpush1.bf16.msra.mxu0 %v1860
  %2522 = vmatprep.subr.bf16.mxu0 0
  %2523 = vmatpush1.bf16.msra.mxu0 %v1861
  %2524 = vmatprep.subr.bf16.mxu0 0
  %2525 = vmatpush1.bf16.msra.mxu0 %v1862
  %2526 = vmatprep.subr.bf16.mxu0 0
  %2527 = vmatpush1.bf16.msra.mxu0 %v1863
  %2528 = vmatprep.mubr.bf16.mxu0 %v226
  %2529 = vmatmul.mubr.bf16.gmra.mrb[0].mxu0 %v225
  %v2530 = vpop.f32.mrb[0].mxu0
  %v2531 = vadd.f32 %v2491, %v2530
  %v2532 = vpop.f32.mrb[0].mxu0
  %v2533 = vpop.f32.mrb[0].mxu0
  %v2534 = vpop.f32.mrb[0].mxu0
  %2535 = vdwg.mxu0
  %2536 = vmatprep.subr.bf16.mxu0 0
  %2537 = vmatpush1.bf16.msra.mxu0 %v1864
  %2538 = vmatprep.subr.bf16.mxu0 0
  %2539 = vmatpush1.bf16.msra.mxu0 %v1865
  %2540 = vmatprep.subr.bf16.mxu0 0
  %2541 = vmatpush1.bf16.msra.mxu0 %v1866
  %2542 = vmatprep.subr.bf16.mxu0 0
  %2543 = vmatpush1.bf16.msra.mxu0 %v1867
  %2544 = vmatprep.subr.bf16.mxu0 0
  %2545 = vmatpush1.bf16.msra.mxu0 %v1868
  %2546 = vmatprep.subr.bf16.mxu0 0
  %2547 = vmatpush1.bf16.msra.mxu0 %v1869
  %2548 = vmatprep.subr.bf16.mxu0 0
  %2549 = vmatpush1.bf16.msra.mxu0 %v1870
  %2550 = vmatprep.subr.bf16.mxu0 0
  %2551 = vmatpush1.bf16.msra.mxu0 %v1871
  %2552 = vmatprep.subr.bf16.mxu0 0
  %2553 = vmatpush1.bf16.msra.mxu0 %v1872
  %2554 = vmatprep.subr.bf16.mxu0 0
  %2555 = vmatpush1.bf16.msra.mxu0 %v1873
  %2556 = vmatprep.subr.bf16.mxu0 0
  %2557 = vmatpush1.bf16.msra.mxu0 %v1874
  %2558 = vmatprep.subr.bf16.mxu0 0
  %2559 = vmatpush1.bf16.msra.mxu0 %v1875
  %2560 = vmatprep.subr.bf16.mxu0 0
  %2561 = vmatpush1.bf16.msra.mxu0 %v1876
  %2562 = vmatprep.subr.bf16.mxu0 0
  %2563 = vmatpush1.bf16.msra.mxu0 %v1877
  %2564 = vmatprep.subr.bf16.mxu0 0
  %2565 = vmatpush1.bf16.msra.mxu0 %v1878
  %2566 = vmatprep.subr.bf16.mxu0 0
  %2567 = vmatpush1.bf16.msra.mxu0 %v1879
  %2568 = vmatprep.mubr.bf16.mxu0 %v228
  %2569 = vmatmul.mubr.bf16.gmra.mrb[0].mxu0 %v227
  %v2570 = vpop.f32.mrb[0].mxu0
  %v2571 = vadd.f32 %v2531, %v2570
  %v2572 = vpop.f32.mrb[0].mxu0
  %v2573 = vpop.f32.mrb[0].mxu0
  %v2574 = vpop.f32.mrb[0].mxu0
  %2575 = vdwg.mxu0
  %2576 = vmatprep.subr.bf16.mxu0 0
  %2577 = vmatpush1.bf16.msra.mxu0 %v1880
  %2578 = vmatprep.subr.bf16.mxu0 0
  %2579 = vmatpush1.bf16.msra.mxu0 %v1881
  %2580 = vmatprep.subr.bf16.mxu0 0
  %2581 = vmatpush1.bf16.msra.mxu0 %v1882
  %2582 = vmatprep.subr.bf16.mxu0 0
  %2583 = vmatpush1.bf16.msra.mxu0 %v1883
  %2584 = vmatprep.subr.bf16.mxu0 0
  %2585 = vmatpush1.bf16.msra.mxu0 %v1884
  %2586 = vmatprep.subr.bf16.mxu0 0
  %2587 = vmatpush1.bf16.msra.mxu0 %v1885
  %2588 = vmatprep.subr.bf16.mxu0 0
  %2589 = vmatpush1.bf16.msra.mxu0 %v1886
  %2590 = vmatprep.subr.bf16.mxu0 0
  %2591 = vmatpush1.bf16.msra.mxu0 %v1887
  %2592 = vmatprep.subr.bf16.mxu0 0
  %2593 = vmatpush1.bf16.msra.mxu0 %v1888
  %2594 = vmatprep.subr.bf16.mxu0 0
  %2595 = vmatpush1.bf16.msra.mxu0 %v1889
  %2596 = vmatprep.subr.bf16.mxu0 0
  %2597 = vmatpush1.bf16.msra.mxu0 %v1890
  %2598 = vmatprep.subr.bf16.mxu0 0
  %2599 = vmatpush1.bf16.msra.mxu0 %v1891
  %2600 = vmatprep.subr.bf16.mxu0 0
  %2601 = vmatpush1.bf16.msra.mxu0 %v1892
  %2602 = vmatprep.subr.bf16.mxu0 0
  %2603 = vmatpush1.bf16.msra.mxu0 %v1893
  %2604 = vmatprep.subr.bf16.mxu0 0
  %2605 = vmatpush1.bf16.msra.mxu0 %v1894
  %2606 = vmatprep.subr.bf16.mxu0 0
  %2607 = vmatpush1.bf16.msra.mxu0 %v1895
  %2608 = vmatprep.mubr.bf16.mxu0 %v230
  %2609 = vmatmul.mubr.bf16.gmra.mrb[0].mxu0 %v229
  %v2610 = vpop.f32.mrb[0].mxu0
  %v2611 = vadd.f32 %v2571, %v2610
  %v2612 = vpop.f32.mrb[0].mxu0
  %v2613 = vpop.f32.mrb[0].mxu0
  %v2614 = vpop.f32.mrb[0].mxu0
  %2615 = vdwg.mxu0
  %2616 = vmatprep.subr.bf16.mxu0 0
  %2617 = vmatpush1.bf16.msra.mxu0 %v1896
  %2618 = vmatprep.subr.bf16.mxu0 0
  %2619 = vmatpush1.bf16.msra.mxu0 %v1897
  %2620 = vmatprep.subr.bf16.mxu0 0
  %2621 = vmatpush1.bf16.msra.mxu0 %v1898
  %2622 = vmatprep.subr.bf16.mxu0 0
  %2623 = vmatpush1.bf16.msra.mxu0 %v1899
  %2624 = vmatprep.subr.bf16.mxu0 0
  %2625 = vmatpush1.bf16.msra.mxu0 %v1900
  %2626 = vmatprep.subr.bf16.mxu0 0
  %2627 = vmatpush1.bf16.msra.mxu0 %v1901
  %2628 = vmatprep.subr.bf16.mxu0 0
  %2629 = vmatpush1.bf16.msra.mxu0 %v1902
  %2630 = vmatprep.subr.bf16.mxu0 0
  %2631 = vmatpush1.bf16.msra.mxu0 %v1903
  %2632 = vmatprep.subr.bf16.mxu0 0
  %2633 = vmatpush1.bf16.msra.mxu0 %v1904
  %2634 = vmatprep.subr.bf16.mxu0 0
  %2635 = vmatpush1.bf16.msra.mxu0 %v1905
  %2636 = vmatprep.subr.bf16.mxu0 0
  %2637 = vmatpush1.bf16.msra.mxu0 %v1906
  %2638 = vmatprep.subr.bf16.mxu0 0
  %2639 = vmatpush1.bf16.msra.mxu0 %v1907
  %2640 = vmatprep.subr.bf16.mxu0 0
  %2641 = vmatpush1.bf16.msra.mxu0 %v1908
  %2642 = vmatprep.subr.bf16.mxu0 0
  %2643 = vmatpush1.bf16.msra.mxu0 %v1909
  %2644 = vmatprep.subr.bf16.mxu0 0
  %2645 = vmatpush1.bf16.msra.mxu0 %v1910
  %2646 = vmatprep.subr.bf16.mxu0 0
  %2647 = vmatpush1.bf16.msra.mxu0 %v1911
  %2648 = vmatprep.mubr.bf16.mxu0 %v232
  %2649 = vmatmul.mubr.bf16.gmra.mrb[0].mxu0 %v231
  %v2650 = vpop.f32.mrb[0].mxu0
  %v2651 = vadd.f32 %v2611, %v2650
  %v2652 = vpop.f32.mrb[0].mxu0
  %v2653 = vpop.f32.mrb[0].mxu0
  %v2654 = vpop.f32.mrb[0].mxu0
  %2655 = vdwg.mxu0
  %2656 = vmatprep.subr.bf16.mxu0 0
  %2657 = vmatpush1.bf16.msra.mxu0 %v1912
  %2658 = vmatprep.subr.bf16.mxu0 0
  %2659 = vmatpush1.bf16.msra.mxu0 %v1913
  %2660 = vmatprep.subr.bf16.mxu0 0
  %2661 = vmatpush1.bf16.msra.mxu0 %v1914
  %2662 = vmatprep.subr.bf16.mxu0 0
  %2663 = vmatpush1.bf16.msra.mxu0 %v1915
  %2664 = vmatprep.subr.bf16.mxu0 0
  %2665 = vmatpush1.bf16.msra.mxu0 %v1916
  %2666 = vmatprep.subr.bf16.mxu0 0
  %2667 = vmatpush1.bf16.msra.mxu0 %v1917
  %2668 = vmatprep.subr.bf16.mxu0 0
  %2669 = vmatpush1.bf16.msra.mxu0 %v1918
  %2670 = vmatprep.subr.bf16.mxu0 0
  %2671 = vmatpush1.bf16.msra.mxu0 %v1919
  %2672 = vmatprep.subr.bf16.mxu0 0
  %2673 = vmatpush1.bf16.msra.mxu0 %v1920
  %2674 = vmatprep.subr.bf16.mxu0 0
  %2675 = vmatpush1.bf16.msra.mxu0 %v1921
  %2676 = vmatprep.subr.bf16.mxu0 0
  %2677 = vmatpush1.bf16.msra.mxu0 %v1922
  %2678 = vmatprep.subr.bf16.mxu0 0
  %2679 = vmatpush1.bf16.msra.mxu0 %v1923
  %2680 = vmatprep.subr.bf16.mxu0 0
  %2681 = vmatpush1.bf16.msra.mxu0 %v1924
  %2682 = vmatprep.subr.bf16.mxu0 0
  %2683 = vmatpush1.bf16.msra.mxu0 %v1925
  %2684 = vmatprep.subr.bf16.mxu0 0
  %2685 = vmatpush1.bf16.msra.mxu0 %v1926
  %2686 = vmatprep.subr.bf16.mxu0 0
  %2687 = vmatpush1.bf16.msra.mxu0 %v1927
  %2688 = vmatprep.mubr.bf16.mxu0 %v234
  %2689 = vmatmul.mubr.bf16.gmra.mrb[0].mxu0 %v233
  %v2690 = vpop.f32.mrb[0].mxu0
  %v2691 = vadd.f32 %v2651, %v2690
  %v2692 = vpop.f32.mrb[0].mxu0
  %v2693 = vpop.f32.mrb[0].mxu0
  %v2694 = vpop.f32.mrb[0].mxu0
  %2695 = vdwg.mxu0
  %2696 = vmatprep.subr.bf16.mxu0 0
  %2697 = vmatpush1.bf16.msra.mxu0 %v1928
  %2698 = vmatprep.subr.bf16.mxu0 0
  %2699 = vmatpush1.bf16.msra.mxu0 %v1929
  %2700 = vmatprep.subr.bf16.mxu0 0
  %2701 = vmatpush1.bf16.msra.mxu0 %v1930
  %2702 = vmatprep.subr.bf16.mxu0 0
  %2703 = vmatpush1.bf16.msra.mxu0 %v1931
  %2704 = vmatprep.subr.bf16.mxu0 0
  %2705 = vmatpush1.bf16.msra.mxu0 %v1932
  %2706 = vmatprep.subr.bf16.mxu0 0
  %2707 = vmatpush1.bf16.msra.mxu0 %v1933
  %2708 = vmatprep.subr.bf16.mxu0 0
  %2709 = vmatpush1.bf16.msra.mxu0 %v1934
  %2710 = vmatprep.subr.bf16.mxu0 0
  %2711 = vmatpush1.bf16.msra.mxu0 %v1935
  %2712 = vmatprep.subr.bf16.mxu0 0
  %2713 = vmatpush1.bf16.msra.mxu0 %v1936
  %2714 = vmatprep.subr.bf16.mxu0 0
  %2715 = vmatpush1.bf16.msra.mxu0 %v1937
  %2716 = vmatprep.subr.bf16.mxu0 0
  %2717 = vmatpush1.bf16.msra.mxu0 %v1938
  %2718 = vmatprep.subr.bf16.mxu0 0
  %2719 = vmatpush1.bf16.msra.mxu0 %v1939
  %2720 = vmatprep.subr.bf16.mxu0 0
  %2721 = vmatpush1.bf16.msra.mxu0 %v1940
  %2722 = vmatprep.subr.bf16.mxu0 0
  %2723 = vmatpush1.bf16.msra.mxu0 %v1941
  %2724 = vmatprep.subr.bf16.mxu0 0
  %2725 = vmatpush1.bf16.msra.mxu0 %v1942
  %2726 = vmatprep.subr.bf16.mxu0 0
  %2727 = vmatpush1.bf16.msra.mxu0 %v1943
  %2728 = vmatprep.mubr.bf16.mxu0 %v236
  %2729 = vmatmul.mubr.bf16.gmra.mrb[0].mxu0 %v235
  %v2730 = vpop.f32.mrb[0].mxu0
  %v2731 = vadd.f32 %v2691, %v2730
  %v2732 = vpop.f32.mrb[0].mxu0
  %v2733 = vpop.f32.mrb[0].mxu0
  %v2734 = vpop.f32.mrb[0].mxu0
  %2735 = vdwg.mxu0
  %2736 = vmatprep.subr.bf16.mxu0 0
  %2737 = vmatpush1.bf16.msra.mxu0 %v1944
  %2738 = vmatprep.subr.bf16.mxu0 0
  %2739 = vmatpush1.bf16.msra.mxu0 %v1945
  %2740 = vmatprep.subr.bf16.mxu0 0
  %2741 = vmatpush1.bf16.msra.mxu0 %v1946
  %2742 = vmatprep.subr.bf16.mxu0 0
  %2743 = vmatpush1.bf16.msra.mxu0 %v1947
  %2744 = vmatprep.subr.bf16.mxu0 0
  %2745 = vmatpush1.bf16.msra.mxu0 %v1948
  %2746 = vmatprep.subr.bf16.mxu0 0
  %2747 = vmatpush1.bf16.msra.mxu0 %v1949
  %2748 = vmatprep.subr.bf16.mxu0 0
  %2749 = vmatpush1.bf16.msra.mxu0 %v1950
  %2750 = vmatprep.subr.bf16.mxu0 0
  %2751 = vmatpush1.bf16.msra.mxu0 %v1951
  %2752 = vmatprep.subr.bf16.mxu0 0
  %2753 = vmatpush1.bf16.msra.mxu0 %v1952
  %2754 = vmatprep.subr.bf16.mxu0 0
  %2755 = vmatpush1.bf16.msra.mxu0 %v1953
  %2756 = vmatprep.subr.bf16.mxu0 0
  %2757 = vmatpush1.bf16.msra.mxu0 %v1954
  %2758 = vmatprep.subr.bf16.mxu0 0
  %2759 = vmatpush1.bf16.msra.mxu0 %v1955
  %2760 = vmatprep.subr.bf16.mxu0 0
  %2761 = vmatpush1.bf16.msra.mxu0 %v1956
  %2762 = vmatprep.subr.bf16.mxu0 0
  %2763 = vmatpush1.bf16.msra.mxu0 %v1957
  %2764 = vmatprep.subr.bf16.mxu0 0
  %2765 = vmatpush1.bf16.msra.mxu0 %v1958
  %2766 = vmatprep.subr.bf16.mxu0 0
  %2767 = vmatpush1.bf16.msra.mxu0 %v1959
  %2768 = vmatprep.mubr.bf16.mxu0 %v238
  %2769 = vmatmul.mubr.bf16.gmra.mrb[0].mxu0 %v237
  %v2770 = vpop.f32.mrb[0].mxu0
  %v2771 = vadd.f32 %v2731, %v2770
  %v2772 = vpop.f32.mrb[0].mxu0
  %v2773 = vpop.f32.mrb[0].mxu0
  %v2774 = vpop.f32.mrb[0].mxu0
  %2775 = vdwg.mxu0
  %2776 = vmatprep.subr.bf16.mxu0 0
  %2777 = vmatpush1.bf16.msra.mxu0 %v1960
  %2778 = vmatprep.subr.bf16.mxu0 0
  %2779 = vmatpush1.bf16.msra.mxu0 %v1961
  %2780 = vmatprep.subr.bf16.mxu0 0
  %2781 = vmatpush1.bf16.msra.mxu0 %v1962
  %2782 = vmatprep.subr.bf16.mxu0 0
  %2783 = vmatpush1.bf16.msra.mxu0 %v1963
  %2784 = vmatprep.subr.bf16.mxu0 0
  %2785 = vmatpush1.bf16.msra.mxu0 %v1964
  %2786 = vmatprep.subr.bf16.mxu0 0
  %2787 = vmatpush1.bf16.msra.mxu0 %v1965
  %2788 = vmatprep.subr.bf16.mxu0 0
  %2789 = vmatpush1.bf16.msra.mxu0 %v1966
  %2790 = vmatprep.subr.bf16.mxu0 0
  %2791 = vmatpush1.bf16.msra.mxu0 %v1967
  %2792 = vmatprep.subr.bf16.mxu0 0
  %2793 = vmatpush1.bf16.msra.mxu0 %v1968
  %2794 = vmatprep.subr.bf16.mxu0 0
  %2795 = vmatpush1.bf16.msra.mxu0 %v1969
  %2796 = vmatprep.subr.bf16.mxu0 0
  %2797 = vmatpush1.bf16.msra.mxu0 %v1970
  %2798 = vmatprep.subr.bf16.mxu0 0
  %2799 = vmatpush1.bf16.msra.mxu0 %v1971
  %2800 = vmatprep.subr.bf16.mxu0 0
  %2801 = vmatpush1.bf16.msra.mxu0 %v1972
  %2802 = vmatprep.subr.bf16.mxu0 0
  %2803 = vmatpush1.bf16.msra.mxu0 %v1973
  %2804 = vmatprep.subr.bf16.mxu0 0
  %2805 = vmatpush1.bf16.msra.mxu0 %v1974
  %2806 = vmatprep.subr.bf16.mxu0 0
  %2807 = vmatpush1.bf16.msra.mxu0 %v1975
  %2808 = vmatprep.mubr.bf16.mxu0 %v240
  %2809 = vmatmul.mubr.bf16.gmra.mrb[0].mxu0 %v239
  %v2810 = vpop.f32.mrb[0].mxu0
  %v2811 = vadd.f32 %v2771, %v2810
  %v2812 = vpop.f32.mrb[0].mxu0
  %v2813 = vpop.f32.mrb[0].mxu0
  %v2814 = vpop.f32.mrb[0].mxu0
  %2815 = vdwg.mxu0
  %2816 = vmatprep.subr.bf16.mxu0 0
  %2817 = vmatpush1.bf16.msra.mxu0 %v1976
  %2818 = vmatprep.subr.bf16.mxu0 0
  %2819 = vmatpush1.bf16.msra.mxu0 %v1977
  %2820 = vmatprep.subr.bf16.mxu0 0
  %2821 = vmatpush1.bf16.msra.mxu0 %v1978
  %2822 = vmatprep.subr.bf16.mxu0 0
  %2823 = vmatpush1.bf16.msra.mxu0 %v1979
  %2824 = vmatprep.subr.bf16.mxu0 0
  %2825 = vmatpush1.bf16.msra.mxu0 %v1980
  %2826 = vmatprep.subr.bf16.mxu0 0
  %2827 = vmatpush1.bf16.msra.mxu0 %v1981
  %2828 = vmatprep.subr.bf16.mxu0 0
  %2829 = vmatpush1.bf16.msra.mxu0 %v1982
  %2830 = vmatprep.subr.bf16.mxu0 0
  %2831 = vmatpush1.bf16.msra.mxu0 %v1983
  %2832 = vmatprep.subr.bf16.mxu0 0
  %2833 = vmatpush1.bf16.msra.mxu0 %v1984
  %2834 = vmatprep.subr.bf16.mxu0 0
  %2835 = vmatpush1.bf16.msra.mxu0 %v1985
  %2836 = vmatprep.subr.bf16.mxu0 0
  %2837 = vmatpush1.bf16.msra.mxu0 %v1986
  %2838 = vmatprep.subr.bf16.mxu0 0
  %2839 = vmatpush1.bf16.msra.mxu0 %v1987
  %2840 = vmatprep.subr.bf16.mxu0 0
  %2841 = vmatpush1.bf16.msra.mxu0 %v1988
  %2842 = vmatprep.subr.bf16.mxu0 0
  %2843 = vmatpush1.bf16.msra.mxu0 %v1989
  %2844 = vmatprep.subr.bf16.mxu0 0
  %2845 = vmatpush1.bf16.msra.mxu0 %v1990
  %2846 = vmatprep.subr.bf16.mxu0 0
  %2847 = vmatpush1.bf16.msra.mxu0 %v1991
  %2848 = vmatprep.mubr.bf16.mxu0 %v242
  %2849 = vmatmul.mubr.bf16.gmra.mrb[0].mxu0 %v241
  %v2850 = vpop.f32.mrb[0].mxu0
  %v2851 = vadd.f32 %v2811, %v2850
  %v2852 = vpop.f32.mrb[0].mxu0
  %v2853 = vpop.f32.mrb[0].mxu0
  %v2854 = vpop.f32.mrb[0].mxu0
  %2855 = vdwg.mxu0
  %2856 = vmatprep.subr.bf16.mxu0 0
  %2857 = vmatpush1.bf16.msra.mxu0 %v1992
  %2858 = vmatprep.subr.bf16.mxu0 0
  %2859 = vmatpush1.bf16.msra.mxu0 %v1993
  %2860 = vmatprep.subr.bf16.mxu0 0
  %2861 = vmatpush1.bf16.msra.mxu0 %v1994
  %2862 = vmatprep.subr.bf16.mxu0 0
  %2863 = vmatpush1.bf16.msra.mxu0 %v1995
  %2864 = vmatprep.subr.bf16.mxu0 0
  %2865 = vmatpush1.bf16.msra.mxu0 %v1996
  %2866 = vmatprep.subr.bf16.mxu0 0
  %2867 = vmatpush1.bf16.msra.mxu0 %v1997
  %2868 = vmatprep.subr.bf16.mxu0 0
  %2869 = vmatpush1.bf16.msra.mxu0 %v1998
  %2870 = vmatprep.subr.bf16.mxu0 0
  %2871 = vmatpush1.bf16.msra.mxu0 %v1999
  %2872 = vmatprep.subr.bf16.mxu0 0
  %2873 = vmatpush1.bf16.msra.mxu0 %v2000
  %2874 = vmatprep.subr.bf16.mxu0 0
  %2875 = vmatpush1.bf16.msra.mxu0 %v2001
  %2876 = vmatprep.subr.bf16.mxu0 0
  %2877 = vmatpush1.bf16.msra.mxu0 0
  %2878 = vmatprep.subr.bf16.mxu0 0
  %2879 = vmatpush1.bf16.msra.mxu0 0
  %2880 = vmatprep.subr.bf16.mxu0 0
  %2881 = vmatpush1.bf16.msra.mxu0 0
  %2882 = vmatprep.subr.bf16.mxu0 0
  %2883 = vmatpush1.bf16.msra.mxu0 0
  %2884 = vmatprep.subr.bf16.mxu0 0
  %2885 = vmatpush1.bf16.msra.mxu0 0
  %2886 = vmatprep.subr.bf16.mxu0 0
  %2887 = vmatpush1.bf16.msra.mxu0 0
  %2888 = vmatprep.mubr.bf16.mxu0 %v2254
  %2889 = vmatmul.mubr.bf16.gmra.mrb[0].mxu0 %v243
  %v2890 = vpop.f32.mrb[0].mxu0
  %v2891 = vadd.f32 %v2851, %v2890
  %v2892 = vpop.f32.mrb[0].mxu0
  %v2893 = vpop.f32.mrb[0].mxu0
  %v2894 = vpop.f32.mrb[0].mxu0
  %2895 = vdwg.mxu0
  %vm2896 = vcmask 1041408
  %v2897 = vsel %vm2896, %v2891, 0.0
  %v2898 = vrot.slane %v2897, 4
  %v2899 = vadd.f32 %v2897, %v2898
  %v2900 = vrot.slane %v2899, 2
  %v2901 = vadd.f32 %v2899, %v2900
  %v2902 = vrot.slane %v2901, 1
  %v2903 = vadd.f32 %v2901, %v2902
  %v2904 = vrcp.pop 2.0
  %v2905 = vmul.f32 %v2903, %v2904
  %v2906 = vsub.f32 %v2891, %v2905
  %v2907 = vmul.f32 %v2906, %v2906
  %v2908 = vsel %vm2896, %v2907, 0.0
  %v2909 = vrot.slane %v2908, 4
  %v2910 = vadd.f32 %v2908, %v2909
  %v2911 = vrot.slane %v2910, 2
  %v2912 = vadd.f32 %v2910, %v2911
  %v2913 = vrot.slane %v2912, 1
  %v2914 = vadd.f32 %v2912, %v2913
  %v2915 = vmul.f32 %v2914, %v2904
  %v2916 = vld [vmem:[%s3] sm:$0x1]
  %v2918 = vlaneseq
  %v2919 = vshrl.u32 %v2918, 7
  %v2920 = vsub.s32 0, %v2919
  %v2921 = vrot.slane %v2916, %v2920
  %v2923 = vmul.f32 %v2921, %v2906
  %v2924 = vadd.f32 %v2915, 1e-05
  %v2925 = vrsqrt.pop %v2924
  %v2926 = vmul.f32 %v2923, %v2925
  %v2927 = vld [vmem:[%s4] sm:$0x1]
  %v2929 = vlaneseq
  %v2930 = vshrl.u32 %v2929, 7
  %v2931 = vsub.s32 0, %v2930
  %v2932 = vrot.slane %v2927, %v2931
  %v2934 = vadd.f32 %v2926, %v2932
  %vm2935 = vcmp.gt.f32.partialorder %v2934, 0.0
  %v2936 = vmul.f32 %v2934, 0.2
  %v2937 = vsel %vm2935, %v2934, %v2936
  %v2938 = vld [vmem:[%s5] sm:$0xff]
  %v2939 = vld [vmem:[%s5 + $0x8] sm:$0xff]
  %v2940 = vld [vmem:[%s5 + $0x10] sm:$0xff]
  %v2941 = vld [vmem:[%s5 + $0x18] sm:$0xff]
  %v2942 = vld [vmem:[%s5 + $0x20] sm:$0xff]
  %v2943 = vld [vmem:[%s5 + $0x28] sm:$0xff]
  %v2944 = vld [vmem:[%s5 + $0x30] sm:$0xff]
  %v2945 = vld [vmem:[%s5 + $0x38] sm:$0xff]
  %v2946 = vld [vmem:[%s5 + $0x40] sm:$0xff]
  %v2947 = vld [vmem:[%s5 + $0x48] sm:$0xff]
  %v2948 = vld [vmem:[%s5 + $0x50] sm:$0xff]
  %v2949 = vld [vmem:[%s5 + $0x58] sm:$0xff]
  %v2950 = vld [vmem:[%s5 + $0x60] sm:$0xff]
  %v2951 = vld [vmem:[%s5 + $0x68] sm:$0xff]
  %v2952 = vld [vmem:[%s5 + $0x70] sm:$0xff]
  %v2953 = vld [vmem:[%s5 + $0x78] sm:$0xff]
  %v2954 = vld [vmem:[#allocation2] sm:$0x1]
  %v2956 = vlaneseq
  %v2957 = vshrl.u32 %v2956, 7
  %v2958 = vsub.s32 0, %v2957
  %v2959 = vrot.slane %v2954, %v2958
  %2961 = vmatprep.subr.mxu0 0.0
  %2962 = vmatpush1.msra.mxu0 %v2938
  %2963 = vmatprep.subr.mxu0 0.0
  %2964 = vmatpush1.msra.mxu0 %v2939
  %2965 = vmatprep.subr.mxu0 0.0
  %2966 = vmatpush1.msra.mxu0 %v2940
  %2967 = vmatprep.subr.mxu0 0.0
  %2968 = vmatpush1.msra.mxu0 %v2941
  %2969 = vmatprep.subr.mxu0 0.0
  %2970 = vmatpush1.msra.mxu0 %v2942
  %2971 = vmatprep.subr.mxu0 0.0
  %2972 = vmatpush1.msra.mxu0 %v2943
  %2973 = vmatprep.subr.mxu0 0.0
  %2974 = vmatpush1.msra.mxu0 %v2944
  %2975 = vmatprep.subr.mxu0 0.0
  %2976 = vmatpush1.msra.mxu0 %v2945
  %2977 = vmatprep.subr.mxu0 0.0
  %2978 = vmatpush1.msra.mxu0 %v2946
  %2979 = vmatprep.subr.mxu0 0.0
  %2980 = vmatpush1.msra.mxu0 %v2947
  %2981 = vmatprep.subr.mxu0 0.0
  %2982 = vmatpush1.msra.mxu0 %v2948
  %2983 = vmatprep.subr.mxu0 0.0
  %2984 = vmatpush1.msra.mxu0 %v2949
  %2985 = vmatprep.subr.mxu0 0.0
  %2986 = vmatpush1.msra.mxu0 %v2950
  %2987 = vmatprep.subr.mxu0 0.0
  %2988 = vmatpush1.msra.mxu0 %v2951
  %2989 = vmatprep.subr.mxu0 0.0
  %2990 = vmatpush1.msra.mxu0 %v2952
  %2991 = vmatprep.subr.mxu0 0.0
  %2992 = vmatpush1.msra.mxu0 %v2953
  %2993 = vmatprep.subr.mxu0 0.0
  %2994 = vmatpush1.msra.mxu0 0.0
  %2995 = vmatprep.subr.mxu0 0.0
  %2996 = vmatpush1.msra.mxu0 0.0
  %2997 = vmatprep.subr.mxu0 0.0
  %2998 = vmatpush1.msra.mxu0 0.0
  %2999 = vmatprep.subr.mxu0 0.0
  %3000 = vmatpush1.msra.mxu0 0.0
  %3001 = vmatprep.subr.mxu0 0.0
  %3002 = vmatpush1.msra.mxu0 0.0
  %3003 = vmatprep.subr.mxu0 0.0
  %3004 = vmatpush1.msra.mxu0 0.0
  %3005 = vmatprep.subr.mxu0 0.0
  %3006 = vmatpush1.msra.mxu0 0.0
  %3007 = vmatprep.subr.mxu0 0.0
  %3008 = vmatpush1.msra.mxu0 0.0
  %3009 = vmatprep.subr.mxu0 0.0
  %3010 = vmatpush1.msra.mxu0 0.0
  %3011 = vmatprep.subr.mxu0 0.0
  %3012 = vmatpush1.msra.mxu0 0.0
  %3013 = vmatprep.subr.mxu0 0.0
  %3014 = vmatpush1.msra.mxu0 0.0
  %3015 = vmatprep.subr.mxu0 0.0
  %3016 = vmatpush1.msra.mxu0 0.0
  %3017 = vmatprep.subr.mxu0 0.0
  %3018 = vmatpush1.msra.mxu0 0.0
  %3019 = vmatprep.subr.mxu0 0.0
  %3020 = vmatpush1.msra.mxu0 0.0
  %3021 = vmatprep.subr.mxu0 0.0
  %3022 = vmatpush1.msra.mxu0 0.0
  %3023 = vmatprep.subr.mxu0 0.0
  %3024 = vmatpush1.msra.mxu0 0.0
  %3025 = vmatprep.mubr.f32.mxu0 0.0
  %3026 = vmatmul.mubr.f32.gmra.mrb[0].mxu0 %v2937
  %v3027 = vpop.f32.mrb[0].mxu0
  %v3028 = vadd.f32 %v2959, %v3027
  %v3029 = vpop.f32.mrb[0].mxu0
  %3030 = vdwg.mxu0
  %v3031 = vtanh.pop %v3028
  %vm3032 = vcmask 1024
  %3033 = vst.msk [vmem:[%s7] sm:$0x3] %vm3032, %v3031
  // Predicated region
  $region30: #{context_block_forward.2} parent=0 // pred_check
    _
  $region31: #{context_block_forward.2} parent=0 // pred_check_branch
    %3035 = sbr.rel (0) target = $region33
  $region32: #{context_block_forward.2} parent=0 // pred_region
    _
  $region33: #{context_block_forward.2} parent=0 // pred_fallthru
    _
  // Predicated region
  $region34: #{context_block_forward.2} parent=0 // pred_check
    _
  $region35: #{context_block_forward.2} parent=0 // pred_check_branch
    %3037 = sbr.rel (0) target = $region37
  $region36: #{context_block_forward.2} parent=0 // pred_region
    _
  $region37: #{context_block_forward.2} parent=0 // pred_fallthru
    _

</llo_original>
